<compile_context>
chip_gen: v7x
topology: tpu7x:2x2x1
jax: 0.10.0
libtpu: 0.0.40
codegen_flags: <defaults>
</compile_context>

<pallas_src>
import functools
import math

import jax
import jax.numpy as jnp
import numpy as np
from jax import lax
from jax.experimental import pallas as pl
from jax.experimental.pallas import tpu as pltpu

# ----------------------------- config (small, consistent with the module) ---
BATCH = 2
D_MODEL = 32
DIM_FF = 64
N_HEAD = 1            # module default; head_dim == d_model
N_LAYERS = 2
HEATMAP_SIZE = [8, 8]  # [w, h] -> seq_len = 64
LN_EPS = 1e-5


# ----------------------------- sine position embedding (pure JAX glue) ------
def make_sine_position_embedding(w, h, d_model, temperature=10000.0,
                                 scale=2 * math.pi):
    area = jnp.ones((1, h, w), jnp.float32)
    y_embed = jnp.cumsum(area, axis=1)
    x_embed = jnp.cumsum(area, axis=2)
    one_dir = d_model // 2
    eps = 1e-6
    y_embed = y_embed / (y_embed[:, -1:, :] + eps) * scale
    x_embed = x_embed / (x_embed[:, :, -1:] + eps) * scale
    dim_t = jnp.arange(one_dir, dtype=jnp.float32)
    dim_t = temperature ** (2.0 * jnp.floor(dim_t / 2.0) / one_dir)
    pos_x = x_embed[:, :, :, None] / dim_t
    pos_y = y_embed[:, :, :, None] / dim_t
    pos_x = jnp.stack(
        (jnp.sin(pos_x[:, :, :, 0::2]), jnp.cos(pos_x[:, :, :, 1::2])),
        axis=4).reshape(1, h, w, one_dir)
    pos_y = jnp.stack(
        (jnp.sin(pos_y[:, :, :, 0::2]), jnp.cos(pos_y[:, :, :, 1::2])),
        axis=4).reshape(1, h, w, one_dir)
    pos = jnp.concatenate((pos_y, pos_x), axis=3)         # (1, h, w, d)
    pos = jnp.transpose(pos, (0, 3, 1, 2)).reshape(1, d_model, h * w)
    pos = jnp.transpose(pos, (2, 0, 1))                    # (S, 1, d)
    return pos


# ----------------------------- parameter init (deterministic, synthetic) ----
def xavier_uniform(key, shape):
    fan_in, fan_out = shape
    limit = math.sqrt(6.0 / (fan_in + fan_out))
    return jax.random.uniform(key, shape, jnp.float32, -limit, limit)


def init_layer_params(key, d_model, dim_ff):
    ks = jax.random.split(key, 6)
    # Matrices are stored as (D_in, D_out) so the kernel does x @ W.
    return dict(
        wq=xavier_uniform(ks[0], (d_model, d_model)),
        bq=jnp.zeros((1, d_model), jnp.float32),
        wk=xavier_uniform(ks[1], (d_model, d_model)),
        bk=jnp.zeros((1, d_model), jnp.float32),
        wv=xavier_uniform(ks[2], (d_model, d_model)),
        bv=jnp.zeros((1, d_model), jnp.float32),
        wo=xavier_uniform(ks[3], (d_model, d_model)),
        bo=jnp.zeros((1, d_model), jnp.float32),
        g1=jnp.ones((1, d_model), jnp.float32),
        be1=jnp.zeros((1, d_model), jnp.float32),
        w1=xavier_uniform(ks[4], (d_model, dim_ff)),
        bf1=jnp.zeros((1, dim_ff), jnp.float32),
        w2=xavier_uniform(ks[5], (dim_ff, d_model)),
        bf2=jnp.zeros((1, d_model), jnp.float32),
        g2=jnp.ones((1, d_model), jnp.float32),
        be2=jnp.zeros((1, d_model), jnp.float32),
    )


PARAM_ORDER = ("wq", "bq", "wk", "bk", "wv", "bv", "wo", "bo",
               "g1", "be1", "w1", "bf1", "w2", "bf2", "g2", "be2")


def stack_and_fold_params(layers_params, scale):
    """Stack per-layer params on a leading layer axis; fold the attention
    scale into wq / bq (one-time constant fold, not a per-call op)."""
    stacked = {name: jnp.stack([p[name] for p in layers_params], axis=0)
               for name in PARAM_ORDER}
    stacked["wq"] = stacked["wq"] * scale
    stacked["bq"] = stacked["bq"] * scale
    return stacked


# ----------------------------- fused Pallas kernel ---------------------------
def fused_encoder_kernel(src_ref, pos_ref,
                         wq_ref, bq_ref, wk_ref, bk_ref, wv_ref, bv_ref,
                         wo_ref, bo_ref,
                         g1_ref, be1_ref,
                         w1_ref, bf1_ref, w2_ref, bf2_ref,
                         g2_ref, be2_ref,
                         out_ref, act_ref, *, B, S, D, eps):
    layer = pl.program_id(0)

    # Layer 0: bring activations into the resident VMEM scratch.
    @pl.when(layer == 0)
    def _():
        act_ref[...] = src_ref[...]

    x = act_ref[...]                       # (B, S, D) resident activations
    pos = pos_ref[...]                     # (S, D)

    x_flat = x.reshape(B * S, D)
    qk_flat = (x + pos[None]).reshape(B * S, D)

    # --- self-attention (q = k = src + pos, value = src), nhead = 1 ---------
    # Attention scale is already folded into wq / bq.
    q = jnp.dot(qk_flat, wq_ref[...],
                preferred_element_type=jnp.float32) + bq_ref[...]
    k = jnp.dot(qk_flat, wk_ref[...],
                preferred_element_type=jnp.float32) + bk_ref[...]
    v = jnp.dot(x_flat, wv_ref[...],
                preferred_element_type=jnp.float32) + bv_ref[...]

    q = q.reshape(B, S, D)
    k = k.reshape(B, S, D)
    v = v.reshape(B, S, D)

    # scores: contract on D directly (no explicit k.T / XLU transpose).
    scores = lax.dot_general(q, k, (((2,), (2,)), ((0,), (0,))),
                             preferred_element_type=jnp.float32)   # (B, S, S)
    scores = scores - jnp.max(scores, axis=-1, keepdims=True)
    p = jnp.exp(scores)
    denom = jnp.sum(p, axis=-1, keepdims=True)
    p = p * pl.reciprocal(denom, approx=True)
    attn = lax.dot_general(p, v, (((2,), (1,)), ((0,), (0,))),
                           preferred_element_type=jnp.float32)     # (B, S, D)

    src2 = jnp.dot(attn.reshape(B * S, D), wo_ref[...],
                   preferred_element_type=jnp.float32) + bo_ref[...]

    # --- residual + LayerNorm 1 ----------------------------------------------
    xr = x_flat + src2
    mu = jnp.mean(xr, axis=-1, keepdims=True)
    var = jnp.mean((xr - mu) ** 2, axis=-1, keepdims=True)
    xn = (xr - mu) * lax.rsqrt(var + eps) * g1_ref[...] + be1_ref[...]

    # --- feed-forward (relu) + residual + LayerNorm 2 -------------------------
    h = jnp.dot(xn, w1_ref[...], preferred_element_type=jnp.float32) + bf1_ref[...]
    h = jnp.maximum(h, 0.0)
    f = jnp.dot(h, w2_ref[...], preferred_element_type=jnp.float32) + bf2_ref[...]
    y = xn + f
    mu = jnp.mean(y, axis=-1, keepdims=True)
    var = jnp.mean((y - mu) ** 2, axis=-1, keepdims=True)
    yn = (y - mu) * lax.rsqrt(var + eps) * g2_ref[...] + be2_ref[...]

    act_ref[...] = yn.reshape(B, S, D)

    # Only the last layer touches HBM.
    @pl.when(layer == pl.num_programs(0) - 1)
    def _():
        out_ref[...] = act_ref[...].astype(out_ref.dtype)


def transformer_encoder_pallas(src, pos, stacked):
    """src: (B, S, D) f32, pos: (S, D) f32, stacked: params with leading L."""
    B, S, D = src.shape
    L = stacked["wq"].shape[0]
    F = stacked["w1"].shape[2]

    kernel = functools.partial(fused_encoder_kernel, B=B, S=S, D=D, eps=LN_EPS)

    def per_layer(shape):
        # Leading layer dim is squeezed out of the kernel view.
        return pl.BlockSpec((None,) + shape, lambda l: (l,) + (0,) * len(shape))

    in_specs = [
        pl.BlockSpec((B, S, D), lambda l: (0, 0, 0)),   # src (read at layer 0)
        pl.BlockSpec((S, D), lambda l: (0, 0)),          # pos
        per_layer((D, D)), per_layer((1, D)),            # wq, bq (scale folded)
        per_layer((D, D)), per_layer((1, D)),            # wk, bk
        per_layer((D, D)), per_layer((1, D)),            # wv, bv
        per_layer((D, D)), per_layer((1, D)),            # wo, bo
        per_layer((1, D)), per_layer((1, D)),            # ln1 gamma, beta
        per_layer((D, F)), per_layer((1, F)),            # linear1
        per_layer((F, D)), per_layer((1, D)),            # linear2
        per_layer((1, D)), per_layer((1, D)),            # ln2 gamma, beta
    ]

    return pl.pallas_call(
        kernel,
        out_shape=jax.ShapeDtypeStruct((B, S, D), jnp.float32),
        grid=(L,),
        in_specs=in_specs,
        out_specs=pl.BlockSpec((B, S, D), lambda l: (0, 0, 0)),
        scratch_shapes=[pltpu.VMEM((B, S, D), jnp.float32)],
        compiler_params=pltpu.CompilerParams(
            dimension_semantics=("arbitrary",)),
    )(src, pos, *[stacked[name] for name in PARAM_ORDER])


# ----------------------------- full forward (glue in plain JAX) -------------
def transformer_forward(x, stacked, pe):
    """x: NCHW (bs, d_model, H, W).  Returns NCHW of the same shape."""
    bs, d, hh, ww = x.shape
    S = hh * ww
    # torch: x.flatten(2).permute(2,0,1) -> (S, bs, d);  kernel layout (bs, S, d)
    src = x.reshape(bs, d, S).transpose(0, 2, 1).astype(jnp.float32)
    pos = pe[:, 0, :]                                   # (S, d) broadcast over batch
    out = transformer_encoder_pallas(src, pos, stacked)
    # torch: output.permute(1,2,0).reshape(bs, d, w, h)
    return out.transpose(0, 2, 1).reshape(bs, d, hh, ww)


# ----------------------------- pure-JAX reference (for correctness check) ---
def ref_layer(src, pos, p, scale, eps=LN_EPS):
    qk_in = src + pos[None]
    q = qk_in @ p["wq"] + p["bq"]
    k = qk_in @ p["wk"] + p["bk"]
    v = src @ p["wv"] + p["bv"]
    s = (q * scale) @ jnp.swapaxes(k, -1, -2)
    a = jax.nn.softmax(s, axis=-1)
    src2 = (a @ v) @ p["wo"] + p["bo"]
    x = src + src2
    mu = x.mean(-1, keepdims=True)
    var = ((x - mu) ** 2).mean(-1, keepdims=True)
    x = (x - mu) / jnp.sqrt(var + eps) * p["g1"] + p["be1"]
    h = jax.nn.relu(x @ p["w1"] + p["bf1"])
    f = h @ p["w2"] + p["bf2"]
    y = x + f
    mu = y.mean(-1, keepdims=True)
    var = ((y - mu) ** 2).mean(-1, keepdims=True)
    return (y - mu) / jnp.sqrt(var + eps) * p["g2"] + p["be2"]


def ref_forward(x, layers_params, pe):
    bs, d, hh, ww = x.shape
    S = hh * ww
    src = x.reshape(bs, d, S).transpose(0, 2, 1).astype(jnp.float32)
    pos = pe[:, 0, :]
    scale = 1.0 / math.sqrt(D_MODEL // N_HEAD)
    for p in layers_params:
        src = ref_layer(src, pos, p, scale)
    return src.transpose(0, 2, 1).reshape(bs, d, hh, ww)


# ----------------------------- main ------------------------------------------
if __name__ == "__main__":
    key = jax.random.PRNGKey(0)
    k_x, k_p = jax.random.split(key)

    w, h = HEATMAP_SIZE
    x = jax.random.normal(k_x, (BATCH, D_MODEL, h, w), jnp.float32)  # NCHW

    layer_keys = jax.random.split(k_p, N_LAYERS)
    layers_params = [init_layer_params(k, D_MODEL, DIM_FF) for k in layer_keys]
    pe = make_sine_position_embedding(w, h, D_MODEL)     # (S, 1, d_model)

    # One-time parameter prep: stack per layer + fold attention scale into wq/bq.
    scale = 1.0 / math.sqrt(D_MODEL // N_HEAD)
    stacked = stack_and_fold_params(layers_params, scale)

    out = transformer_forward(x, stacked, pe)
    out = jax.block_until_ready(out)

    ref = jax.block_until_ready(ref_forward(x, layers_params, pe))
    np.testing.assert_allclose(np.asarray(out), np.asarray(ref),
                               rtol=1e-2, atol=1e-2)
    assert out.shape == x.shape

    print("KERNEL_OK")
</pallas_src>

<mosaic_0001>
module attributes {stable_mosaic.version = 11 : i64} {
  func.func @fused_encoder_kernel(%arg0: i32, %arg1: memref<2x64x32xf32, #tpu.memory_space<vmem>>, %arg2: memref<64x32xf32, #tpu.memory_space<vmem>>, %arg3: memref<1x32x32xf32, #tpu.memory_space<vmem>>, %arg4: memref<1x1x32xf32, #tpu.memory_space<vmem>>, %arg5: memref<1x32x32xf32, #tpu.memory_space<vmem>>, %arg6: memref<1x1x32xf32, #tpu.memory_space<vmem>>, %arg7: memref<1x32x32xf32, #tpu.memory_space<vmem>>, %arg8: memref<1x1x32xf32, #tpu.memory_space<vmem>>, %arg9: memref<1x32x32xf32, #tpu.memory_space<vmem>>, %arg10: memref<1x1x32xf32, #tpu.memory_space<vmem>>, %arg11: memref<1x1x32xf32, #tpu.memory_space<vmem>>, %arg12: memref<1x1x32xf32, #tpu.memory_space<vmem>>, %arg13: memref<1x32x64xf32, #tpu.memory_space<vmem>>, %arg14: memref<1x1x64xf32, #tpu.memory_space<vmem>>, %arg15: memref<1x64x32xf32, #tpu.memory_space<vmem>>, %arg16: memref<1x1x32xf32, #tpu.memory_space<vmem>>, %arg17: memref<1x1x32xf32, #tpu.memory_space<vmem>>, %arg18: memref<1x1x32xf32, #tpu.memory_space<vmem>>, %arg19: memref<2x64x32xf32, #tpu.memory_space<vmem>>, %arg20: memref<2x64x32xf32, #tpu.memory_space<vmem>>) attributes {dimension_semantics = [#tpu.dimension_semantics<arbitrary>], iteration_bounds = array<i64: 2>, scalar_prefetch = 0 : i64, scratch_operands = 1 : i64, tpu.core_type = #tpu.core_type<tc>, window_params = [{pipeline_mode = #tpu.pipeline_mode<synchronous>, transform_indices = @transform_0, window_bounds = array<i64: 2, 64, 32>}, {pipeline_mode = #tpu.pipeline_mode<synchronous>, transform_indices = @transform_1, window_bounds = array<i64: 64, 32>}, {transform_indices = @transform_2, window_bounds = array<i64: 1, 32, 32>}, {transform_indices = @transform_3, window_bounds = array<i64: 1, 1, 32>}, {transform_indices = @transform_4, window_bounds = array<i64: 1, 32, 32>}, {transform_indices = @transform_5, window_bounds = array<i64: 1, 1, 32>}, {transform_indices = @transform_6, window_bounds = array<i64: 1, 32, 32>}, {transform_indices = @transform_7, window_bounds = array<i64: 1, 1, 32>}, {transform_indices = @transform_8, window_bounds = array<i64: 1, 32, 32>}, {transform_indices = @transform_9, window_bounds = array<i64: 1, 1, 32>}, {transform_indices = @transform_10, window_bounds = array<i64: 1, 1, 32>}, {transform_indices = @transform_11, window_bounds = array<i64: 1, 1, 32>}, {transform_indices = @transform_12, window_bounds = array<i64: 1, 32, 64>}, {transform_indices = @transform_13, window_bounds = array<i64: 1, 1, 64>}, {transform_indices = @transform_14, window_bounds = array<i64: 1, 64, 32>}, {transform_indices = @transform_15, window_bounds = array<i64: 1, 1, 32>}, {transform_indices = @transform_16, window_bounds = array<i64: 1, 1, 32>}, {transform_indices = @transform_17, window_bounds = array<i64: 1, 1, 32>}, {pipeline_mode = #tpu.pipeline_mode<synchronous>, transform_indices = @transform_18, window_bounds = array<i64: 2, 64, 32>}]} {
    %c0_i32 = arith.constant 0 : i32
    %0 = arith.cmpi eq, %arg0, %c0_i32 : i32
    %1 = arith.extui %0 : i1 to i32
    %c0_i32_0 = arith.constant 0 : i32
    %2 = arith.cmpi ne, %1, %c0_i32_0 : i32
    scf.if %2 {
      %c0_77 = arith.constant 0 : index
      %c0_78 = arith.constant 0 : index
      %c0_79 = arith.constant 0 : index
      %129 = vector.load %arg1[%c0_77, %c0_78, %c0_79] : memref<2x64x32xf32, #tpu.memory_space<vmem>>, vector<2x64x32xf32>
      %c0_80 = arith.constant 0 : index
      %c0_81 = arith.constant 0 : index
      %c0_82 = arith.constant 0 : index
      %130 = vector.load %arg20[%c0_80, %c0_81, %c0_82] : memref<2x64x32xf32, #tpu.memory_space<vmem>>, vector<2x64x32xf32>
      tpu.vector_store %arg20[%c0_80, %c0_81, %c0_82], %129 {strides = array<i32>} : memref<2x64x32xf32, #tpu.memory_space<vmem>>, vector<2x64x32xf32>,
    } else {
    }
    %c0 = arith.constant 0 : index
    %c0_1 = arith.constant 0 : index
    %c0_2 = arith.constant 0 : index
    %3 = vector.load %arg20[%c0, %c0_1, %c0_2] : memref<2x64x32xf32, #tpu.memory_space<vmem>>, vector<2x64x32xf32>
    %c0_3 = arith.constant 0 : index
    %c0_4 = arith.constant 0 : index
    %4 = vector.load %arg2[%c0_3, %c0_4] : memref<64x32xf32, #tpu.memory_space<vmem>>, vector<64x32xf32>
    %5 = vector.shape_cast %3 : vector<2x64x32xf32> to vector<128x32xf32>
    %6 = vector.shape_cast %4 : vector<64x32xf32> to vector<1x64x32xf32>
    %7 = vector.broadcast %6 : vector<1x64x32xf32> to vector<2x64x32xf32>
    %8 = arith.addf %3, %7 : vector<2x64x32xf32>
    %9 = vector.shape_cast %8 : vector<2x64x32xf32> to vector<128x32xf32>
    %c0_5 = arith.constant 0 : index
    %c0_6 = arith.constant 0 : index
    %c0_7 = arith.constant 0 : index
    %10 = vector.load %arg3[%c0_5, %c0_6, %c0_7] : memref<1x32x32xf32, #tpu.memory_space<vmem>>, vector<1x32x32xf32>
    %11 = vector.shape_cast %10 : vector<1x32x32xf32> to vector<32x32xf32>
    %cst = arith.constant dense<0.000000e+00> : vector<128x32xf32>
    %12 = tpu.matmul %9, %11, %cst {dimension_numbers = #tpu.dot_dimension_numbers<[1], [0], [0], [1], [0, 0, 1, 1], [], []>} : vector<128x32xf32>, vector<32x32xf32>, vector<128x32xf32> -> vector<128x32xf32>
    %c0_8 = arith.constant 0 : index
    %c0_9 = arith.constant 0 : index
    %c0_10 = arith.constant 0 : index
    %13 = vector.load %arg4[%c0_8, %c0_9, %c0_10] : memref<1x1x32xf32, #tpu.memory_space<vmem>>, vector<1x1x32xf32>
    %14 = vector.shape_cast %13 : vector<1x1x32xf32> to vector<1x32xf32>
    %15 = vector.broadcast %14 : vector<1x32xf32> to vector<128x32xf32>
    %16 = arith.addf %12, %15 : vector<128x32xf32>
    %c0_11 = arith.constant 0 : index
    %c0_12 = arith.constant 0 : index
    %c0_13 = arith.constant 0 : index
    %17 = vector.load %arg5[%c0_11, %c0_12, %c0_13] : memref<1x32x32xf32, #tpu.memory_space<vmem>>, vector<1x32x32xf32>
    %18 = vector.shape_cast %17 : vector<1x32x32xf32> to vector<32x32xf32>
    %cst_14 = arith.constant dense<0.000000e+00> : vector<128x32xf32>
    %19 = tpu.matmul %9, %18, %cst_14 {dimension_numbers = #tpu.dot_dimension_numbers<[1], [0], [0], [1], [0, 0, 1, 1], [], []>} : vector<128x32xf32>, vector<32x32xf32>, vector<128x32xf32> -> vector<128x32xf32>
    %c0_15 = arith.constant 0 : index
    %c0_16 = arith.constant 0 : index
    %c0_17 = arith.constant 0 : index
    %20 = vector.load %arg6[%c0_15, %c0_16, %c0_17] : memref<1x1x32xf32, #tpu.memory_space<vmem>>, vector<1x1x32xf32>
    %21 = vector.shape_cast %20 : vector<1x1x32xf32> to vector<1x32xf32>
    %22 = vector.broadcast %21 : vector<1x32xf32> to vector<128x32xf32>
    %23 = arith.addf %19, %22 : vector<128x32xf32>
    %c0_18 = arith.constant 0 : index
    %c0_19 = arith.constant 0 : index
    %c0_20 = arith.constant 0 : index
    %24 = vector.load %arg7[%c0_18, %c0_19, %c0_20] : memref<1x32x32xf32, #tpu.memory_space<vmem>>, vector<1x32x32xf32>
    %25 = vector.shape_cast %24 : vector<1x32x32xf32> to vector<32x32xf32>
    %cst_21 = arith.constant dense<0.000000e+00> : vector<128x32xf32>
    %26 = tpu.matmul %5, %25, %cst_21 {dimension_numbers = #tpu.dot_dimension_numbers<[1], [0], [0], [1], [0, 0, 1, 1], [], []>} : vector<128x32xf32>, vector<32x32xf32>, vector<128x32xf32> -> vector<128x32xf32>
    %c0_22 = arith.constant 0 : index
    %c0_23 = arith.constant 0 : index
    %c0_24 = arith.constant 0 : index
    %27 = vector.load %arg8[%c0_22, %c0_23, %c0_24] : memref<1x1x32xf32, #tpu.memory_space<vmem>>, vector<1x1x32xf32>
    %28 = vector.shape_cast %27 : vector<1x1x32xf32> to vector<1x32xf32>
    %29 = vector.broadcast %28 : vector<1x32xf32> to vector<128x32xf32>
    %30 = arith.addf %26, %29 : vector<128x32xf32>
    %31 = vector.shape_cast %16 : vector<128x32xf32> to vector<2x64x32xf32>
    %32 = vector.shape_cast %23 : vector<128x32xf32> to vector<2x64x32xf32>
    %33 = vector.shape_cast %30 : vector<128x32xf32> to vector<2x64x32xf32>
    %cst_25 = arith.constant dense<0.000000e+00> : vector<2x64x64xf32>
    %34 = tpu.matmul %31, %32, %cst_25 {dimension_numbers = #tpu.dot_dimension_numbers<[2], [2], [1], [1], [0, 0, 0, 1, 1, 1], [0], [0]>} : vector<2x64x32xf32>, vector<2x64x32xf32>, vector<2x64x64xf32> -> vector<2x64x64xf32>
    %cst_26 = arith.constant dense<0xFF800000> : vector<2x64xf32>
    %35 = vector.multi_reduction <maximumf>, %34, %cst_26 [2] : vector<2x64x64xf32> to vector<2x64xf32>
    %36 = vector.shape_cast %35 : vector<2x64xf32> to vector<2x64x1xf32>
    %37 = vector.broadcast %36 : vector<2x64x1xf32> to vector<2x64x64xf32>
    %38 = arith.subf %34, %37 : vector<2x64x64xf32>
    %39 = math.exp %38 : vector<2x64x64xf32>
    %cst_27 = arith.constant dense<0.000000e+00> : vector<2x64xf32>
    %40 = vector.multi_reduction <add>, %39, %cst_27 [2] : vector<2x64x64xf32> to vector<2x64xf32>
    %41 = vector.shape_cast %40 : vector<2x64xf32> to vector<2x64x1xf32>
    %42 = tpu.reciprocal %41 {approx = true} : vector<2x64x1xf32> -> vector<2x64x1xf32>
    %43 = vector.broadcast %42 : vector<2x64x1xf32> to vector<2x64x64xf32>
    %44 = arith.mulf %39, %43 : vector<2x64x64xf32>
    %cst_28 = arith.constant dense<0.000000e+00> : vector<2x64x32xf32>
    %45 = tpu.matmul %44, %33, %cst_28 {dimension_numbers = #tpu.dot_dimension_numbers<[2], [1], [1], [2], [0, 0, 0, 1, 1, 2], [0], [0]>} : vector<2x64x64xf32>, vector<2x64x32xf32>, vector<2x64x32xf32> -> vector<2x64x32xf32>
    %46 = vector.shape_cast %45 : vector<2x64x32xf32> to vector<128x32xf32>
    %c0_29 = arith.constant 0 : index
    %c0_30 = arith.constant 0 : index
    %c0_31 = arith.constant 0 : index
    %47 = vector.load %arg9[%c0_29, %c0_30, %c0_31] : memref<1x32x32xf32, #tpu.memory_space<vmem>>, vector<1x32x32xf32>
    %48 = vector.shape_cast %47 : vector<1x32x32xf32> to vector<32x32xf32>
    %cst_32 = arith.constant dense<0.000000e+00> : vector<128x32xf32>
    %49 = tpu.matmul %46, %48, %cst_32 {dimension_numbers = #tpu.dot_dimension_numbers<[1], [0], [0], [1], [0, 0, 1, 1], [], []>} : vector<128x32xf32>, vector<32x32xf32>, vector<128x32xf32> -> vector<128x32xf32>
    %c0_33 = arith.constant 0 : index
    %c0_34 = arith.constant 0 : index
    %c0_35 = arith.constant 0 : index
    %50 = vector.load %arg10[%c0_33, %c0_34, %c0_35] : memref<1x1x32xf32, #tpu.memory_space<vmem>>, vector<1x1x32xf32>
    %51 = vector.shape_cast %50 : vector<1x1x32xf32> to vector<1x32xf32>
    %52 = vector.broadcast %51 : vector<1x32xf32> to vector<128x32xf32>
    %53 = arith.addf %49, %52 : vector<128x32xf32>
    %54 = arith.addf %5, %53 : vector<128x32xf32>
    %cst_36 = arith.constant dense<0.000000e+00> : vector<128xf32>
    %55 = vector.multi_reduction <add>, %54, %cst_36 [1] : vector<128x32xf32> to vector<128xf32>
    %56 = vector.shape_cast %55 : vector<128xf32> to vector<128x1xf32>
    %cst_37 = arith.constant 3.200000e+01 : f32
    %57 = vector.broadcast %cst_37 : f32 to vector<128x1xf32>
    %58 = arith.divf %56, %57 : vector<128x1xf32>
    %59 = vector.broadcast %58 : vector<128x1xf32> to vector<128x32xf32>
    %60 = arith.subf %54, %59 : vector<128x32xf32>
    %61 = arith.mulf %60, %60 : vector<128x32xf32>
    %cst_38 = arith.constant dense<0.000000e+00> : vector<128xf32>
    %62 = vector.multi_reduction <add>, %61, %cst_38 [1] : vector<128x32xf32> to vector<128xf32>
    %63 = vector.shape_cast %62 : vector<128xf32> to vector<128x1xf32>
    %cst_39 = arith.constant 3.200000e+01 : f32
    %64 = vector.broadcast %cst_39 : f32 to vector<128x1xf32>
    %65 = arith.divf %63, %64 : vector<128x1xf32>
    %66 = vector.broadcast %58 : vector<128x1xf32> to vector<128x32xf32>
    %67 = arith.subf %54, %66 : vector<128x32xf32>
    %cst_40 = arith.constant 9.99999974E-6 : f32
    %68 = vector.broadcast %cst_40 : f32 to vector<128x1xf32>
    %69 = arith.addf %65, %68 : vector<128x1xf32>
    %70 = math.rsqrt %69 : vector<128x1xf32>
    %71 = vector.broadcast %70 : vector<128x1xf32> to vector<128x32xf32>
    %72 = arith.mulf %67, %71 : vector<128x32xf32>
    %c0_41 = arith.constant 0 : index
    %c0_42 = arith.constant 0 : index
    %c0_43 = arith.constant 0 : index
    %73 = vector.load %arg11[%c0_41, %c0_42, %c0_43] : memref<1x1x32xf32, #tpu.memory_space<vmem>>, vector<1x1x32xf32>
    %74 = vector.shape_cast %73 : vector<1x1x32xf32> to vector<1x32xf32>
    %75 = vector.broadcast %74 : vector<1x32xf32> to vector<128x32xf32>
    %76 = arith.mulf %72, %75 : vector<128x32xf32>
    %c0_44 = arith.constant 0 : index
    %c0_45 = arith.constant 0 : index
    %c0_46 = arith.constant 0 : index
    %77 = vector.load %arg12[%c0_44, %c0_45, %c0_46] : memref<1x1x32xf32, #tpu.memory_space<vmem>>, vector<1x1x32xf32>
    %78 = vector.shape_cast %77 : vector<1x1x32xf32> to vector<1x32xf32>
    %79 = vector.broadcast %78 : vector<1x32xf32> to vector<128x32xf32>
    %80 = arith.addf %76, %79 : vector<128x32xf32>
    %c0_47 = arith.constant 0 : index
    %c0_48 = arith.constant 0 : index
    %c0_49 = arith.constant 0 : index
    %81 = vector.load %arg13[%c0_47, %c0_48, %c0_49] : memref<1x32x64xf32, #tpu.memory_space<vmem>>, vector<1x32x64xf32>
    %82 = vector.shape_cast %81 : vector<1x32x64xf32> to vector<32x64xf32>
    %cst_50 = arith.constant dense<0.000000e+00> : vector<128x64xf32>
    %83 = tpu.matmul %80, %82, %cst_50 {dimension_numbers = #tpu.dot_dimension_numbers<[1], [0], [0], [1], [0, 0, 1, 1], [], []>} : vector<128x32xf32>, vector<32x64xf32>, vector<128x64xf32> -> vector<128x64xf32>
    %c0_51 = arith.constant 0 : index
    %c0_52 = arith.constant 0 : index
    %c0_53 = arith.constant 0 : index
    %84 = vector.load %arg14[%c0_51, %c0_52, %c0_53] : memref<1x1x64xf32, #tpu.memory_space<vmem>>, vector<1x1x64xf32>
    %85 = vector.shape_cast %84 : vector<1x1x64xf32> to vector<1x64xf32>
    %86 = vector.broadcast %85 : vector<1x64xf32> to vector<128x64xf32>
    %87 = arith.addf %83, %86 : vector<128x64xf32>
    %cst_54 = arith.constant 0.000000e+00 : f32
    %88 = vector.broadcast %cst_54 : f32 to vector<128x64xf32>
    %89 = arith.maximumf %87, %88 : vector<128x64xf32>
    %c0_55 = arith.constant 0 : index
    %c0_56 = arith.constant 0 : index
    %c0_57 = arith.constant 0 : index
    %90 = vector.load %arg15[%c0_55, %c0_56, %c0_57] : memref<1x64x32xf32, #tpu.memory_space<vmem>>, vector<1x64x32xf32>
    %91 = vector.shape_cast %90 : vector<1x64x32xf32> to vector<64x32xf32>
    %cst_58 = arith.constant dense<0.000000e+00> : vector<128x32xf32>
    %92 = tpu.matmul %89, %91, %cst_58 {dimension_numbers = #tpu.dot_dimension_numbers<[1], [0], [0], [1], [0, 0, 1, 1], [], []>} : vector<128x64xf32>, vector<64x32xf32>, vector<128x32xf32> -> vector<128x32xf32>
    %c0_59 = arith.constant 0 : index
    %c0_60 = arith.constant 0 : index
    %c0_61 = arith.constant 0 : index
    %93 = vector.load %arg16[%c0_59, %c0_60, %c0_61] : memref<1x1x32xf32, #tpu.memory_space<vmem>>, vector<1x1x32xf32>
    %94 = vector.shape_cast %93 : vector<1x1x32xf32> to vector<1x32xf32>
    %95 = vector.broadcast %94 : vector<1x32xf32> to vector<128x32xf32>
    %96 = arith.addf %92, %95 : vector<128x32xf32>
    %97 = arith.addf %80, %96 : vector<128x32xf32>
    %cst_62 = arith.constant dense<0.000000e+00> : vector<128xf32>
    %98 = vector.multi_reduction <add>, %97, %cst_62 [1] : vector<128x32xf32> to vector<128xf32>
    %99 = vector.shape_cast %98 : vector<128xf32> to vector<128x1xf32>
    %cst_63 = arith.constant 3.200000e+01 : f32
    %100 = vector.broadcast %cst_63 : f32 to vector<128x1xf32>
    %101 = arith.divf %99, %100 : vector<128x1xf32>
    %102 = vector.broadcast %101 : vector<128x1xf32> to vector<128x32xf32>
    %103 = arith.subf %97, %102 : vector<128x32xf32>
    %104 = arith.mulf %103, %103 : vector<128x32xf32>
    %cst_64 = arith.constant dense<0.000000e+00> : vector<128xf32>
    %105 = vector.multi_reduction <add>, %104, %cst_64 [1] : vector<128x32xf32> to vector<128xf32>
    %106 = vector.shape_cast %105 : vector<128xf32> to vector<128x1xf32>
    %cst_65 = arith.constant 3.200000e+01 : f32
    %107 = vector.broadcast %cst_65 : f32 to vector<128x1xf32>
    %108 = arith.divf %106, %107 : vector<128x1xf32>
    %109 = vector.broadcast %101 : vector<128x1xf32> to vector<128x32xf32>
    %110 = arith.subf %97, %109 : vector<128x32xf32>
    %cst_66 = arith.constant 9.99999974E-6 : f32
    %111 = vector.broadcast %cst_66 : f32 to vector<128x1xf32>
    %112 = arith.addf %108, %111 : vector<128x1xf32>
    %113 = math.rsqrt %112 : vector<128x1xf32>
    %114 = vector.broadcast %113 : vector<128x1xf32> to vector<128x32xf32>
    %115 = arith.mulf %110, %114 : vector<128x32xf32>
    %c0_67 = arith.constant 0 : index
    %c0_68 = arith.constant 0 : index
    %c0_69 = arith.constant 0 : index
    %116 = vector.load %arg17[%c0_67, %c0_68, %c0_69] : memref<1x1x32xf32, #tpu.memory_space<vmem>>, vector<1x1x32xf32>
    %117 = vector.shape_cast %116 : vector<1x1x32xf32> to vector<1x32xf32>
    %118 = vector.broadcast %117 : vector<1x32xf32> to vector<128x32xf32>
    %119 = arith.mulf %115, %118 : vector<128x32xf32>
    %c0_70 = arith.constant 0 : index
    %c0_71 = arith.constant 0 : index
    %c0_72 = arith.constant 0 : index
    %120 = vector.load %arg18[%c0_70, %c0_71, %c0_72] : memref<1x1x32xf32, #tpu.memory_space<vmem>>, vector<1x1x32xf32>
    %121 = vector.shape_cast %120 : vector<1x1x32xf32> to vector<1x32xf32>
    %122 = vector.broadcast %121 : vector<1x32xf32> to vector<128x32xf32>
    %123 = arith.addf %119, %122 : vector<128x32xf32>
    %124 = vector.shape_cast %123 : vector<128x32xf32> to vector<2x64x32xf32>
    %c0_73 = arith.constant 0 : index
    %c0_74 = arith.constant 0 : index
    %c0_75 = arith.constant 0 : index
    %125 = vector.load %arg20[%c0_73, %c0_74, %c0_75] : memref<2x64x32xf32, #tpu.memory_space<vmem>>, vector<2x64x32xf32>
    tpu.vector_store %arg20[%c0_73, %c0_74, %c0_75], %124 {strides = array<i32>} : memref<2x64x32xf32, #tpu.memory_space<vmem>>, vector<2x64x32xf32>,
    %c1_i32 = arith.constant 1 : i32
    %126 = arith.cmpi eq, %arg0, %c1_i32 : i32
    %127 = arith.extui %126 : i1 to i32
    %c0_i32_76 = arith.constant 0 : i32
    %128 = arith.cmpi ne, %127, %c0_i32_76 : i32
    scf.if %128 {
      %c0_77 = arith.constant 0 : index
      %c0_78 = arith.constant 0 : index
      %c0_79 = arith.constant 0 : index
      %129 = vector.load %arg20[%c0_77, %c0_78, %c0_79] : memref<2x64x32xf32, #tpu.memory_space<vmem>>, vector<2x64x32xf32>
      %c0_80 = arith.constant 0 : index
      %c0_81 = arith.constant 0 : index
      %c0_82 = arith.constant 0 : index
      %130 = vector.load %arg19[%c0_80, %c0_81, %c0_82] : memref<2x64x32xf32, #tpu.memory_space<vmem>>, vector<2x64x32xf32>
      tpu.vector_store %arg19[%c0_80, %c0_81, %c0_82], %129 {strides = array<i32>} : memref<2x64x32xf32, #tpu.memory_space<vmem>>, vector<2x64x32xf32>,
    } else {
    }
    return
  }
  func.func @transform_0(%arg0: i32) -> (i32, i32, i32) {
    %c0_i32 = arith.constant 0 : i32
    %c0_i32_0 = arith.constant 0 : i32
    %c0_i32_1 = arith.constant 0 : i32
    %c0_i32_2 = arith.constant 0 : i32
    return %c0_i32, %c0_i32_0, %c0_i32_1 : i32, i32, i32
  }
  func.func @transform_1(%arg0: i32) -> (i32, i32) {
    %c0_i32 = arith.constant 0 : i32
    %c0_i32_0 = arith.constant 0 : i32
    %c0_i32_1 = arith.constant 0 : i32
    return %c0_i32, %c0_i32_0 : i32, i32
  }
  func.func @transform_2(%arg0: i32) -> (i32, i32, i32) {
    %c0_i32 = arith.constant 0 : i32
    %c0_i32_0 = arith.constant 0 : i32
    %c0_i32_1 = arith.constant 0 : i32
    return %arg0, %c0_i32, %c0_i32_0 : i32, i32, i32
  }
  func.func @transform_3(%arg0: i32) -> (i32, i32, i32) {
    %c0_i32 = arith.constant 0 : i32
    %c0_i32_0 = arith.constant 0 : i32
    %c0_i32_1 = arith.constant 0 : i32
    return %arg0, %c0_i32, %c0_i32_0 : i32, i32, i32
  }
  func.func @transform_4(%arg0: i32) -> (i32, i32, i32) {
    %c0_i32 = arith.constant 0 : i32
    %c0_i32_0 = arith.constant 0 : i32
    %c0_i32_1 = arith.constant 0 : i32
    return %arg0, %c0_i32, %c0_i32_0 : i32, i32, i32
  }
  func.func @transform_5(%arg0: i32) -> (i32, i32, i32) {
    %c0_i32 = arith.constant 0 : i32
    %c0_i32_0 = arith.constant 0 : i32
    %c0_i32_1 = arith.constant 0 : i32
    return %arg0, %c0_i32, %c0_i32_0 : i32, i32, i32
  }
  func.func @transform_6(%arg0: i32) -> (i32, i32, i32) {
    %c0_i32 = arith.constant 0 : i32
    %c0_i32_0 = arith.constant 0 : i32
    %c0_i32_1 = arith.constant 0 : i32
    return %arg0, %c0_i32, %c0_i32_0 : i32, i32, i32
  }
  func.func @transform_7(%arg0: i32) -> (i32, i32, i32) {
    %c0_i32 = arith.constant 0 : i32
    %c0_i32_0 = arith.constant 0 : i32
    %c0_i32_1 = arith.constant 0 : i32
    return %arg0, %c0_i32, %c0_i32_0 : i32, i32, i32
  }
  func.func @transform_8(%arg0: i32) -> (i32, i32, i32) {
    %c0_i32 = arith.constant 0 : i32
    %c0_i32_0 = arith.constant 0 : i32
    %c0_i32_1 = arith.constant 0 : i32
    return %arg0, %c0_i32, %c0_i32_0 : i32, i32, i32
  }
  func.func @transform_9(%arg0: i32) -> (i32, i32, i32) {
    %c0_i32 = arith.constant 0 : i32
    %c0_i32_0 = arith.constant 0 : i32
    %c0_i32_1 = arith.constant 0 : i32
    return %arg0, %c0_i32, %c0_i32_0 : i32, i32, i32
  }
  func.func @transform_10(%arg0: i32) -> (i32, i32, i32) {
    %c0_i32 = arith.constant 0 : i32
    %c0_i32_0 = arith.constant 0 : i32
    %c0_i32_1 = arith.constant 0 : i32
    return %arg0, %c0_i32, %c0_i32_0 : i32, i32, i32
  }
  func.func @transform_11(%arg0: i32) -> (i32, i32, i32) {
    %c0_i32 = arith.constant 0 : i32
    %c0_i32_0 = arith.constant 0 : i32
    %c0_i32_1 = arith.constant 0 : i32
    return %arg0, %c0_i32, %c0_i32_0 : i32, i32, i32
  }
  func.func @transform_12(%arg0: i32) -> (i32, i32, i32) {
    %c0_i32 = arith.constant 0 : i32
    %c0_i32_0 = arith.constant 0 : i32
    %c0_i32_1 = arith.constant 0 : i32
    return %arg0, %c0_i32, %c0_i32_0 : i32, i32, i32
  }
  func.func @transform_13(%arg0: i32) -> (i32, i32, i32) {
    %c0_i32 = arith.constant 0 : i32
    %c0_i32_0 = arith.constant 0 : i32
    %c0_i32_1 = arith.constant 0 : i32
    return %arg0, %c0_i32, %c0_i32_0 : i32, i32, i32
  }
  func.func @transform_14(%arg0: i32) -> (i32, i32, i32) {
    %c0_i32 = arith.constant 0 : i32
    %c0_i32_0 = arith.constant 0 : i32
    %c0_i32_1 = arith.constant 0 : i32
    return %arg0, %c0_i32, %c0_i32_0 : i32, i32, i32
  }
  func.func @transform_15(%arg0: i32) -> (i32, i32, i32) {
    %c0_i32 = arith.constant 0 : i32
    %c0_i32_0 = arith.constant 0 : i32
    %c0_i32_1 = arith.constant 0 : i32
    return %arg0, %c0_i32, %c0_i32_0 : i32, i32, i32
  }
  func.func @transform_16(%arg0: i32) -> (i32, i32, i32) {
    %c0_i32 = arith.constant 0 : i32
    %c0_i32_0 = arith.constant 0 : i32
    %c0_i32_1 = arith.constant 0 : i32
    return %arg0, %c0_i32, %c0_i32_0 : i32, i32, i32
  }
  func.func @transform_17(%arg0: i32) -> (i32, i32, i32) {
    %c0_i32 = arith.constant 0 : i32
    %c0_i32_0 = arith.constant 0 : i32
    %c0_i32_1 = arith.constant 0 : i32
    return %arg0, %c0_i32, %c0_i32_0 : i32, i32, i32
  }
  func.func @transform_18(%arg0: i32) -> (i32, i32, i32) {
    %c0_i32 = arith.constant 0 : i32
    %c0_i32_0 = arith.constant 0 : i32
    %c0_i32_1 = arith.constant 0 : i32
    %c0_i32_2 = arith.constant 0 : i32
    return %c0_i32, %c0_i32_0, %c0_i32_1 : i32, i32, i32
  }
}

</mosaic_0001>

<llo_original>
// kernel: tpu_custom_call.1
$region0: #{tpu_custom_call.1}
  #allocation0 [shape = 'u32[]', space=smem, size = 0x4, offset = 0x4, fixed_abs, tag = 'smem constant byte address 0x4 - core index']
  #allocation1 [shape = 'u32[144,128]{1,0:T(1,128)}', space=vmem, size = 0x12000, scoped, tag = 'internal scratch']
  #allocation2 [shape = 'f32[2,64,32]{2,1,0:T(8,128)}', space=vmem, size = 0x10000, scoped, tag = 'scratch operand']
  %s0 = inlined_call_operand.vmem [shape: f32[2,64,32], index: 0, kind: input, shape index: {}]
  %s1 = inlined_call_operand.vmem [shape: f32[64,32], index: 1, kind: input, shape index: {}]
  %s2 = inlined_call_operand.vmem [shape: f32[2,32,32], index: 2, kind: input, shape index: {}]
  %s3 = inlined_call_operand.vmem [shape: f32[2,1,32], index: 3, kind: input, shape index: {}]
  %s4 = inlined_call_operand.vmem [shape: f32[2,32,32], index: 4, kind: input, shape index: {}]
  %s5 = inlined_call_operand.vmem [shape: f32[2,1,32], index: 5, kind: input, shape index: {}]
  %s6 = inlined_call_operand.vmem [shape: f32[2,32,32], index: 6, kind: input, shape index: {}]
  %s7 = inlined_call_operand.vmem [shape: f32[2,1,32], index: 7, kind: input, shape index: {}]
  %s8 = inlined_call_operand.vmem [shape: f32[2,32,32], index: 8, kind: input, shape index: {}]
  %s9 = inlined_call_operand.vmem [shape: f32[2,1,32], index: 9, kind: input, shape index: {}]
  %s10 = inlined_call_operand.vmem [shape: f32[2,1,32], index: 10, kind: input, shape index: {}]
  %s11 = inlined_call_operand.vmem [shape: f32[2,1,32], index: 11, kind: input, shape index: {}]
  %s12 = inlined_call_operand.vmem [shape: f32[2,32,64], index: 12, kind: input, shape index: {}]
  %s13 = inlined_call_operand.vmem [shape: f32[2,1,64], index: 13, kind: input, shape index: {}]
  %s14 = inlined_call_operand.vmem [shape: f32[2,64,32], index: 14, kind: input, shape index: {}]
  %s15 = inlined_call_operand.vmem [shape: f32[2,1,32], index: 15, kind: input, shape index: {}]
  %s16 = inlined_call_operand.vmem [shape: f32[2,1,32], index: 16, kind: input, shape index: {}]
  %s17 = inlined_call_operand.vmem [shape: f32[2,1,32], index: 17, kind: input, shape index: {}]
  %s18 = inlined_call_operand.vmem [shape: f32[2,64,32], index: 18, kind: output, shape index: {}]
  %s19 = sld [smem:[#allocation0]]
  $region113: #{tpu_custom_call.1} parent=0
    _
  %s21 = ssub.s32 1, %s19
  %s22 = scalar_select 0, %s21, %s19
  loop: start=0, step=1, limit=4
  $region2: #{tpu_custom_call.1} parent=0 // loop_pre_header
    _
  $region3: #{tpu_custom_call.1} parent=0 // loop_header
    %s24 = sphi 0, %s28
    %p25 = scmp.ge.s32.totalorder %s24, 4
    %s32 = sphi 0, %s32
    %s34 = sphi 0, %s32
    %s35 = sphi 0, %s34
    %s49 = sphi 0, %s35
    %s53 = sphi 0, %s53
    %s55 = sphi 0, %s53
    %s56 = sphi 0, %s55
    %s70 = sphi 0, %s56
    %s76 = sphi 0, %s78
    %s79 = sphi 0, %s76
    %s80 = sphi 0, %s79
    %s96 = sphi 0, %s80
    %s102 = sphi 0, %s104
    %s105 = sphi 0, %s102
    %s106 = sphi 0, %s105
    %s122 = sphi 0, %s106
    %s128 = sphi 0, %s130
    %s131 = sphi 0, %s128
    %s132 = sphi 0, %s131
    %s148 = sphi 0, %s132
    %s154 = sphi 0, %s156
    %s157 = sphi 0, %s154
    %s158 = sphi 0, %s157
    %s174 = sphi 0, %s158
    %s180 = sphi 0, %s182
    %s183 = sphi 0, %s180
    %s184 = sphi 0, %s183
    %s200 = sphi 0, %s184
    %s206 = sphi 0, %s208
    %s209 = sphi 0, %s206
    %s210 = sphi 0, %s209
    %s226 = sphi 0, %s210
    %s232 = sphi 0, %s234
    %s235 = sphi 0, %s232
    %s236 = sphi 0, %s235
    %s252 = sphi 0, %s236
    %s258 = sphi 0, %s260
    %s261 = sphi 0, %s258
    %s262 = sphi 0, %s261
    %s278 = sphi 0, %s262
    %s284 = sphi 0, %s286
    %s287 = sphi 0, %s284
    %s288 = sphi 0, %s287
    %s304 = sphi 0, %s288
    %s310 = sphi 0, %s312
    %s313 = sphi 0, %s310
    %s314 = sphi 0, %s313
    %s330 = sphi 0, %s314
    %s336 = sphi 0, %s338
    %s339 = sphi 0, %s336
    %s340 = sphi 0, %s339
    %s356 = sphi 0, %s340
    %s362 = sphi 0, %s364
    %s365 = sphi 0, %s362
    %s366 = sphi 0, %s365
    %s382 = sphi 0, %s366
    %s388 = sphi 0, %s390
    %s391 = sphi 0, %s388
    %s392 = sphi 0, %s391
    %s408 = sphi 0, %s392
    %s414 = sphi 0, %s416
    %s417 = sphi 0, %s414
    %s418 = sphi 0, %s417
    %s434 = sphi 0, %s418
    %s440 = sphi 0, %s442
    %s443 = sphi 0, %s440
    %s444 = sphi 0, %s443
    %s460 = sphi 0, %s444
    %s466 = sphi 0, %s468
    %s469 = sphi 0, %s466
    %s470 = sphi 0, %s469
    %s486 = sphi 0, %s470
    %s490 = sphi 0, %s490
    %s492 = sphi 0, %s490
    %s493 = sphi 0, %s492
    %s507 = sphi 0, %s493
  $region4: #{tpu_custom_call.1} parent=0 // loop_header_branch
    %27 = sbr.rel (%p25) target = $region8
  $region5: #{tpu_custom_call.1} parent=0 // loop_body
    %s29 = ssub.s32 %s24, 1
    %s30 = ssub.s32 %s24, 2
    %s31 = sadd.s32 %s24, 1
    %s33 = sadd.s32 %s32, 1
    %p36 = scmp.eq.s32.totalorder %s24, 1
    %p37 = scmp.ne.s32.totalorder %s32, %s34
    %p38 = scmp.eq.s32.totalorder %s24, 0
    %p39 = por %p37, %p38
    %p40 = scmp.ne.s32.totalorder %s32, %s34
    %p41 = scmp.eq.s32.totalorder %s29, 1
    %p42 = por %p40, %p41
    %p43 = scmp.ne.s32.totalorder %s34, %s35
    %p44 = scmp.eq.s32.totalorder %s29, 0
    %p45 = por %p43, %p44
    %p46 = scmp.ne.s32.totalorder %s34, %s35
    %p47 = scmp.eq.s32.totalorder %s30, 1
    %p48 = por %p46, %p47
    %p50 = scmp.ne.s32.totalorder %s35, %s49
    %p51 = scmp.eq.s32.totalorder %s30, 0
    %p52 = por %p50, %p51
    %s54 = sadd.s32 %s53, 1
    %p57 = scmp.eq.s32.totalorder %s24, 1
    %p58 = scmp.ne.s32.totalorder %s53, %s55
    %p59 = scmp.eq.s32.totalorder %s24, 0
    %p60 = por %p58, %p59
    %p61 = scmp.ne.s32.totalorder %s53, %s55
    %p62 = scmp.eq.s32.totalorder %s29, 1
    %p63 = por %p61, %p62
    %p64 = scmp.ne.s32.totalorder %s55, %s56
    %p65 = scmp.eq.s32.totalorder %s29, 0
    %p66 = por %p64, %p65
    %p67 = scmp.ne.s32.totalorder %s55, %s56
    %p68 = scmp.eq.s32.totalorder %s30, 1
    %p69 = por %p67, %p68
    %p71 = scmp.ne.s32.totalorder %s56, %s70
    %p72 = scmp.eq.s32.totalorder %s30, 0
    %p73 = por %p71, %p72
    %s74 = ssub.s32 %s24, %s31
    %p75 = scmp.eq.s32.totalorder %s74, 0
    %s77 = sadd.s32 %s76, 1
    %s78 = scalar_select %p75, %s76, %s77
    %p81 = pneg %p75
    %p82 = scmp.eq.s32.totalorder %s24, 1
    %p83 = por %p81, %p82
    %p84 = scmp.ne.s32.totalorder %s76, %s79
    %p85 = scmp.eq.s32.totalorder %s24, 0
    %p86 = por %p84, %p85
    %p87 = scmp.ne.s32.totalorder %s76, %s79
    %p88 = scmp.eq.s32.totalorder %s29, 1
    %p89 = por %p87, %p88
    %p90 = scmp.ne.s32.totalorder %s79, %s80
    %p91 = scmp.eq.s32.totalorder %s29, 0
    %p92 = por %p90, %p91
    %p93 = scmp.ne.s32.totalorder %s79, %s80
    %p94 = scmp.eq.s32.totalorder %s30, 1
    %p95 = por %p93, %p94
    %p97 = scmp.ne.s32.totalorder %s80, %s96
    %p98 = scmp.eq.s32.totalorder %s30, 0
    %p99 = por %p97, %p98
    %s100 = ssub.s32 %s24, %s31
    %p101 = scmp.eq.s32.totalorder %s100, 0
    %s103 = sadd.s32 %s102, 1
    %s104 = scalar_select %p101, %s102, %s103
    %p107 = pneg %p101
    %p108 = scmp.eq.s32.totalorder %s24, 1
    %p109 = por %p107, %p108
    %p110 = scmp.ne.s32.totalorder %s102, %s105
    %p111 = scmp.eq.s32.totalorder %s24, 0
    %p112 = por %p110, %p111
    %p113 = scmp.ne.s32.totalorder %s102, %s105
    %p114 = scmp.eq.s32.totalorder %s29, 1
    %p115 = por %p113, %p114
    %p116 = scmp.ne.s32.totalorder %s105, %s106
    %p117 = scmp.eq.s32.totalorder %s29, 0
    %p118 = por %p116, %p117
    %p119 = scmp.ne.s32.totalorder %s105, %s106
    %p120 = scmp.eq.s32.totalorder %s30, 1
    %p121 = por %p119, %p120
    %p123 = scmp.ne.s32.totalorder %s106, %s122
    %p124 = scmp.eq.s32.totalorder %s30, 0
    %p125 = por %p123, %p124
    %s126 = ssub.s32 %s24, %s31
    %p127 = scmp.eq.s32.totalorder %s126, 0
    %s129 = sadd.s32 %s128, 1
    %s130 = scalar_select %p127, %s128, %s129
    %p133 = pneg %p127
    %p134 = scmp.eq.s32.totalorder %s24, 1
    %p135 = por %p133, %p134
    %p136 = scmp.ne.s32.totalorder %s128, %s131
    %p137 = scmp.eq.s32.totalorder %s24, 0
    %p138 = por %p136, %p137
    %p139 = scmp.ne.s32.totalorder %s128, %s131
    %p140 = scmp.eq.s32.totalorder %s29, 1
    %p141 = por %p139, %p140
    %p142 = scmp.ne.s32.totalorder %s131, %s132
    %p143 = scmp.eq.s32.totalorder %s29, 0
    %p144 = por %p142, %p143
    %p145 = scmp.ne.s32.totalorder %s131, %s132
    %p146 = scmp.eq.s32.totalorder %s30, 1
    %p147 = por %p145, %p146
    %p149 = scmp.ne.s32.totalorder %s132, %s148
    %p150 = scmp.eq.s32.totalorder %s30, 0
    %p151 = por %p149, %p150
    %s152 = ssub.s32 %s24, %s31
    %p153 = scmp.eq.s32.totalorder %s152, 0
    %s155 = sadd.s32 %s154, 1
    %s156 = scalar_select %p153, %s154, %s155
    %p159 = pneg %p153
    %p160 = scmp.eq.s32.totalorder %s24, 1
    %p161 = por %p159, %p160
    %p162 = scmp.ne.s32.totalorder %s154, %s157
    %p163 = scmp.eq.s32.totalorder %s24, 0
    %p164 = por %p162, %p163
    %p165 = scmp.ne.s32.totalorder %s154, %s157
    %p166 = scmp.eq.s32.totalorder %s29, 1
    %p167 = por %p165, %p166
    %p168 = scmp.ne.s32.totalorder %s157, %s158
    %p169 = scmp.eq.s32.totalorder %s29, 0
    %p170 = por %p168, %p169
    %p171 = scmp.ne.s32.totalorder %s157, %s158
    %p172 = scmp.eq.s32.totalorder %s30, 1
    %p173 = por %p171, %p172
    %p175 = scmp.ne.s32.totalorder %s158, %s174
    %p176 = scmp.eq.s32.totalorder %s30, 0
    %p177 = por %p175, %p176
    %s178 = ssub.s32 %s24, %s31
    %p179 = scmp.eq.s32.totalorder %s178, 0
    %s181 = sadd.s32 %s180, 1
    %s182 = scalar_select %p179, %s180, %s181
    %p185 = pneg %p179
    %p186 = scmp.eq.s32.totalorder %s24, 1
    %p187 = por %p185, %p186
    %p188 = scmp.ne.s32.totalorder %s180, %s183
    %p189 = scmp.eq.s32.totalorder %s24, 0
    %p190 = por %p188, %p189
    %p191 = scmp.ne.s32.totalorder %s180, %s183
    %p192 = scmp.eq.s32.totalorder %s29, 1
    %p193 = por %p191, %p192
    %p194 = scmp.ne.s32.totalorder %s183, %s184
    %p195 = scmp.eq.s32.totalorder %s29, 0
    %p196 = por %p194, %p195
    %p197 = scmp.ne.s32.totalorder %s183, %s184
    %p198 = scmp.eq.s32.totalorder %s30, 1
    %p199 = por %p197, %p198
    %p201 = scmp.ne.s32.totalorder %s184, %s200
    %p202 = scmp.eq.s32.totalorder %s30, 0
    %p203 = por %p201, %p202
    %s204 = ssub.s32 %s24, %s31
    %p205 = scmp.eq.s32.totalorder %s204, 0
    %s207 = sadd.s32 %s206, 1
    %s208 = scalar_select %p205, %s206, %s207
    %p211 = pneg %p205
    %p212 = scmp.eq.s32.totalorder %s24, 1
    %p213 = por %p211, %p212
    %p214 = scmp.ne.s32.totalorder %s206, %s209
    %p215 = scmp.eq.s32.totalorder %s24, 0
    %p216 = por %p214, %p215
    %p217 = scmp.ne.s32.totalorder %s206, %s209
    %p218 = scmp.eq.s32.totalorder %s29, 1
    %p219 = por %p217, %p218
    %p220 = scmp.ne.s32.totalorder %s209, %s210
    %p221 = scmp.eq.s32.totalorder %s29, 0
    %p222 = por %p220, %p221
    %p223 = scmp.ne.s32.totalorder %s209, %s210
    %p224 = scmp.eq.s32.totalorder %s30, 1
    %p225 = por %p223, %p224
    %p227 = scmp.ne.s32.totalorder %s210, %s226
    %p228 = scmp.eq.s32.totalorder %s30, 0
    %p229 = por %p227, %p228
    %s230 = ssub.s32 %s24, %s31
    %p231 = scmp.eq.s32.totalorder %s230, 0
    %s233 = sadd.s32 %s232, 1
    %s234 = scalar_select %p231, %s232, %s233
    %p237 = pneg %p231
    %p238 = scmp.eq.s32.totalorder %s24, 1
    %p239 = por %p237, %p238
    %p240 = scmp.ne.s32.totalorder %s232, %s235
    %p241 = scmp.eq.s32.totalorder %s24, 0
    %p242 = por %p240, %p241
    %p243 = scmp.ne.s32.totalorder %s232, %s235
    %p244 = scmp.eq.s32.totalorder %s29, 1
    %p245 = por %p243, %p244
    %p246 = scmp.ne.s32.totalorder %s235, %s236
    %p247 = scmp.eq.s32.totalorder %s29, 0
    %p248 = por %p246, %p247
    %p249 = scmp.ne.s32.totalorder %s235, %s236
    %p250 = scmp.eq.s32.totalorder %s30, 1
    %p251 = por %p249, %p250
    %p253 = scmp.ne.s32.totalorder %s236, %s252
    %p254 = scmp.eq.s32.totalorder %s30, 0
    %p255 = por %p253, %p254
    %s256 = ssub.s32 %s24, %s31
    %p257 = scmp.eq.s32.totalorder %s256, 0
    %s259 = sadd.s32 %s258, 1
    %s260 = scalar_select %p257, %s258, %s259
    %p263 = pneg %p257
    %p264 = scmp.eq.s32.totalorder %s24, 1
    %p265 = por %p263, %p264
    %p266 = scmp.ne.s32.totalorder %s258, %s261
    %p267 = scmp.eq.s32.totalorder %s24, 0
    %p268 = por %p266, %p267
    %p269 = scmp.ne.s32.totalorder %s258, %s261
    %p270 = scmp.eq.s32.totalorder %s29, 1
    %p271 = por %p269, %p270
    %p272 = scmp.ne.s32.totalorder %s261, %s262
    %p273 = scmp.eq.s32.totalorder %s29, 0
    %p274 = por %p272, %p273
    %p275 = scmp.ne.s32.totalorder %s261, %s262
    %p276 = scmp.eq.s32.totalorder %s30, 1
    %p277 = por %p275, %p276
    %p279 = scmp.ne.s32.totalorder %s262, %s278
    %p280 = scmp.eq.s32.totalorder %s30, 0
    %p281 = por %p279, %p280
    %s282 = ssub.s32 %s24, %s31
    %p283 = scmp.eq.s32.totalorder %s282, 0
    %s285 = sadd.s32 %s284, 1
    %s286 = scalar_select %p283, %s284, %s285
    %p289 = pneg %p283
    %p290 = scmp.eq.s32.totalorder %s24, 1
    %p291 = por %p289, %p290
    %p292 = scmp.ne.s32.totalorder %s284, %s287
    %p293 = scmp.eq.s32.totalorder %s24, 0
    %p294 = por %p292, %p293
    %p295 = scmp.ne.s32.totalorder %s284, %s287
    %p296 = scmp.eq.s32.totalorder %s29, 1
    %p297 = por %p295, %p296
    %p298 = scmp.ne.s32.totalorder %s287, %s288
    %p299 = scmp.eq.s32.totalorder %s29, 0
    %p300 = por %p298, %p299
    %p301 = scmp.ne.s32.totalorder %s287, %s288
    %p302 = scmp.eq.s32.totalorder %s30, 1
    %p303 = por %p301, %p302
    %p305 = scmp.ne.s32.totalorder %s288, %s304
    %p306 = scmp.eq.s32.totalorder %s30, 0
    %p307 = por %p305, %p306
    %s308 = ssub.s32 %s24, %s31
    %p309 = scmp.eq.s32.totalorder %s308, 0
    %s311 = sadd.s32 %s310, 1
    %s312 = scalar_select %p309, %s310, %s311
    %p315 = pneg %p309
    %p316 = scmp.eq.s32.totalorder %s24, 1
    %p317 = por %p315, %p316
    %p318 = scmp.ne.s32.totalorder %s310, %s313
    %p319 = scmp.eq.s32.totalorder %s24, 0
    %p320 = por %p318, %p319
    %p321 = scmp.ne.s32.totalorder %s310, %s313
    %p322 = scmp.eq.s32.totalorder %s29, 1
    %p323 = por %p321, %p322
    %p324 = scmp.ne.s32.totalorder %s313, %s314
    %p325 = scmp.eq.s32.totalorder %s29, 0
    %p326 = por %p324, %p325
    %p327 = scmp.ne.s32.totalorder %s313, %s314
    %p328 = scmp.eq.s32.totalorder %s30, 1
    %p329 = por %p327, %p328
    %p331 = scmp.ne.s32.totalorder %s314, %s330
    %p332 = scmp.eq.s32.totalorder %s30, 0
    %p333 = por %p331, %p332
    %s334 = ssub.s32 %s24, %s31
    %p335 = scmp.eq.s32.totalorder %s334, 0
    %s337 = sadd.s32 %s336, 1
    %s338 = scalar_select %p335, %s336, %s337
    %p341 = pneg %p335
    %p342 = scmp.eq.s32.totalorder %s24, 1
    %p343 = por %p341, %p342
    %p344 = scmp.ne.s32.totalorder %s336, %s339
    %p345 = scmp.eq.s32.totalorder %s24, 0
    %p346 = por %p344, %p345
    %p347 = scmp.ne.s32.totalorder %s336, %s339
    %p348 = scmp.eq.s32.totalorder %s29, 1
    %p349 = por %p347, %p348
    %p350 = scmp.ne.s32.totalorder %s339, %s340
    %p351 = scmp.eq.s32.totalorder %s29, 0
    %p352 = por %p350, %p351
    %p353 = scmp.ne.s32.totalorder %s339, %s340
    %p354 = scmp.eq.s32.totalorder %s30, 1
    %p355 = por %p353, %p354
    %p357 = scmp.ne.s32.totalorder %s340, %s356
    %p358 = scmp.eq.s32.totalorder %s30, 0
    %p359 = por %p357, %p358
    %s360 = ssub.s32 %s24, %s31
    %p361 = scmp.eq.s32.totalorder %s360, 0
    %s363 = sadd.s32 %s362, 1
    %s364 = scalar_select %p361, %s362, %s363
    %p367 = pneg %p361
    %p368 = scmp.eq.s32.totalorder %s24, 1
    %p369 = por %p367, %p368
    %p370 = scmp.ne.s32.totalorder %s362, %s365
    %p371 = scmp.eq.s32.totalorder %s24, 0
    %p372 = por %p370, %p371
    %p373 = scmp.ne.s32.totalorder %s362, %s365
    %p374 = scmp.eq.s32.totalorder %s29, 1
    %p375 = por %p373, %p374
    %p376 = scmp.ne.s32.totalorder %s365, %s366
    %p377 = scmp.eq.s32.totalorder %s29, 0
    %p378 = por %p376, %p377
    %p379 = scmp.ne.s32.totalorder %s365, %s366
    %p380 = scmp.eq.s32.totalorder %s30, 1
    %p381 = por %p379, %p380
    %p383 = scmp.ne.s32.totalorder %s366, %s382
    %p384 = scmp.eq.s32.totalorder %s30, 0
    %p385 = por %p383, %p384
    %s386 = ssub.s32 %s24, %s31
    %p387 = scmp.eq.s32.totalorder %s386, 0
    %s389 = sadd.s32 %s388, 1
    %s390 = scalar_select %p387, %s388, %s389
    %p393 = pneg %p387
    %p394 = scmp.eq.s32.totalorder %s24, 1
    %p395 = por %p393, %p394
    %p396 = scmp.ne.s32.totalorder %s388, %s391
    %p397 = scmp.eq.s32.totalorder %s24, 0
    %p398 = por %p396, %p397
    %p399 = scmp.ne.s32.totalorder %s388, %s391
    %p400 = scmp.eq.s32.totalorder %s29, 1
    %p401 = por %p399, %p400
    %p402 = scmp.ne.s32.totalorder %s391, %s392
    %p403 = scmp.eq.s32.totalorder %s29, 0
    %p404 = por %p402, %p403
    %p405 = scmp.ne.s32.totalorder %s391, %s392
    %p406 = scmp.eq.s32.totalorder %s30, 1
    %p407 = por %p405, %p406
    %p409 = scmp.ne.s32.totalorder %s392, %s408
    %p410 = scmp.eq.s32.totalorder %s30, 0
    %p411 = por %p409, %p410
    %s412 = ssub.s32 %s24, %s31
    %p413 = scmp.eq.s32.totalorder %s412, 0
    %s415 = sadd.s32 %s414, 1
    %s416 = scalar_select %p413, %s414, %s415
    %p419 = pneg %p413
    %p420 = scmp.eq.s32.totalorder %s24, 1
    %p421 = por %p419, %p420
    %p422 = scmp.ne.s32.totalorder %s414, %s417
    %p423 = scmp.eq.s32.totalorder %s24, 0
    %p424 = por %p422, %p423
    %p425 = scmp.ne.s32.totalorder %s414, %s417
    %p426 = scmp.eq.s32.totalorder %s29, 1
    %p427 = por %p425, %p426
    %p428 = scmp.ne.s32.totalorder %s417, %s418
    %p429 = scmp.eq.s32.totalorder %s29, 0
    %p430 = por %p428, %p429
    %p431 = scmp.ne.s32.totalorder %s417, %s418
    %p432 = scmp.eq.s32.totalorder %s30, 1
    %p433 = por %p431, %p432
    %p435 = scmp.ne.s32.totalorder %s418, %s434
    %p436 = scmp.eq.s32.totalorder %s30, 0
    %p437 = por %p435, %p436
    %s438 = ssub.s32 %s24, %s31
    %p439 = scmp.eq.s32.totalorder %s438, 0
    %s441 = sadd.s32 %s440, 1
    %s442 = scalar_select %p439, %s440, %s441
    %p445 = pneg %p439
    %p446 = scmp.eq.s32.totalorder %s24, 1
    %p447 = por %p445, %p446
    %p448 = scmp.ne.s32.totalorder %s440, %s443
    %p449 = scmp.eq.s32.totalorder %s24, 0
    %p450 = por %p448, %p449
    %p451 = scmp.ne.s32.totalorder %s440, %s443
    %p452 = scmp.eq.s32.totalorder %s29, 1
    %p453 = por %p451, %p452
    %p454 = scmp.ne.s32.totalorder %s443, %s444
    %p455 = scmp.eq.s32.totalorder %s29, 0
    %p456 = por %p454, %p455
    %p457 = scmp.ne.s32.totalorder %s443, %s444
    %p458 = scmp.eq.s32.totalorder %s30, 1
    %p459 = por %p457, %p458
    %p461 = scmp.ne.s32.totalorder %s444, %s460
    %p462 = scmp.eq.s32.totalorder %s30, 0
    %p463 = por %p461, %p462
    %s464 = ssub.s32 %s24, %s31
    %p465 = scmp.eq.s32.totalorder %s464, 0
    %s467 = sadd.s32 %s466, 1
    %s468 = scalar_select %p465, %s466, %s467
    %p471 = pneg %p465
    %p472 = scmp.eq.s32.totalorder %s24, 1
    %p473 = por %p471, %p472
    %p474 = scmp.ne.s32.totalorder %s466, %s469
    %p475 = scmp.eq.s32.totalorder %s24, 0
    %p476 = por %p474, %p475
    %p477 = scmp.ne.s32.totalorder %s466, %s469
    %p478 = scmp.eq.s32.totalorder %s29, 1
    %p479 = por %p477, %p478
    %p480 = scmp.ne.s32.totalorder %s469, %s470
    %p481 = scmp.eq.s32.totalorder %s29, 0
    %p482 = por %p480, %p481
    %p483 = scmp.ne.s32.totalorder %s469, %s470
    %p484 = scmp.eq.s32.totalorder %s30, 1
    %p485 = por %p483, %p484
    %p487 = scmp.ne.s32.totalorder %s470, %s486
    %p488 = scmp.eq.s32.totalorder %s30, 0
    %p489 = por %p487, %p488
    %s491 = sadd.s32 %s490, 1
    %p494 = scmp.eq.s32.totalorder %s24, 1
    %p495 = scmp.ne.s32.totalorder %s490, %s492
    %p496 = scmp.eq.s32.totalorder %s24, 0
    %p497 = por %p495, %p496
    %p498 = scmp.ne.s32.totalorder %s490, %s492
    %p499 = scmp.eq.s32.totalorder %s29, 1
    %p500 = por %p498, %p499
    %p501 = scmp.ne.s32.totalorder %s492, %s493
    %p502 = scmp.eq.s32.totalorder %s29, 0
    %p503 = por %p501, %p502
    %p504 = scmp.ne.s32.totalorder %s492, %s493
    %p505 = scmp.eq.s32.totalorder %s30, 1
    %p506 = por %p504, %p505
    %p508 = scmp.ne.s32.totalorder %s493, %s507
    %p509 = scmp.eq.s32.totalorder %s30, 0
    %p510 = por %p508, %p509
    %p511 = scmp.le.s32.totalorder 1, %s24
    %p512 = scmp.lt.s32.totalorder %s24, 3
    %p513 = pnand %p511, %p512
    %p514 = pneg %p513
    // Predicated region
    $region9: #{tpu_custom_call.1} parent=5 // pred_check
      _
    $region10: #{tpu_custom_call.1} parent=5 // pred_check_branch
      %516 = sbr.rel (%p513) target = $region12
    $region11: #{tpu_custom_call.1} parent=5 // pred_region
      %s517 = ssub.s32 %s24, 1
      // Predicated region
      $region13: #{tpu_custom_call.1} parent=11 // pred_check
        %p518 = pneg %p45
      $region14: #{tpu_custom_call.1} parent=11 // pred_check_branch
        %520 = sbr.rel (%p518) target = $region16
      $region15: #{tpu_custom_call.1} parent=11 // pred_region
        _
      $region16: #{tpu_custom_call.1} parent=11 // pred_fallthru
        _
      // Predicated region
      $region17: #{tpu_custom_call.1} parent=11 // pred_check
        %p521 = pneg %p66
      $region18: #{tpu_custom_call.1} parent=11 // pred_check_branch
        %523 = sbr.rel (%p521) target = $region20
      $region19: #{tpu_custom_call.1} parent=11 // pred_region
        _
      $region20: #{tpu_custom_call.1} parent=11 // pred_fallthru
        _
    $region12: #{tpu_custom_call.1} parent=5 // pred_fallthru
      _
    %p524 = scmp.lt.s32.totalorder %s24, 2
    // Predicated region
    $region21: #{tpu_custom_call.1} parent=5 // pred_check
      %p525 = pneg %p524
    $region22: #{tpu_custom_call.1} parent=5 // pred_check_branch
      %527 = sbr.rel (%p525) target = $region24
    $region23: #{tpu_custom_call.1} parent=5 // pred_region
      // Predicated region
      $region25: #{tpu_custom_call.1} parent=23 // pred_check
        %p528 = pneg %p86
      $region26: #{tpu_custom_call.1} parent=23 // pred_check_branch
        %530 = sbr.rel (%p528) target = $region28
      $region27: #{tpu_custom_call.1} parent=23 // pred_region
        %p531 = scmp.lt.s32.totalorder %s24, 1
        %s532 = scalar_select %p531, %s24, 1
        %s533 = smul.addr %s532, 4
        %s534 = smul.addr %s533, 8
        %s535 = scalar_lea.vmem %s2, %s534
      $region28: #{tpu_custom_call.1} parent=23 // pred_fallthru
        _
      // Predicated region
      $region29: #{tpu_custom_call.1} parent=23 // pred_check
        %p536 = pneg %p112
      $region30: #{tpu_custom_call.1} parent=23 // pred_check_branch
        %538 = sbr.rel (%p536) target = $region32
      $region31: #{tpu_custom_call.1} parent=23 // pred_region
        %p539 = scmp.lt.s32.totalorder %s24, 1
        %s540 = scalar_select %p539, %s24, 1
        %s541 = scalar_lea.vmem %s3, %s540
      $region32: #{tpu_custom_call.1} parent=23 // pred_fallthru
        _
      // Predicated region
      $region33: #{tpu_custom_call.1} parent=23 // pred_check
        %p542 = pneg %p138
      $region34: #{tpu_custom_call.1} parent=23 // pred_check_branch
        %544 = sbr.rel (%p542) target = $region36
      $region35: #{tpu_custom_call.1} parent=23 // pred_region
        %p545 = scmp.lt.s32.totalorder %s24, 1
        %s546 = scalar_select %p545, %s24, 1
        %s547 = smul.addr %s546, 4
        %s548 = smul.addr %s547, 8
        %s549 = scalar_lea.vmem %s4, %s548
      $region36: #{tpu_custom_call.1} parent=23 // pred_fallthru
        _
      // Predicated region
      $region37: #{tpu_custom_call.1} parent=23 // pred_check
        %p550 = pneg %p164
      $region38: #{tpu_custom_call.1} parent=23 // pred_check_branch
        %552 = sbr.rel (%p550) target = $region40
      $region39: #{tpu_custom_call.1} parent=23 // pred_region
        %p553 = scmp.lt.s32.totalorder %s24, 1
        %s554 = scalar_select %p553, %s24, 1
        %s555 = scalar_lea.vmem %s5, %s554
      $region40: #{tpu_custom_call.1} parent=23 // pred_fallthru
        _
      // Predicated region
      $region41: #{tpu_custom_call.1} parent=23 // pred_check
        %p556 = pneg %p190
      $region42: #{tpu_custom_call.1} parent=23 // pred_check_branch
        %558 = sbr.rel (%p556) target = $region44
      $region43: #{tpu_custom_call.1} parent=23 // pred_region
        %p559 = scmp.lt.s32.totalorder %s24, 1
        %s560 = scalar_select %p559, %s24, 1
        %s561 = smul.addr %s560, 4
        %s562 = smul.addr %s561, 8
        %s563 = scalar_lea.vmem %s6, %s562
      $region44: #{tpu_custom_call.1} parent=23 // pred_fallthru
        _
      // Predicated region
      $region45: #{tpu_custom_call.1} parent=23 // pred_check
        %p564 = pneg %p216
      $region46: #{tpu_custom_call.1} parent=23 // pred_check_branch
        %566 = sbr.rel (%p564) target = $region48
      $region47: #{tpu_custom_call.1} parent=23 // pred_region
        %p567 = scmp.lt.s32.totalorder %s24, 1
        %s568 = scalar_select %p567, %s24, 1
        %s569 = scalar_lea.vmem %s7, %s568
      $region48: #{tpu_custom_call.1} parent=23 // pred_fallthru
        _
      // Predicated region
      $region49: #{tpu_custom_call.1} parent=23 // pred_check
        %p570 = pneg %p242
      $region50: #{tpu_custom_call.1} parent=23 // pred_check_branch
        %572 = sbr.rel (%p570) target = $region52
      $region51: #{tpu_custom_call.1} parent=23 // pred_region
        %p573 = scmp.lt.s32.totalorder %s24, 1
        %s574 = scalar_select %p573, %s24, 1
        %s575 = smul.addr %s574, 4
        %s576 = smul.addr %s575, 8
        %s577 = scalar_lea.vmem %s8, %s576
      $region52: #{tpu_custom_call.1} parent=23 // pred_fallthru
        _
      // Predicated region
      $region53: #{tpu_custom_call.1} parent=23 // pred_check
        %p578 = pneg %p268
      $region54: #{tpu_custom_call.1} parent=23 // pred_check_branch
        %580 = sbr.rel (%p578) target = $region56
      $region55: #{tpu_custom_call.1} parent=23 // pred_region
        %p581 = scmp.lt.s32.totalorder %s24, 1
        %s582 = scalar_select %p581, %s24, 1
        %s583 = scalar_lea.vmem %s9, %s582
      $region56: #{tpu_custom_call.1} parent=23 // pred_fallthru
        _
      // Predicated region
      $region57: #{tpu_custom_call.1} parent=23 // pred_check
        %p584 = pneg %p294
      $region58: #{tpu_custom_call.1} parent=23 // pred_check_branch
        %586 = sbr.rel (%p584) target = $region60
      $region59: #{tpu_custom_call.1} parent=23 // pred_region
        %p587 = scmp.lt.s32.totalorder %s24, 1
        %s588 = scalar_select %p587, %s24, 1
        %s589 = scalar_lea.vmem %s10, %s588
      $region60: #{tpu_custom_call.1} parent=23 // pred_fallthru
        _
      // Predicated region
      $region61: #{tpu_custom_call.1} parent=23 // pred_check
        %p590 = pneg %p320
      $region62: #{tpu_custom_call.1} parent=23 // pred_check_branch
        %592 = sbr.rel (%p590) target = $region64
      $region63: #{tpu_custom_call.1} parent=23 // pred_region
        %p593 = scmp.lt.s32.totalorder %s24, 1
        %s594 = scalar_select %p593, %s24, 1
        %s595 = scalar_lea.vmem %s11, %s594
      $region64: #{tpu_custom_call.1} parent=23 // pred_fallthru
        _
      // Predicated region
      $region65: #{tpu_custom_call.1} parent=23 // pred_check
        %p596 = pneg %p346
      $region66: #{tpu_custom_call.1} parent=23 // pred_check_branch
        %598 = sbr.rel (%p596) target = $region68
      $region67: #{tpu_custom_call.1} parent=23 // pred_region
        %p599 = scmp.lt.s32.totalorder %s24, 1
        %s600 = scalar_select %p599, %s24, 1
        %s601 = smul.addr %s600, 4
        %s602 = smul.addr %s601, 8
        %s603 = scalar_lea.vmem %s12, %s602
      $region68: #{tpu_custom_call.1} parent=23 // pred_fallthru
        _
      // Predicated region
      $region69: #{tpu_custom_call.1} parent=23 // pred_check
        %p604 = pneg %p372
      $region70: #{tpu_custom_call.1} parent=23 // pred_check_branch
        %606 = sbr.rel (%p604) target = $region72
      $region71: #{tpu_custom_call.1} parent=23 // pred_region
        %p607 = scmp.lt.s32.totalorder %s24, 1
        %s608 = scalar_select %p607, %s24, 1
        %s609 = scalar_lea.vmem %s13, %s608
      $region72: #{tpu_custom_call.1} parent=23 // pred_fallthru
        _
      // Predicated region
      $region73: #{tpu_custom_call.1} parent=23 // pred_check
        %p610 = pneg %p398
      $region74: #{tpu_custom_call.1} parent=23 // pred_check_branch
        %612 = sbr.rel (%p610) target = $region76
      $region75: #{tpu_custom_call.1} parent=23 // pred_region
        %p613 = scmp.lt.s32.totalorder %s24, 1
        %s614 = scalar_select %p613, %s24, 1
        %s615 = smul.addr %s614, 8
        %s616 = smul.addr %s615, 8
        %s617 = scalar_lea.vmem %s14, %s616
      $region76: #{tpu_custom_call.1} parent=23 // pred_fallthru
        _
      // Predicated region
      $region77: #{tpu_custom_call.1} parent=23 // pred_check
        %p618 = pneg %p424
      $region78: #{tpu_custom_call.1} parent=23 // pred_check_branch
        %620 = sbr.rel (%p618) target = $region80
      $region79: #{tpu_custom_call.1} parent=23 // pred_region
        %p621 = scmp.lt.s32.totalorder %s24, 1
        %s622 = scalar_select %p621, %s24, 1
        %s623 = scalar_lea.vmem %s15, %s622
      $region80: #{tpu_custom_call.1} parent=23 // pred_fallthru
        _
      // Predicated region
      $region81: #{tpu_custom_call.1} parent=23 // pred_check
        %p624 = pneg %p450
      $region82: #{tpu_custom_call.1} parent=23 // pred_check_branch
        %626 = sbr.rel (%p624) target = $region84
      $region83: #{tpu_custom_call.1} parent=23 // pred_region
        %p627 = scmp.lt.s32.totalorder %s24, 1
        %s628 = scalar_select %p627, %s24, 1
        %s629 = scalar_lea.vmem %s16, %s628
      $region84: #{tpu_custom_call.1} parent=23 // pred_fallthru
        _
      // Predicated region
      $region85: #{tpu_custom_call.1} parent=23 // pred_check
        %p630 = pneg %p476
      $region86: #{tpu_custom_call.1} parent=23 // pred_check_branch
        %632 = sbr.rel (%p630) target = $region88
      $region87: #{tpu_custom_call.1} parent=23 // pred_region
        %p633 = scmp.lt.s32.totalorder %s24, 1
        %s634 = scalar_select %p633, %s24, 1
        %s635 = scalar_lea.vmem %s17, %s634
      $region88: #{tpu_custom_call.1} parent=23 // pred_fallthru
        _
    $region24: #{tpu_custom_call.1} parent=5 // pred_fallthru
      _
    %p636 = scmp.le.s32.totalorder 1, %s24
    %p637 = scmp.lt.s32.totalorder %s24, 3
    %p638 = pnand %p636, %p637
    %p639 = pneg %p638
    // Predicated region
    $region89: #{tpu_custom_call.1} parent=5 // pred_check
      _
    $region90: #{tpu_custom_call.1} parent=5 // pred_check_branch
      %641 = sbr.rel (%p638) target = $region92
    $region91: #{tpu_custom_call.1} parent=5 // pred_region
      %s642 = ssub.s32 %s24, 1
      %p643 = pneg %p45
      %p644 = pneg %p42
      %p645 = pneg %p66
      %p646 = pneg %p63
      %p647 = scmp.lt.s32.totalorder %s29, 1
      %s648 = scalar_select %p647, %s29, 1
      %s649 = smul.addr %s648, 4
      %s650 = smul.addr %s649, 8
      %s651 = scalar_lea.vmem %s2, %s650
      %p652 = pneg %p92
      %p653 = pneg %p89
      %p654 = scmp.lt.s32.totalorder %s29, 1
      %s655 = scalar_select %p654, %s29, 1
      %s656 = scalar_lea.vmem %s3, %s655
      %p657 = pneg %p118
      %p658 = pneg %p115
      %p659 = scmp.lt.s32.totalorder %s29, 1
      %s660 = scalar_select %p659, %s29, 1
      %s661 = smul.addr %s660, 4
      %s662 = smul.addr %s661, 8
      %s663 = scalar_lea.vmem %s4, %s662
      %p664 = pneg %p144
      %p665 = pneg %p141
      %p666 = scmp.lt.s32.totalorder %s29, 1
      %s667 = scalar_select %p666, %s29, 1
      %s668 = scalar_lea.vmem %s5, %s667
      %p669 = pneg %p170
      %p670 = pneg %p167
      %p671 = scmp.lt.s32.totalorder %s29, 1
      %s672 = scalar_select %p671, %s29, 1
      %s673 = smul.addr %s672, 4
      %s674 = smul.addr %s673, 8
      %s675 = scalar_lea.vmem %s6, %s674
      %p676 = pneg %p196
      %p677 = pneg %p193
      %p678 = scmp.lt.s32.totalorder %s29, 1
      %s679 = scalar_select %p678, %s29, 1
      %s680 = scalar_lea.vmem %s7, %s679
      %p681 = pneg %p222
      %p682 = pneg %p219
      %p683 = scmp.lt.s32.totalorder %s29, 1
      %s684 = scalar_select %p683, %s29, 1
      %s685 = smul.addr %s684, 4
      %s686 = smul.addr %s685, 8
      %s687 = scalar_lea.vmem %s8, %s686
      %p688 = pneg %p248
      %p689 = pneg %p245
      %p690 = scmp.lt.s32.totalorder %s29, 1
      %s691 = scalar_select %p690, %s29, 1
      %s692 = scalar_lea.vmem %s9, %s691
      %p693 = pneg %p274
      %p694 = pneg %p271
      %p695 = scmp.lt.s32.totalorder %s29, 1
      %s696 = scalar_select %p695, %s29, 1
      %s697 = scalar_lea.vmem %s10, %s696
      %p698 = pneg %p300
      %p699 = pneg %p297
      %p700 = scmp.lt.s32.totalorder %s29, 1
      %s701 = scalar_select %p700, %s29, 1
      %s702 = scalar_lea.vmem %s11, %s701
      %p703 = pneg %p326
      %p704 = pneg %p323
      %p705 = scmp.lt.s32.totalorder %s29, 1
      %s706 = scalar_select %p705, %s29, 1
      %s707 = smul.addr %s706, 4
      %s708 = smul.addr %s707, 8
      %s709 = scalar_lea.vmem %s12, %s708
      %p710 = pneg %p352
      %p711 = pneg %p349
      %p712 = scmp.lt.s32.totalorder %s29, 1
      %s713 = scalar_select %p712, %s29, 1
      %s714 = scalar_lea.vmem %s13, %s713
      %p715 = pneg %p378
      %p716 = pneg %p375
      %p717 = scmp.lt.s32.totalorder %s29, 1
      %s718 = scalar_select %p717, %s29, 1
      %s719 = smul.addr %s718, 8
      %s720 = smul.addr %s719, 8
      %s721 = scalar_lea.vmem %s14, %s720
      %p722 = pneg %p404
      %p723 = pneg %p401
      %p724 = scmp.lt.s32.totalorder %s29, 1
      %s725 = scalar_select %p724, %s29, 1
      %s726 = scalar_lea.vmem %s15, %s725
      %p727 = pneg %p430
      %p728 = pneg %p427
      %p729 = scmp.lt.s32.totalorder %s29, 1
      %s730 = scalar_select %p729, %s29, 1
      %s731 = scalar_lea.vmem %s16, %s730
      %p732 = pneg %p456
      %p733 = pneg %p453
      %p734 = scmp.lt.s32.totalorder %s29, 1
      %s735 = scalar_select %p734, %s29, 1
      %s736 = scalar_lea.vmem %s17, %s735
      %p737 = pneg %p482
      %p738 = pneg %p479
      %p739 = pneg %p503
      %p740 = pneg %p500
      %p741 = scmp.lt.s32.totalorder %s29, 1
      %s742 = scalar_select %p741, %s29, 1
      %s743 = smul.addr %s742, 4
      %s744 = smul.addr %s743, 8
      %s745 = scalar_lea.vmem %s2, %s744
      %p746 = scmp.lt.s32.totalorder %s29, 1
      %s747 = scalar_select %p746, %s29, 1
      %s748 = scalar_lea.vmem %s3, %s747
      %p749 = scmp.lt.s32.totalorder %s29, 1
      %s750 = scalar_select %p749, %s29, 1
      %s751 = smul.addr %s750, 4
      %s752 = smul.addr %s751, 8
      %s753 = scalar_lea.vmem %s4, %s752
      %p754 = scmp.lt.s32.totalorder %s29, 1
      %s755 = scalar_select %p754, %s29, 1
      %s756 = scalar_lea.vmem %s5, %s755
      %p757 = scmp.lt.s32.totalorder %s29, 1
      %s758 = scalar_select %p757, %s29, 1
      %s759 = smul.addr %s758, 4
      %s760 = smul.addr %s759, 8
      %s761 = scalar_lea.vmem %s6, %s760
      %p762 = scmp.lt.s32.totalorder %s29, 1
      %s763 = scalar_select %p762, %s29, 1
      %s764 = scalar_lea.vmem %s7, %s763
      %p765 = scmp.lt.s32.totalorder %s29, 1
      %s766 = scalar_select %p765, %s29, 1
      %s767 = smul.addr %s766, 4
      %s768 = smul.addr %s767, 8
      %s769 = scalar_lea.vmem %s8, %s768
      %p770 = scmp.lt.s32.totalorder %s29, 1
      %s771 = scalar_select %p770, %s29, 1
      %s772 = scalar_lea.vmem %s9, %s771
      %p773 = scmp.lt.s32.totalorder %s29, 1
      %s774 = scalar_select %p773, %s29, 1
      %s775 = scalar_lea.vmem %s10, %s774
      %p776 = scmp.lt.s32.totalorder %s29, 1
      %s777 = scalar_select %p776, %s29, 1
      %s778 = scalar_lea.vmem %s11, %s777
      %p779 = scmp.lt.s32.totalorder %s29, 1
      %s780 = scalar_select %p779, %s29, 1
      %s781 = smul.addr %s780, 4
      %s782 = smul.addr %s781, 8
      %s783 = scalar_lea.vmem %s12, %s782
      %p784 = scmp.lt.s32.totalorder %s29, 1
      %s785 = scalar_select %p784, %s29, 1
      %s786 = scalar_lea.vmem %s13, %s785
      %p787 = scmp.lt.s32.totalorder %s29, 1
      %s788 = scalar_select %p787, %s29, 1
      %s789 = smul.addr %s788, 8
      %s790 = smul.addr %s789, 8
      %s791 = scalar_lea.vmem %s14, %s790
      %p792 = scmp.lt.s32.totalorder %s29, 1
      %s793 = scalar_select %p792, %s29, 1
      %s794 = scalar_lea.vmem %s15, %s793
      %p795 = scmp.lt.s32.totalorder %s29, 1
      %s796 = scalar_select %p795, %s29, 1
      %s797 = scalar_lea.vmem %s16, %s796
      %p798 = scmp.lt.s32.totalorder %s29, 1
      %s799 = scalar_select %p798, %s29, 1
      %s800 = scalar_lea.vmem %s17, %s799
      %p801 = scmp.eq.s32.totalorder %s29, 0
      // Predicated region
      $region93: #{tpu_custom_call.1} parent=91 // pred_check
        %p802 = pneg %p801
      $region94: #{tpu_custom_call.1} parent=91 // pred_check_branch
        %804 = sbr.rel (%p802) target = $region96
      $region95: #{tpu_custom_call.1} parent=91 // pred_region
        %v805 = vld [vmem:[%s0] sm:$0xff]
        %v806 = vld [vmem:[%s0 + $0x8] sm:$0xff]
        %v807 = vld [vmem:[%s0 + $0x10] sm:$0xff]
        %v808 = vld [vmem:[%s0 + $0x18] sm:$0xff]
        %v809 = vld [vmem:[%s0 + $0x20] sm:$0xff]
        %v810 = vld [vmem:[%s0 + $0x28] sm:$0xff]
        %v811 = vld [vmem:[%s0 + $0x30] sm:$0xff]
        %v812 = vld [vmem:[%s0 + $0x38] sm:$0xff]
        %v813 = vld [vmem:[%s0 + $0x40] sm:$0xff]
        %v814 = vld [vmem:[%s0 + $0x48] sm:$0xff]
        %v815 = vld [vmem:[%s0 + $0x50] sm:$0xff]
        %v816 = vld [vmem:[%s0 + $0x58] sm:$0xff]
        %v817 = vld [vmem:[%s0 + $0x60] sm:$0xff]
        %v818 = vld [vmem:[%s0 + $0x68] sm:$0xff]
        %v819 = vld [vmem:[%s0 + $0x70] sm:$0xff]
        %v820 = vld [vmem:[%s0 + $0x78] sm:$0xff]
        %vm821 = vcmask 261120
        %822 = vst.msk [vmem:[#allocation2] sm:$0xff] %vm821, %v805
        %823 = vst.msk [vmem:[#allocation2 + $0x8] sm:$0xff] %vm821, %v806
        %824 = vst.msk [vmem:[#allocation2 + $0x10] sm:$0xff] %vm821, %v807
        %825 = vst.msk [vmem:[#allocation2 + $0x18] sm:$0xff] %vm821, %v808
        %826 = vst.msk [vmem:[#allocation2 + $0x20] sm:$0xff] %vm821, %v809
        %827 = vst.msk [vmem:[#allocation2 + $0x28] sm:$0xff] %vm821, %v810
        %828 = vst.msk [vmem:[#allocation2 + $0x30] sm:$0xff] %vm821, %v811
        %829 = vst.msk [vmem:[#allocation2 + $0x38] sm:$0xff] %vm821, %v812
        %830 = vst.msk [vmem:[#allocation2 + $0x40] sm:$0xff] %vm821, %v813
        %831 = vst.msk [vmem:[#allocation2 + $0x48] sm:$0xff] %vm821, %v814
        %832 = vst.msk [vmem:[#allocation2 + $0x50] sm:$0xff] %vm821, %v815
        %833 = vst.msk [vmem:[#allocation2 + $0x58] sm:$0xff] %vm821, %v816
        %834 = vst.msk [vmem:[#allocation2 + $0x60] sm:$0xff] %vm821, %v817
        %835 = vst.msk [vmem:[#allocation2 + $0x68] sm:$0xff] %vm821, %v818
        %836 = vst.msk [vmem:[#allocation2 + $0x70] sm:$0xff] %vm821, %v819
        %837 = vst.msk [vmem:[#allocation2 + $0x78] sm:$0xff] %vm821, %v820
      $region96: #{tpu_custom_call.1} parent=91 // pred_fallthru
        _
      %v838 = vld [vmem:[#allocation2] sm:$0xff]
      %v839 = vld [vmem:[#allocation2 + $0x8] sm:$0xff]
      %v840 = vld [vmem:[#allocation2 + $0x10] sm:$0xff]
      %v841 = vld [vmem:[#allocation2 + $0x18] sm:$0xff]
      %v842 = vld [vmem:[#allocation2 + $0x20] sm:$0xff]
      %v843 = vld [vmem:[#allocation2 + $0x28] sm:$0xff]
      %v844 = vld [vmem:[#allocation2 + $0x30] sm:$0xff]
      %v845 = vld [vmem:[#allocation2 + $0x38] sm:$0xff]
      %v846 = vld [vmem:[#allocation2 + $0x40] sm:$0xff]
      %v847 = vld [vmem:[#allocation2 + $0x48] sm:$0xff]
      %v848 = vld [vmem:[#allocation2 + $0x50] sm:$0xff]
      %v849 = vld [vmem:[#allocation2 + $0x58] sm:$0xff]
      %v850 = vld [vmem:[#allocation2 + $0x60] sm:$0xff]
      %v851 = vld [vmem:[#allocation2 + $0x68] sm:$0xff]
      %v852 = vld [vmem:[#allocation2 + $0x70] sm:$0xff]
      %v853 = vld [vmem:[#allocation2 + $0x78] sm:$0xff]
      %v854 = vld [vmem:[%s1] sm:$0xff]
      %v855 = vld [vmem:[%s1 + $0x8] sm:$0xff]
      %v856 = vld [vmem:[%s1 + $0x10] sm:$0xff]
      %v857 = vld [vmem:[%s1 + $0x18] sm:$0xff]
      %v858 = vld [vmem:[%s1 + $0x20] sm:$0xff]
      %v859 = vld [vmem:[%s1 + $0x28] sm:$0xff]
      %v860 = vld [vmem:[%s1 + $0x30] sm:$0xff]
      %v861 = vld [vmem:[%s1 + $0x38] sm:$0xff]
      %v862 = vadd.f32 %v838, %v854
      %v863 = vadd.f32 %v839, %v855
      %v864 = vadd.f32 %v840, %v856
      %v865 = vadd.f32 %v841, %v857
      %v866 = vadd.f32 %v842, %v858
      %v867 = vadd.f32 %v843, %v859
      %v868 = vadd.f32 %v844, %v860
      %v869 = vadd.f32 %v845, %v861
      %v870 = vadd.f32 %v846, %v854
      %v871 = vadd.f32 %v847, %v855
      %v872 = vadd.f32 %v848, %v856
      %v873 = vadd.f32 %v849, %v857
      %v874 = vadd.f32 %v850, %v858
      %v875 = vadd.f32 %v851, %v859
      %v876 = vadd.f32 %v852, %v860
      %v877 = vadd.f32 %v853, %v861
      %v878 = vld [vmem:[%s745] sm:$0xff]
      %v879 = vld [vmem:[%s745 + $0x8] sm:$0xff]
      %v880 = vld [vmem:[%s745 + $0x10] sm:$0xff]
      %v881 = vld [vmem:[%s745 + $0x18] sm:$0xff]
      %v882 = vld [vmem:[%s748] sm:$0x1]
      %v884 = vlaneseq
      %v885 = vshrl.u32 %v884, 7
      %v886 = vsub.s32 0, %v885
      %v887 = vrot.slane %v882, %v886
      %vm889 = vcmask 261120
      %v891 = vsel %vm889, %v862, 0
      %v894 = vsel %vm889, %v863, 0
      %v897 = vsel %vm889, %v864, 0
      %v900 = vsel %vm889, %v865, 0
      %v903 = vsel %vm889, %v866, 0
      %v906 = vsel %vm889, %v867, 0
      %v909 = vsel %vm889, %v868, 0
      %v912 = vsel %vm889, %v869, 0
      %v915 = vsel %vm889, %v870, 0
      %v918 = vsel %vm889, %v871, 0
      %v921 = vsel %vm889, %v872, 0
      %v924 = vsel %vm889, %v873, 0
      %v927 = vsel %vm889, %v874, 0
      %v930 = vsel %vm889, %v875, 0
      %v933 = vsel %vm889, %v876, 0
      %v936 = vsel %vm889, %v877, 0
      %938 = vmatprep.subr.mxu0 0.0
      %939 = vmatpush1.msra.mxu0 %v878
      %940 = vmatprep.subr.mxu0 0.0
      %941 = vmatpush1.msra.mxu0 %v879
      %942 = vmatprep.subr.mxu0 0.0
      %943 = vmatpush1.msra.mxu0 %v880
      %944 = vmatprep.subr.mxu0 0.0
      %945 = vmatpush1.msra.mxu0 %v881
      %946 = vmatprep.subr.mxu0 0.0
      %947 = vmatpush1.msra.mxu0 0.0
      %948 = vmatprep.subr.mxu0 0.0
      %949 = vmatpush1.msra.mxu0 0.0
      %950 = vmatprep.subr.mxu0 0.0
      %951 = vmatpush1.msra.mxu0 0.0
      %952 = vmatprep.subr.mxu0 0.0
      %953 = vmatpush1.msra.mxu0 0.0
      %954 = vmatprep.subr.mxu0 0.0
      %955 = vmatpush1.msra.mxu0 0.0
      %956 = vmatprep.subr.mxu0 0.0
      %957 = vmatpush1.msra.mxu0 0.0
      %958 = vmatprep.subr.mxu0 0.0
      %959 = vmatpush1.msra.mxu0 0.0
      %960 = vmatprep.subr.mxu0 0.0
      %961 = vmatpush1.msra.mxu0 0.0
      %962 = vmatprep.subr.mxu0 0.0
      %963 = vmatpush1.msra.mxu0 0.0
      %964 = vmatprep.subr.mxu0 0.0
      %965 = vmatpush1.msra.mxu0 0.0
      %966 = vmatprep.subr.mxu0 0.0
      %967 = vmatpush1.msra.mxu0 0.0
      %968 = vmatprep.subr.mxu0 0.0
      %969 = vmatpush1.msra.mxu0 0.0
      %970 = vmatprep.subr.mxu0 0.0
      %971 = vmatpush1.msra.mxu0 0.0
      %972 = vmatprep.subr.mxu0 0.0
      %973 = vmatpush1.msra.mxu0 0.0
      %974 = vmatprep.subr.mxu0 0.0
      %975 = vmatpush1.msra.mxu0 0.0
      %976 = vmatprep.subr.mxu0 0.0
      %977 = vmatpush1.msra.mxu0 0.0
      %978 = vmatprep.subr.mxu0 0.0
      %979 = vmatpush1.msra.mxu0 0.0
      %980 = vmatprep.subr.mxu0 0.0
      %981 = vmatpush1.msra.mxu0 0.0
      %982 = vmatprep.subr.mxu0 0.0
      %983 = vmatpush1.msra.mxu0 0.0
      %984 = vmatprep.subr.mxu0 0.0
      %985 = vmatpush1.msra.mxu0 0.0
      %986 = vmatprep.subr.mxu0 0.0
      %987 = vmatpush1.msra.mxu0 0.0
      %988 = vmatprep.subr.mxu0 0.0
      %989 = vmatpush1.msra.mxu0 0.0
      %990 = vmatprep.subr.mxu0 0.0
      %991 = vmatpush1.msra.mxu0 0.0
      %992 = vmatprep.subr.mxu0 0.0
      %993 = vmatpush1.msra.mxu0 0.0
      %994 = vmatprep.subr.mxu0 0.0
      %995 = vmatpush1.msra.mxu0 0.0
      %996 = vmatprep.subr.mxu0 0.0
      %997 = vmatpush1.msra.mxu0 0.0
      %998 = vmatprep.subr.mxu0 0.0
      %999 = vmatpush1.msra.mxu0 0.0
      %1000 = vmatprep.subr.mxu0 0.0
      %1001 = vmatpush1.msra.mxu0 0.0
      %1002 = vmatprep.mubr.f32.mxu0 0.0
      %1003 = vmatmul.mubr.f32.gmra.mrb[0].mxu0 %v891
      %v1004 = vpop.f32.mrb[0].mxu0
      %v1005 = vadd.f32 %v887, %v1004
      %v1006 = vpop.f32.mrb[0].mxu0
      %1007 = vmatprep.mubr.f32.mxu0 0.0
      %1008 = vmatmul.mubr.f32.gmra.mrb[0].mxu0 %v894
      %v1009 = vpop.f32.mrb[0].mxu0
      %v1010 = vadd.f32 %v887, %v1009
      %v1011 = vpop.f32.mrb[0].mxu0
      %1012 = vmatprep.mubr.f32.mxu0 0.0
      %1013 = vmatmul.mubr.f32.gmra.mrb[0].mxu0 %v897
      %v1014 = vpop.f32.mrb[0].mxu0
      %v1015 = vadd.f32 %v887, %v1014
      %v1016 = vpop.f32.mrb[0].mxu0
      %1017 = vmatprep.mubr.f32.mxu0 0.0
      %1018 = vmatmul.mubr.f32.gmra.mrb[0].mxu0 %v900
      %v1019 = vpop.f32.mrb[0].mxu0
      %v1020 = vadd.f32 %v887, %v1019
      %v1021 = vpop.f32.mrb[0].mxu0
      %1022 = vmatprep.mubr.f32.mxu0 0.0
      %1023 = vmatmul.mubr.f32.gmra.mrb[0].mxu0 %v903
      %v1024 = vpop.f32.mrb[0].mxu0
      %v1025 = vadd.f32 %v887, %v1024
      %v1026 = vpop.f32.mrb[0].mxu0
      %1027 = vmatprep.mubr.f32.mxu0 0.0
      %1028 = vmatmul.mubr.f32.gmra.mrb[0].mxu0 %v906
      %v1029 = vpop.f32.mrb[0].mxu0
      %v1030 = vadd.f32 %v887, %v1029
      %v1031 = vpop.f32.mrb[0].mxu0
      %1032 = vmatprep.mubr.f32.mxu0 0.0
      %1033 = vmatmul.mubr.f32.gmra.mrb[0].mxu0 %v909
      %v1034 = vpop.f32.mrb[0].mxu0
      %v1035 = vadd.f32 %v887, %v1034
      %v1036 = vpop.f32.mrb[0].mxu0
      %1037 = vmatprep.mubr.f32.mxu0 0.0
      %1038 = vmatmul.mubr.f32.gmra.mrb[0].mxu0 %v912
      %v1039 = vpop.f32.mrb[0].mxu0
      %v1040 = vadd.f32 %v887, %v1039
      %v1041 = vpop.f32.mrb[0].mxu0
      %1042 = vmatprep.mubr.f32.mxu0 0.0
      %1043 = vmatmul.mubr.f32.gmra.mrb[0].mxu0 %v915
      %v1044 = vpop.f32.mrb[0].mxu0
      %v1045 = vadd.f32 %v887, %v1044
      %v1046 = vpop.f32.mrb[0].mxu0
      %1047 = vmatprep.mubr.f32.mxu0 0.0
      %1048 = vmatmul.mubr.f32.gmra.mrb[0].mxu0 %v918
      %v1049 = vpop.f32.mrb[0].mxu0
      %v1050 = vadd.f32 %v887, %v1049
      %v1051 = vpop.f32.mrb[0].mxu0
      %1052 = vmatprep.mubr.f32.mxu0 0.0
      %1053 = vmatmul.mubr.f32.gmra.mrb[0].mxu0 %v921
      %v1054 = vpop.f32.mrb[0].mxu0
      %v1055 = vadd.f32 %v887, %v1054
      %v1056 = vpop.f32.mrb[0].mxu0
      %1057 = vmatprep.mubr.f32.mxu0 0.0
      %1058 = vmatmul.mubr.f32.gmra.mrb[0].mxu0 %v924
      %v1059 = vpop.f32.mrb[0].mxu0
      %v1060 = vadd.f32 %v887, %v1059
      %v1061 = vpop.f32.mrb[0].mxu0
      %1062 = vmatprep.mubr.f32.mxu0 0.0
      %1063 = vmatmul.mubr.f32.gmra.mrb[0].mxu0 %v927
      %v1064 = vpop.f32.mrb[0].mxu0
      %v1065 = vadd.f32 %v887, %v1064
      %v1066 = vpop.f32.mrb[0].mxu0
      %1067 = vmatprep.mubr.f32.mxu0 0.0
      %1068 = vmatmul.mubr.f32.gmra.mrb[0].mxu0 %v930
      %v1069 = vpop.f32.mrb[0].mxu0
      %v1070 = vadd.f32 %v887, %v1069
      %v1071 = vpop.f32.mrb[0].mxu0
      %1072 = vmatprep.mubr.f32.mxu0 0.0
      %1073 = vmatmul.mubr.f32.gmra.mrb[0].mxu0 %v933
      %v1074 = vpop.f32.mrb[0].mxu0
      %v1075 = vadd.f32 %v887, %v1074
      %v1076 = vpop.f32.mrb[0].mxu0
      %1077 = vmatprep.mubr.f32.mxu0 0.0
      %1078 = vmatmul.mubr.f32.gmra.mrb[0].mxu0 %v936
      %v1079 = vpop.f32.mrb[0].mxu0
      %v1080 = vadd.f32 %v887, %v1079
      %v1081 = vpop.f32.mrb[0].mxu0
      %1082 = vdwg.mxu0
      %v1083 = vld [vmem:[%s753] sm:$0xff]
      %v1084 = vld [vmem:[%s753 + $0x8] sm:$0xff]
      %v1085 = vld [vmem:[%s753 + $0x10] sm:$0xff]
      %v1086 = vld [vmem:[%s753 + $0x18] sm:$0xff]
      %v1087 = vld [vmem:[%s756] sm:$0x1]
      %v1089 = vlaneseq
      %v1090 = vshrl.u32 %v1089, 7
      %v1091 = vsub.s32 0, %v1090
      %v1092 = vrot.slane %v1087, %v1091
      %1094 = vmatprep.subr.mxu0 0.0
      %1095 = vmatpush1.msra.mxu0 %v1083
      %1096 = vmatprep.subr.mxu0 0.0
      %1097 = vmatpush1.msra.mxu0 %v1084
      %1098 = vmatprep.subr.mxu0 0.0
      %1099 = vmatpush1.msra.mxu0 %v1085
      %1100 = vmatprep.subr.mxu0 0.0
      %1101 = vmatpush1.msra.mxu0 %v1086
      %1102 = vmatprep.subr.mxu0 0.0
      %1103 = vmatpush1.msra.mxu0 0.0
      %1104 = vmatprep.subr.mxu0 0.0
      %1105 = vmatpush1.msra.mxu0 0.0
      %1106 = vmatprep.subr.mxu0 0.0
      %1107 = vmatpush1.msra.mxu0 0.0
      %1108 = vmatprep.subr.mxu0 0.0
      %1109 = vmatpush1.msra.mxu0 0.0
      %1110 = vmatprep.subr.mxu0 0.0
      %1111 = vmatpush1.msra.mxu0 0.0
      %1112 = vmatprep.subr.mxu0 0.0
      %1113 = vmatpush1.msra.mxu0 0.0
      %1114 = vmatprep.subr.mxu0 0.0
      %1115 = vmatpush1.msra.mxu0 0.0
      %1116 = vmatprep.subr.mxu0 0.0
      %1117 = vmatpush1.msra.mxu0 0.0
      %1118 = vmatprep.subr.mxu0 0.0
      %1119 = vmatpush1.msra.mxu0 0.0
      %1120 = vmatprep.subr.mxu0 0.0
      %1121 = vmatpush1.msra.mxu0 0.0
      %1122 = vmatprep.subr.mxu0 0.0
      %1123 = vmatpush1.msra.mxu0 0.0
      %1124 = vmatprep.subr.mxu0 0.0
      %1125 = vmatpush1.msra.mxu0 0.0
      %1126 = vmatprep.subr.mxu0 0.0
      %1127 = vmatpush1.msra.mxu0 0.0
      %1128 = vmatprep.subr.mxu0 0.0
      %1129 = vmatpush1.msra.mxu0 0.0
      %1130 = vmatprep.subr.mxu0 0.0
      %1131 = vmatpush1.msra.mxu0 0.0
      %1132 = vmatprep.subr.mxu0 0.0
      %1133 = vmatpush1.msra.mxu0 0.0
      %1134 = vmatprep.subr.mxu0 0.0
      %1135 = vmatpush1.msra.mxu0 0.0
      %1136 = vmatprep.subr.mxu0 0.0
      %1137 = vmatpush1.msra.mxu0 0.0
      %1138 = vmatprep.subr.mxu0 0.0
      %1139 = vmatpush1.msra.mxu0 0.0
      %1140 = vmatprep.subr.mxu0 0.0
      %1141 = vmatpush1.msra.mxu0 0.0
      %1142 = vmatprep.subr.mxu0 0.0
      %1143 = vmatpush1.msra.mxu0 0.0
      %1144 = vmatprep.subr.mxu0 0.0
      %1145 = vmatpush1.msra.mxu0 0.0
      %1146 = vmatprep.subr.mxu0 0.0
      %1147 = vmatpush1.msra.mxu0 0.0
      %1148 = vmatprep.subr.mxu0 0.0
      %1149 = vmatpush1.msra.mxu0 0.0
      %1150 = vmatprep.subr.mxu0 0.0
      %1151 = vmatpush1.msra.mxu0 0.0
      %1152 = vmatprep.subr.mxu0 0.0
      %1153 = vmatpush1.msra.mxu0 0.0
      %1154 = vmatprep.subr.mxu0 0.0
      %1155 = vmatpush1.msra.mxu0 0.0
      %1156 = vmatprep.subr.mxu0 0.0
      %1157 = vmatpush1.msra.mxu0 0.0
      %1158 = vmatprep.mubr.f32.mxu0 0.0
      %1159 = vmatmul.mubr.f32.gmra.mrb[0].mxu0 %v891
      %v1160 = vpop.f32.mrb[0].mxu0
      %v1161 = vadd.f32 %v1092, %v1160
      %v1162 = vpop.f32.mrb[0].mxu0
      %1163 = vmatprep.mubr.f32.mxu0 0.0
      %1164 = vmatmul.mubr.f32.gmra.mrb[0].mxu0 %v894
      %v1165 = vpop.f32.mrb[0].mxu0
      %v1166 = vadd.f32 %v1092, %v1165
      %v1167 = vpop.f32.mrb[0].mxu0
      %1168 = vmatprep.mubr.f32.mxu0 0.0
      %1169 = vmatmul.mubr.f32.gmra.mrb[0].mxu0 %v897
      %v1170 = vpop.f32.mrb[0].mxu0
      %v1171 = vadd.f32 %v1092, %v1170
      %v1172 = vpop.f32.mrb[0].mxu0
      %1173 = vmatprep.mubr.f32.mxu0 0.0
      %1174 = vmatmul.mubr.f32.gmra.mrb[0].mxu0 %v900
      %v1175 = vpop.f32.mrb[0].mxu0
      %v1176 = vadd.f32 %v1092, %v1175
      %v1177 = vpop.f32.mrb[0].mxu0
      %1178 = vmatprep.mubr.f32.mxu0 0.0
      %1179 = vmatmul.mubr.f32.gmra.mrb[0].mxu0 %v903
      %v1180 = vpop.f32.mrb[0].mxu0
      %v1181 = vadd.f32 %v1092, %v1180
      %v1182 = vpop.f32.mrb[0].mxu0
      %1183 = vmatprep.mubr.f32.mxu0 0.0
      %1184 = vmatmul.mubr.f32.gmra.mrb[0].mxu0 %v906
      %v1185 = vpop.f32.mrb[0].mxu0
      %v1186 = vadd.f32 %v1092, %v1185
      %v1187 = vpop.f32.mrb[0].mxu0
      %1188 = vmatprep.mubr.f32.mxu0 0.0
      %1189 = vmatmul.mubr.f32.gmra.mrb[0].mxu0 %v909
      %v1190 = vpop.f32.mrb[0].mxu0
      %v1191 = vadd.f32 %v1092, %v1190
      %v1192 = vpop.f32.mrb[0].mxu0
      %1193 = vmatprep.mubr.f32.mxu0 0.0
      %1194 = vmatmul.mubr.f32.gmra.mrb[0].mxu0 %v912
      %v1195 = vpop.f32.mrb[0].mxu0
      %v1196 = vadd.f32 %v1092, %v1195
      %v1197 = vpop.f32.mrb[0].mxu0
      %1198 = vmatprep.mubr.f32.mxu0 0.0
      %1199 = vmatmul.mubr.f32.gmra.mrb[0].mxu0 %v915
      %v1200 = vpop.f32.mrb[0].mxu0
      %v1201 = vadd.f32 %v1092, %v1200
      %v1202 = vpop.f32.mrb[0].mxu0
      %1203 = vmatprep.mubr.f32.mxu0 0.0
      %1204 = vmatmul.mubr.f32.gmra.mrb[0].mxu0 %v918
      %v1205 = vpop.f32.mrb[0].mxu0
      %v1206 = vadd.f32 %v1092, %v1205
      %v1207 = vpop.f32.mrb[0].mxu0
      %1208 = vmatprep.mubr.f32.mxu0 0.0
      %1209 = vmatmul.mubr.f32.gmra.mrb[0].mxu0 %v921
      %v1210 = vpop.f32.mrb[0].mxu0
      %v1211 = vadd.f32 %v1092, %v1210
      %v1212 = vpop.f32.mrb[0].mxu0
      %1213 = vmatprep.mubr.f32.mxu0 0.0
      %1214 = vmatmul.mubr.f32.gmra.mrb[0].mxu0 %v924
      %v1215 = vpop.f32.mrb[0].mxu0
      %v1216 = vadd.f32 %v1092, %v1215
      %v1217 = vpop.f32.mrb[0].mxu0
      %1218 = vmatprep.mubr.f32.mxu0 0.0
      %1219 = vmatmul.mubr.f32.gmra.mrb[0].mxu0 %v927
      %v1220 = vpop.f32.mrb[0].mxu0
      %v1221 = vadd.f32 %v1092, %v1220
      %v1222 = vpop.f32.mrb[0].mxu0
      %1223 = vmatprep.mubr.f32.mxu0 0.0
      %1224 = vmatmul.mubr.f32.gmra.mrb[0].mxu0 %v930
      %v1225 = vpop.f32.mrb[0].mxu0
      %v1226 = vadd.f32 %v1092, %v1225
      %v1227 = vpop.f32.mrb[0].mxu0
      %1228 = vmatprep.mubr.f32.mxu0 0.0
      %1229 = vmatmul.mubr.f32.gmra.mrb[0].mxu0 %v933
      %v1230 = vpop.f32.mrb[0].mxu0
      %v1231 = vadd.f32 %v1092, %v1230
      %v1232 = vpop.f32.mrb[0].mxu0
      %1233 = vmatprep.mubr.f32.mxu0 0.0
      %1234 = vmatmul.mubr.f32.gmra.mrb[0].mxu0 %v936
      %v1235 = vpop.f32.mrb[0].mxu0
      %v1236 = vadd.f32 %v1092, %v1235
      %v1237 = vpop.f32.mrb[0].mxu0
      %1238 = vdwg.mxu0
      %v1239 = vld [vmem:[%s761] sm:$0xff]
      %v1240 = vld [vmem:[%s761 + $0x8] sm:$0xff]
      %v1241 = vld [vmem:[%s761 + $0x10] sm:$0xff]
      %v1242 = vld [vmem:[%s761 + $0x18] sm:$0xff]
      %v1243 = vld [vmem:[%s764] sm:$0x1]
      %v1245 = vlaneseq
      %v1246 = vshrl.u32 %v1245, 7
      %v1247 = vsub.s32 0, %v1246
      %v1248 = vrot.slane %v1243, %v1247
      %v1251 = vsel %vm889, %v838, 0
      %v1254 = vsel %vm889, %v839, 0
      %v1257 = vsel %vm889, %v840, 0
      %v1260 = vsel %vm889, %v841, 0
      %v1263 = vsel %vm889, %v842, 0
      %v1266 = vsel %vm889, %v843, 0
      %v1269 = vsel %vm889, %v844, 0
      %v1272 = vsel %vm889, %v845, 0
      %v1275 = vsel %vm889, %v846, 0
      %v1278 = vsel %vm889, %v847, 0
      %v1281 = vsel %vm889, %v848, 0
      %v1284 = vsel %vm889, %v849, 0
      %v1287 = vsel %vm889, %v850, 0
      %v1290 = vsel %vm889, %v851, 0
      %v1293 = vsel %vm889, %v852, 0
      %v1296 = vsel %vm889, %v853, 0
      %1298 = vmatprep.subr.mxu0 0.0
      %1299 = vmatpush1.msra.mxu0 %v1239
      %1300 = vmatprep.subr.mxu0 0.0
      %1301 = vmatpush1.msra.mxu0 %v1240
      %1302 = vmatprep.subr.mxu0 0.0
      %1303 = vmatpush1.msra.mxu0 %v1241
      %1304 = vmatprep.subr.mxu0 0.0
      %1305 = vmatpush1.msra.mxu0 %v1242
      %1306 = vmatprep.subr.mxu0 0.0
      %1307 = vmatpush1.msra.mxu0 0.0
      %1308 = vmatprep.subr.mxu0 0.0
      %1309 = vmatpush1.msra.mxu0 0.0
      %1310 = vmatprep.subr.mxu0 0.0
      %1311 = vmatpush1.msra.mxu0 0.0
      %1312 = vmatprep.subr.mxu0 0.0
      %1313 = vmatpush1.msra.mxu0 0.0
      %1314 = vmatprep.subr.mxu0 0.0
      %1315 = vmatpush1.msra.mxu0 0.0
      %1316 = vmatprep.subr.mxu0 0.0
      %1317 = vmatpush1.msra.mxu0 0.0
      %1318 = vmatprep.subr.mxu0 0.0
      %1319 = vmatpush1.msra.mxu0 0.0
      %1320 = vmatprep.subr.mxu0 0.0
      %1321 = vmatpush1.msra.mxu0 0.0
      %1322 = vmatprep.subr.mxu0 0.0
      %1323 = vmatpush1.msra.mxu0 0.0
      %1324 = vmatprep.subr.mxu0 0.0
      %1325 = vmatpush1.msra.mxu0 0.0
      %1326 = vmatprep.subr.mxu0 0.0
      %1327 = vmatpush1.msra.mxu0 0.0
      %1328 = vmatprep.subr.mxu0 0.0
      %1329 = vmatpush1.msra.mxu0 0.0
      %1330 = vmatprep.subr.mxu0 0.0
      %1331 = vmatpush1.msra.mxu0 0.0
      %1332 = vmatprep.subr.mxu0 0.0
      %1333 = vmatpush1.msra.mxu0 0.0
      %1334 = vmatprep.subr.mxu0 0.0
      %1335 = vmatpush1.msra.mxu0 0.0
      %1336 = vmatprep.subr.mxu0 0.0
      %1337 = vmatpush1.msra.mxu0 0.0
      %1338 = vmatprep.subr.mxu0 0.0
      %1339 = vmatpush1.msra.mxu0 0.0
      %1340 = vmatprep.subr.mxu0 0.0
      %1341 = vmatpush1.msra.mxu0 0.0
      %1342 = vmatprep.subr.mxu0 0.0
      %1343 = vmatpush1.msra.mxu0 0.0
      %1344 = vmatprep.subr.mxu0 0.0
      %1345 = vmatpush1.msra.mxu0 0.0
      %1346 = vmatprep.subr.mxu0 0.0
      %1347 = vmatpush1.msra.mxu0 0.0
      %1348 = vmatprep.subr.mxu0 0.0
      %1349 = vmatpush1.msra.mxu0 0.0
      %1350 = vmatprep.subr.mxu0 0.0
      %1351 = vmatpush1.msra.mxu0 0.0
      %1352 = vmatprep.subr.mxu0 0.0
      %1353 = vmatpush1.msra.mxu0 0.0
      %1354 = vmatprep.subr.mxu0 0.0
      %1355 = vmatpush1.msra.mxu0 0.0
      %1356 = vmatprep.subr.mxu0 0.0
      %1357 = vmatpush1.msra.mxu0 0.0
      %1358 = vmatprep.subr.mxu0 0.0
      %1359 = vmatpush1.msra.mxu0 0.0
      %1360 = vmatprep.subr.mxu0 0.0
      %1361 = vmatpush1.msra.mxu0 0.0
      %1362 = vmatprep.mubr.f32.mxu0 0.0
      %1363 = vmatmul.mubr.f32.gmra.mrb[0].mxu0 %v1251
      %v1364 = vpop.f32.mrb[0].mxu0
      %v1365 = vadd.f32 %v1248, %v1364
      %v1366 = vpop.f32.mrb[0].mxu0
      %1367 = vmatprep.mubr.f32.mxu0 0.0
      %1368 = vmatmul.mubr.f32.gmra.mrb[0].mxu0 %v1254
      %v1369 = vpop.f32.mrb[0].mxu0
      %v1370 = vadd.f32 %v1248, %v1369
      %v1371 = vpop.f32.mrb[0].mxu0
      %1372 = vmatprep.mubr.f32.mxu0 0.0
      %1373 = vmatmul.mubr.f32.gmra.mrb[0].mxu0 %v1257
      %v1374 = vpop.f32.mrb[0].mxu0
      %v1375 = vadd.f32 %v1248, %v1374
      %v1376 = vpop.f32.mrb[0].mxu0
      %1377 = vmatprep.mubr.f32.mxu0 0.0
      %1378 = vmatmul.mubr.f32.gmra.mrb[0].mxu0 %v1260
      %v1379 = vpop.f32.mrb[0].mxu0
      %v1380 = vadd.f32 %v1248, %v1379
      %v1381 = vpop.f32.mrb[0].mxu0
      %1382 = vmatprep.mubr.f32.mxu0 0.0
      %1383 = vmatmul.mubr.f32.gmra.mrb[0].mxu0 %v1263
      %v1384 = vpop.f32.mrb[0].mxu0
      %v1385 = vadd.f32 %v1248, %v1384
      %v1386 = vpop.f32.mrb[0].mxu0
      %1387 = vmatprep.mubr.f32.mxu0 0.0
      %1388 = vmatmul.mubr.f32.gmra.mrb[0].mxu0 %v1266
      %v1389 = vpop.f32.mrb[0].mxu0
      %v1390 = vadd.f32 %v1248, %v1389
      %v1391 = vpop.f32.mrb[0].mxu0
      %1392 = vmatprep.mubr.f32.mxu0 0.0
      %1393 = vmatmul.mubr.f32.gmra.mrb[0].mxu0 %v1269
      %v1394 = vpop.f32.mrb[0].mxu0
      %v1395 = vadd.f32 %v1248, %v1394
      %v1396 = vpop.f32.mrb[0].mxu0
      %1397 = vmatprep.mubr.f32.mxu0 0.0
      %1398 = vmatmul.mubr.f32.gmra.mrb[0].mxu0 %v1272
      %v1399 = vpop.f32.mrb[0].mxu0
      %v1400 = vadd.f32 %v1248, %v1399
      %v1401 = vpop.f32.mrb[0].mxu0
      %1402 = vmatprep.mubr.f32.mxu0 0.0
      %1403 = vmatmul.mubr.f32.gmra.mrb[0].mxu0 %v1275
      %v1404 = vpop.f32.mrb[0].mxu0
      %v1405 = vadd.f32 %v1248, %v1404
      %v1406 = vpop.f32.mrb[0].mxu0
      %1407 = vmatprep.mubr.f32.mxu0 0.0
      %1408 = vmatmul.mubr.f32.gmra.mrb[0].mxu0 %v1278
      %v1409 = vpop.f32.mrb[0].mxu0
      %v1410 = vadd.f32 %v1248, %v1409
      %v1411 = vpop.f32.mrb[0].mxu0
      %1412 = vmatprep.mubr.f32.mxu0 0.0
      %1413 = vmatmul.mubr.f32.gmra.mrb[0].mxu0 %v1281
      %v1414 = vpop.f32.mrb[0].mxu0
      %v1415 = vadd.f32 %v1248, %v1414
      %v1416 = vpop.f32.mrb[0].mxu0
      %1417 = vmatprep.mubr.f32.mxu0 0.0
      %1418 = vmatmul.mubr.f32.gmra.mrb[0].mxu0 %v1284
      %v1419 = vpop.f32.mrb[0].mxu0
      %v1420 = vadd.f32 %v1248, %v1419
      %v1421 = vpop.f32.mrb[0].mxu0
      %1422 = vmatprep.mubr.f32.mxu0 0.0
      %1423 = vmatmul.mubr.f32.gmra.mrb[0].mxu0 %v1287
      %v1424 = vpop.f32.mrb[0].mxu0
      %v1425 = vadd.f32 %v1248, %v1424
      %v1426 = vpop.f32.mrb[0].mxu0
      %1427 = vmatprep.mubr.f32.mxu0 0.0
      %1428 = vmatmul.mubr.f32.gmra.mrb[0].mxu0 %v1290
      %v1429 = vpop.f32.mrb[0].mxu0
      %v1430 = vadd.f32 %v1248, %v1429
      %v1431 = vpop.f32.mrb[0].mxu0
      %1432 = vmatprep.mubr.f32.mxu0 0.0
      %1433 = vmatmul.mubr.f32.gmra.mrb[0].mxu0 %v1293
      %v1434 = vpop.f32.mrb[0].mxu0
      %v1435 = vadd.f32 %v1248, %v1434
      %v1436 = vpop.f32.mrb[0].mxu0
      %1437 = vmatprep.mubr.f32.mxu0 0.0
      %1438 = vmatmul.mubr.f32.gmra.mrb[0].mxu0 %v1296
      %v1439 = vpop.f32.mrb[0].mxu0
      %v1440 = vadd.f32 %v1248, %v1439
      %v1441 = vpop.f32.mrb[0].mxu0
      %1442 = vdwg.mxu0
      %v1444 = vsel %vm889, %v1005, 0
      %v1447 = vsel %vm889, %v1010, 0
      %v1450 = vsel %vm889, %v1015, 0
      %v1453 = vsel %vm889, %v1020, 0
      %v1456 = vsel %vm889, %v1025, 0
      %v1459 = vsel %vm889, %v1030, 0
      %v1462 = vsel %vm889, %v1035, 0
      %v1465 = vsel %vm889, %v1040, 0
      %v1468 = vsel %vm889, %v1161, 0
      %v1471 = vsel %vm889, %v1166, 0
      %v1474 = vsel %vm889, %v1171, 0
      %v1477 = vsel %vm889, %v1176, 0
      %v1480 = vsel %vm889, %v1181, 0
      %v1483 = vsel %vm889, %v1186, 0
      %v1486 = vsel %vm889, %v1191, 0
      %v1489 = vsel %vm889, %v1196, 0
      %1491 = vmatprep.subr.mxu0 0.0
      %1492 = vmatpush1.xpose.msra.mxu0 %v1468
      %1493 = vmatprep.subr.mxu0 0.0
      %1494 = vmatpush1.xpose.msra.mxu0 %v1471
      %1495 = vmatprep.subr.mxu0 0.0
      %1496 = vmatpush1.xpose.msra.mxu0 %v1474
      %1497 = vmatprep.subr.mxu0 0.0
      %1498 = vmatpush1.xpose.msra.mxu0 %v1477
      %1499 = vmatprep.subr.mxu0 0.0
      %1500 = vmatpush1.xpose.msra.mxu0 %v1480
      %1501 = vmatprep.subr.mxu0 0.0
      %1502 = vmatpush1.xpose.msra.mxu0 %v1483
      %1503 = vmatprep.subr.mxu0 0.0
      %1504 = vmatpush1.xpose.msra.mxu0 %v1486
      %1505 = vmatprep.subr.mxu0 0.0
      %1506 = vmatpush1.xpose.msra.mxu0 %v1489
      %1507 = vmatprep.subr.mxu0 0.0
      %1508 = vmatpush1.xpose.msra.mxu0 0.0
      %1509 = vmatprep.subr.mxu0 0.0
      %1510 = vmatpush1.xpose.msra.mxu0 0.0
      %1511 = vmatprep.subr.mxu0 0.0
      %1512 = vmatpush1.xpose.msra.mxu0 0.0
      %1513 = vmatprep.subr.mxu0 0.0
      %1514 = vmatpush1.xpose.msra.mxu0 0.0
      %1515 = vmatprep.subr.mxu0 0.0
      %1516 = vmatpush1.xpose.msra.mxu0 0.0
      %1517 = vmatprep.subr.mxu0 0.0
      %1518 = vmatpush1.xpose.msra.mxu0 0.0
      %1519 = vmatprep.subr.mxu0 0.0
      %1520 = vmatpush1.xpose.msra.mxu0 0.0
      %1521 = vmatprep.subr.mxu0 0.0
      %1522 = vmatpush1.xpose.msra.mxu0 0.0
      %1523 = vmatprep.subr.mxu0 0.0
      %1524 = vmatpush1.xpose.msra.mxu0 0.0
      %1525 = vmatprep.subr.mxu0 0.0
      %1526 = vmatpush1.xpose.msra.mxu0 0.0
      %1527 = vmatprep.subr.mxu0 0.0
      %1528 = vmatpush1.xpose.msra.mxu0 0.0
      %1529 = vmatprep.subr.mxu0 0.0
      %1530 = vmatpush1.xpose.msra.mxu0 0.0
      %1531 = vmatprep.subr.mxu0 0.0
      %1532 = vmatpush1.xpose.msra.mxu0 0.0
      %1533 = vmatprep.subr.mxu0 0.0
      %1534 = vmatpush1.xpose.msra.mxu0 0.0
      %1535 = vmatprep.subr.mxu0 0.0
      %1536 = vmatpush1.xpose.msra.mxu0 0.0
      %1537 = vmatprep.subr.mxu0 0.0
      %1538 = vmatpush1.xpose.msra.mxu0 0.0
      %1539 = vmatprep.subr.mxu0 0.0
      %1540 = vmatpush1.xpose.msra.mxu0 0.0
      %1541 = vmatprep.subr.mxu0 0.0
      %1542 = vmatpush1.xpose.msra.mxu0 0.0
      %1543 = vmatprep.subr.mxu0 0.0
      %1544 = vmatpush1.xpose.msra.mxu0 0.0
      %1545 = vmatprep.subr.mxu0 0.0
      %1546 = vmatpush1.xpose.msra.mxu0 0.0
      %1547 = vmatprep.subr.mxu0 0.0
      %1548 = vmatpush1.xpose.msra.mxu0 0.0
      %1549 = vmatprep.subr.mxu0 0.0
      %1550 = vmatpush1.xpose.msra.mxu0 0.0
      %1551 = vmatprep.subr.mxu0 0.0
      %1552 = vmatpush1.xpose.msra.mxu0 0.0
      %1553 = vmatprep.subr.mxu0 0.0
      %1554 = vmatpush1.xpose.msra.mxu0 0.0
      %1555 = vmatprep.mubr.f32.mxu0 0.0
      %1556 = vmatmul.mubr.f32.gmra.mrb[0].mxu0 %v1444
      %v1557 = vpop.f32.mrb[0].mxu0
      %v1558 = vadd.f32 0.0, %v1557
      %v1559 = vpop.f32.mrb[0].mxu0
      %1560 = vmatprep.mubr.f32.mxu0 0.0
      %1561 = vmatmul.mubr.f32.gmra.mrb[0].mxu0 %v1447
      %v1562 = vpop.f32.mrb[0].mxu0
      %v1563 = vadd.f32 0.0, %v1562
      %v1564 = vpop.f32.mrb[0].mxu0
      %1565 = vmatprep.mubr.f32.mxu0 0.0
      %1566 = vmatmul.mubr.f32.gmra.mrb[0].mxu0 %v1450
      %v1567 = vpop.f32.mrb[0].mxu0
      %v1568 = vadd.f32 0.0, %v1567
      %v1569 = vpop.f32.mrb[0].mxu0
      %1570 = vmatprep.mubr.f32.mxu0 0.0
      %1571 = vmatmul.mubr.f32.gmra.mrb[0].mxu0 %v1453
      %v1572 = vpop.f32.mrb[0].mxu0
      %v1573 = vadd.f32 0.0, %v1572
      %v1574 = vpop.f32.mrb[0].mxu0
      %1575 = vmatprep.mubr.f32.mxu0 0.0
      %1576 = vmatmul.mubr.f32.gmra.mrb[0].mxu0 %v1456
      %v1577 = vpop.f32.mrb[0].mxu0
      %v1578 = vadd.f32 0.0, %v1577
      %v1579 = vpop.f32.mrb[0].mxu0
      %1580 = vmatprep.mubr.f32.mxu0 0.0
      %1581 = vmatmul.mubr.f32.gmra.mrb[0].mxu0 %v1459
      %v1582 = vpop.f32.mrb[0].mxu0
      %v1583 = vadd.f32 0.0, %v1582
      %v1584 = vpop.f32.mrb[0].mxu0
      %1585 = vmatprep.mubr.f32.mxu0 0.0
      %1586 = vmatmul.mubr.f32.gmra.mrb[0].mxu0 %v1462
      %v1587 = vpop.f32.mrb[0].mxu0
      %v1588 = vadd.f32 0.0, %v1587
      %v1589 = vpop.f32.mrb[0].mxu0
      %1590 = vmatprep.mubr.f32.mxu0 0.0
      %1591 = vmatmul.mubr.f32.gmra.mrb[0].mxu0 %v1465
      %v1592 = vpop.f32.mrb[0].mxu0
      %v1593 = vadd.f32 0.0, %v1592
      %v1594 = vpop.f32.mrb[0].mxu0
      %1595 = vdwg.mxu0
      %v1597 = vsel %vm889, %v1045, 0
      %v1600 = vsel %vm889, %v1050, 0
      %v1603 = vsel %vm889, %v1055, 0
      %v1606 = vsel %vm889, %v1060, 0
      %v1609 = vsel %vm889, %v1065, 0
      %v1612 = vsel %vm889, %v1070, 0
      %v1615 = vsel %vm889, %v1075, 0
      %v1618 = vsel %vm889, %v1080, 0
      %v1621 = vsel %vm889, %v1201, 0
      %v1624 = vsel %vm889, %v1206, 0
      %v1627 = vsel %vm889, %v1211, 0
      %v1630 = vsel %vm889, %v1216, 0
      %v1633 = vsel %vm889, %v1221, 0
      %v1636 = vsel %vm889, %v1226, 0
      %v1639 = vsel %vm889, %v1231, 0
      %v1642 = vsel %vm889, %v1236, 0
      %1644 = vmatprep.subr.mxu0 0.0
      %1645 = vmatpush1.xpose.msra.mxu0 %v1621
      %1646 = vmatprep.subr.mxu0 0.0
      %1647 = vmatpush1.xpose.msra.mxu0 %v1624
      %1648 = vmatprep.subr.mxu0 0.0
      %1649 = vmatpush1.xpose.msra.mxu0 %v1627
      %1650 = vmatprep.subr.mxu0 0.0
      %1651 = vmatpush1.xpose.msra.mxu0 %v1630
      %1652 = vmatprep.subr.mxu0 0.0
      %1653 = vmatpush1.xpose.msra.mxu0 %v1633
      %1654 = vmatprep.subr.mxu0 0.0
      %1655 = vmatpush1.xpose.msra.mxu0 %v1636
      %1656 = vmatprep.subr.mxu0 0.0
      %1657 = vmatpush1.xpose.msra.mxu0 %v1639
      %1658 = vmatprep.subr.mxu0 0.0
      %1659 = vmatpush1.xpose.msra.mxu0 %v1642
      %1660 = vmatprep.subr.mxu0 0.0
      %1661 = vmatpush1.xpose.msra.mxu0 0.0
      %1662 = vmatprep.subr.mxu0 0.0
      %1663 = vmatpush1.xpose.msra.mxu0 0.0
      %1664 = vmatprep.subr.mxu0 0.0
      %1665 = vmatpush1.xpose.msra.mxu0 0.0
      %1666 = vmatprep.subr.mxu0 0.0
      %1667 = vmatpush1.xpose.msra.mxu0 0.0
      %1668 = vmatprep.subr.mxu0 0.0
      %1669 = vmatpush1.xpose.msra.mxu0 0.0
      %1670 = vmatprep.subr.mxu0 0.0
      %1671 = vmatpush1.xpose.msra.mxu0 0.0
      %1672 = vmatprep.subr.mxu0 0.0
      %1673 = vmatpush1.xpose.msra.mxu0 0.0
      %1674 = vmatprep.subr.mxu0 0.0
      %1675 = vmatpush1.xpose.msra.mxu0 0.0
      %1676 = vmatprep.subr.mxu0 0.0
      %1677 = vmatpush1.xpose.msra.mxu0 0.0
      %1678 = vmatprep.subr.mxu0 0.0
      %1679 = vmatpush1.xpose.msra.mxu0 0.0
      %1680 = vmatprep.subr.mxu0 0.0
      %1681 = vmatpush1.xpose.msra.mxu0 0.0
      %1682 = vmatprep.subr.mxu0 0.0
      %1683 = vmatpush1.xpose.msra.mxu0 0.0
      %1684 = vmatprep.subr.mxu0 0.0
      %1685 = vmatpush1.xpose.msra.mxu0 0.0
      %1686 = vmatprep.subr.mxu0 0.0
      %1687 = vmatpush1.xpose.msra.mxu0 0.0
      %1688 = vmatprep.subr.mxu0 0.0
      %1689 = vmatpush1.xpose.msra.mxu0 0.0
      %1690 = vmatprep.subr.mxu0 0.0
      %1691 = vmatpush1.xpose.msra.mxu0 0.0
      %1692 = vmatprep.subr.mxu0 0.0
      %1693 = vmatpush1.xpose.msra.mxu0 0.0
      %1694 = vmatprep.subr.mxu0 0.0
      %1695 = vmatpush1.xpose.msra.mxu0 0.0
      %1696 = vmatprep.subr.mxu0 0.0
      %1697 = vmatpush1.xpose.msra.mxu0 0.0
      %1698 = vmatprep.subr.mxu0 0.0
      %1699 = vmatpush1.xpose.msra.mxu0 0.0
      %1700 = vmatprep.subr.mxu0 0.0
      %1701 = vmatpush1.xpose.msra.mxu0 0.0
      %1702 = vmatprep.subr.mxu0 0.0
      %1703 = vmatpush1.xpose.msra.mxu0 0.0
      %1704 = vmatprep.subr.mxu0 0.0
      %1705 = vmatpush1.xpose.msra.mxu0 0.0
      %1706 = vmatprep.subr.mxu0 0.0
      %1707 = vmatpush1.xpose.msra.mxu0 0.0
      %1708 = vmatprep.mubr.f32.mxu0 0.0
      %1709 = vmatmul.mubr.f32.gmra.mrb[0].mxu0 %v1597
      %v1710 = vpop.f32.mrb[0].mxu0
      %v1711 = vadd.f32 0.0, %v1710
      %v1712 = vpop.f32.mrb[0].mxu0
      %1713 = vmatprep.mubr.f32.mxu0 0.0
      %1714 = vmatmul.mubr.f32.gmra.mrb[0].mxu0 %v1600
      %v1715 = vpop.f32.mrb[0].mxu0
      %v1716 = vadd.f32 0.0, %v1715
      %v1717 = vpop.f32.mrb[0].mxu0
      %1718 = vmatprep.mubr.f32.mxu0 0.0
      %1719 = vmatmul.mubr.f32.gmra.mrb[0].mxu0 %v1603
      %v1720 = vpop.f32.mrb[0].mxu0
      %v1721 = vadd.f32 0.0, %v1720
      %v1722 = vpop.f32.mrb[0].mxu0
      %1723 = vmatprep.mubr.f32.mxu0 0.0
      %1724 = vmatmul.mubr.f32.gmra.mrb[0].mxu0 %v1606
      %v1725 = vpop.f32.mrb[0].mxu0
      %v1726 = vadd.f32 0.0, %v1725
      %v1727 = vpop.f32.mrb[0].mxu0
      %1728 = vmatprep.mubr.f32.mxu0 0.0
      %1729 = vmatmul.mubr.f32.gmra.mrb[0].mxu0 %v1609
      %v1730 = vpop.f32.mrb[0].mxu0
      %v1731 = vadd.f32 0.0, %v1730
      %v1732 = vpop.f32.mrb[0].mxu0
      %1733 = vmatprep.mubr.f32.mxu0 0.0
      %1734 = vmatmul.mubr.f32.gmra.mrb[0].mxu0 %v1612
      %v1735 = vpop.f32.mrb[0].mxu0
      %v1736 = vadd.f32 0.0, %v1735
      %v1737 = vpop.f32.mrb[0].mxu0
      %1738 = vmatprep.mubr.f32.mxu0 0.0
      %1739 = vmatmul.mubr.f32.gmra.mrb[0].mxu0 %v1615
      %v1740 = vpop.f32.mrb[0].mxu0
      %v1741 = vadd.f32 0.0, %v1740
      %v1742 = vpop.f32.mrb[0].mxu0
      %1743 = vmatprep.mubr.f32.mxu0 0.0
      %1744 = vmatmul.mubr.f32.gmra.mrb[0].mxu0 %v1618
      %v1745 = vpop.f32.mrb[0].mxu0
      %v1746 = vadd.f32 0.0, %v1745
      %v1747 = vpop.f32.mrb[0].mxu0
      %1748 = vdwg.mxu0
      %vm1749 = vcmask 523264
      %v1750 = vsel %vm1749, %v1558, -inf
      %1751 = vmax.xlane.f32.xlu0 %v1750
      %v1752 = vpop.xlane.xlu0 %1751
      %v1753 = vsel %vm1749, %v1563, -inf
      %1754 = vmax.xlane.f32.xlu0 %v1753
      %v1755 = vpop.xlane.xlu0 %1754
      %v1756 = vsel %vm1749, %v1568, -inf
      %1757 = vmax.xlane.f32.xlu0 %v1756
      %v1758 = vpop.xlane.xlu0 %1757
      %v1759 = vsel %vm1749, %v1573, -inf
      %1760 = vmax.xlane.f32.xlu0 %v1759
      %v1761 = vpop.xlane.xlu0 %1760
      %v1762 = vsel %vm1749, %v1578, -inf
      %1763 = vmax.xlane.f32.xlu0 %v1762
      %v1764 = vpop.xlane.xlu0 %1763
      %v1765 = vsel %vm1749, %v1583, -inf
      %1766 = vmax.xlane.f32.xlu0 %v1765
      %v1767 = vpop.xlane.xlu0 %1766
      %v1768 = vsel %vm1749, %v1588, -inf
      %1769 = vmax.xlane.f32.xlu0 %v1768
      %v1770 = vpop.xlane.xlu0 %1769
      %v1771 = vsel %vm1749, %v1593, -inf
      %1772 = vmax.xlane.f32.xlu0 %v1771
      %v1773 = vpop.xlane.xlu0 %1772
      %v1774 = vsel %vm1749, %v1711, -inf
      %1775 = vmax.xlane.f32.xlu0 %v1774
      %v1776 = vpop.xlane.xlu0 %1775
      %v1777 = vsel %vm1749, %v1716, -inf
      %1778 = vmax.xlane.f32.xlu0 %v1777
      %v1779 = vpop.xlane.xlu0 %1778
      %v1780 = vsel %vm1749, %v1721, -inf
      %1781 = vmax.xlane.f32.xlu0 %v1780
      %v1782 = vpop.xlane.xlu0 %1781
      %v1783 = vsel %vm1749, %v1726, -inf
      %1784 = vmax.xlane.f32.xlu0 %v1783
      %v1785 = vpop.xlane.xlu0 %1784
      %v1786 = vsel %vm1749, %v1731, -inf
      %1787 = vmax.xlane.f32.xlu0 %v1786
      %v1788 = vpop.xlane.xlu0 %1787
      %v1789 = vsel %vm1749, %v1736, -inf
      %1790 = vmax.xlane.f32.xlu0 %v1789
      %v1791 = vpop.xlane.xlu0 %1790
      %v1792 = vsel %vm1749, %v1741, -inf
      %1793 = vmax.xlane.f32.xlu0 %v1792
      %v1794 = vpop.xlane.xlu0 %1793
      %v1795 = vsel %vm1749, %v1746, -inf
      %1796 = vmax.xlane.f32.xlu0 %v1795
      %v1797 = vpop.xlane.xlu0 %1796
      %v1798 = vsub.f32 %v1558, %v1752
      %v1799 = vsub.f32 %v1563, %v1755
      %v1800 = vsub.f32 %v1568, %v1758
      %v1801 = vsub.f32 %v1573, %v1761
      %v1802 = vsub.f32 %v1578, %v1764
      %v1803 = vsub.f32 %v1583, %v1767
      %v1804 = vsub.f32 %v1588, %v1770
      %v1805 = vsub.f32 %v1593, %v1773
      %v1806 = vsub.f32 %v1711, %v1776
      %v1807 = vsub.f32 %v1716, %v1779
      %v1808 = vsub.f32 %v1721, %v1782
      %v1809 = vsub.f32 %v1726, %v1785
      %v1810 = vsub.f32 %v1731, %v1788
      %v1811 = vsub.f32 %v1736, %v1791
      %v1812 = vsub.f32 %v1741, %v1794
      %v1813 = vsub.f32 %v1746, %v1797
      %v1814 = vmul.f32 %v1798, 1.442695
      %v1815 = vpow.pop %v1814
      %v1816 = vmul.f32 %v1799, 1.442695
      %v1817 = vpow.pop %v1816
      %v1818 = vmul.f32 %v1800, 1.442695
      %v1819 = vpow.pop %v1818
      %v1820 = vmul.f32 %v1801, 1.442695
      %v1821 = vpow.pop %v1820
      %v1822 = vmul.f32 %v1802, 1.442695
      %v1823 = vpow.pop %v1822
      %v1824 = vmul.f32 %v1803, 1.442695
      %v1825 = vpow.pop %v1824
      %v1826 = vmul.f32 %v1804, 1.442695
      %v1827 = vpow.pop %v1826
      %v1828 = vmul.f32 %v1805, 1.442695
      %v1829 = vpow.pop %v1828
      %v1830 = vmul.f32 %v1806, 1.442695
      %v1831 = vpow.pop %v1830
      %v1832 = vmul.f32 %v1807, 1.442695
      %v1833 = vpow.pop %v1832
      %v1834 = vmul.f32 %v1808, 1.442695
      %v1835 = vpow.pop %v1834
      %v1836 = vmul.f32 %v1809, 1.442695
      %v1837 = vpow.pop %v1836
      %v1838 = vmul.f32 %v1810, 1.442695
      %v1839 = vpow.pop %v1838
      %v1840 = vmul.f32 %v1811, 1.442695
      %v1841 = vpow.pop %v1840
      %v1842 = vmul.f32 %v1812, 1.442695
      %v1843 = vpow.pop %v1842
      %v1844 = vmul.f32 %v1813, 1.442695
      %v1845 = vpow.pop %v1844
      %v1846 = vsel %vm1749, %v1815, 0.0
      %1847 = vadd.xlane.f32.xlu0 %v1846
      %v1848 = vpop.xlane.xlu0 %1847
      %v1849 = vsel %vm1749, %v1817, 0.0
      %1850 = vadd.xlane.f32.xlu0 %v1849
      %v1851 = vpop.xlane.xlu0 %1850
      %v1852 = vsel %vm1749, %v1819, 0.0
      %1853 = vadd.xlane.f32.xlu0 %v1852
      %v1854 = vpop.xlane.xlu0 %1853
      %v1855 = vsel %vm1749, %v1821, 0.0
      %1856 = vadd.xlane.f32.xlu0 %v1855
      %v1857 = vpop.xlane.xlu0 %1856
      %v1858 = vsel %vm1749, %v1823, 0.0
      %1859 = vadd.xlane.f32.xlu0 %v1858
      %v1860 = vpop.xlane.xlu0 %1859
      %v1861 = vsel %vm1749, %v1825, 0.0
      %1862 = vadd.xlane.f32.xlu0 %v1861
      %v1863 = vpop.xlane.xlu0 %1862
      %v1864 = vsel %vm1749, %v1827, 0.0
      %1865 = vadd.xlane.f32.xlu0 %v1864
      %v1866 = vpop.xlane.xlu0 %1865
      %v1867 = vsel %vm1749, %v1829, 0.0
      %1868 = vadd.xlane.f32.xlu0 %v1867
      %v1869 = vpop.xlane.xlu0 %1868
      %v1870 = vsel %vm1749, %v1831, 0.0
      %1871 = vadd.xlane.f32.xlu0 %v1870
      %v1872 = vpop.xlane.xlu0 %1871
      %v1873 = vsel %vm1749, %v1833, 0.0
      %1874 = vadd.xlane.f32.xlu0 %v1873
      %v1875 = vpop.xlane.xlu0 %1874
      %v1876 = vsel %vm1749, %v1835, 0.0
      %1877 = vadd.xlane.f32.xlu0 %v1876
      %v1878 = vpop.xlane.xlu0 %1877
      %v1879 = vsel %vm1749, %v1837, 0.0
      %1880 = vadd.xlane.f32.xlu0 %v1879
      %v1881 = vpop.xlane.xlu0 %1880
      %v1882 = vsel %vm1749, %v1839, 0.0
      %1883 = vadd.xlane.f32.xlu0 %v1882
      %v1884 = vpop.xlane.xlu0 %1883
      %v1885 = vsel %vm1749, %v1841, 0.0
      %1886 = vadd.xlane.f32.xlu0 %v1885
      %v1887 = vpop.xlane.xlu0 %1886
      %v1888 = vsel %vm1749, %v1843, 0.0
      %1889 = vadd.xlane.f32.xlu0 %v1888
      %v1890 = vpop.xlane.xlu0 %1889
      %v1891 = vsel %vm1749, %v1845, 0.0
      %1892 = vadd.xlane.f32.xlu0 %v1891
      %v1893 = vpop.xlane.xlu0 %1892
      %v1894 = vrcp.pop %v1848
      %v1895 = vrcp.pop %v1851
      %v1896 = vrcp.pop %v1854
      %v1897 = vrcp.pop %v1857
      %v1898 = vrcp.pop %v1860
      %v1899 = vrcp.pop %v1863
      %v1900 = vrcp.pop %v1866
      %v1901 = vrcp.pop %v1869
      %v1902 = vrcp.pop %v1872
      %v1903 = vrcp.pop %v1875
      %v1904 = vrcp.pop %v1878
      %v1905 = vrcp.pop %v1881
      %v1906 = vrcp.pop %v1884
      %v1907 = vrcp.pop %v1887
      %v1908 = vrcp.pop %v1890
      %v1909 = vrcp.pop %v1893
      %v1910 = vmul.f32 %v1815, %v1894
      %v1911 = vmul.f32 %v1817, %v1895
      %v1912 = vmul.f32 %v1819, %v1896
      %v1913 = vmul.f32 %v1821, %v1897
      %v1914 = vmul.f32 %v1823, %v1898
      %v1915 = vmul.f32 %v1825, %v1899
      %v1916 = vmul.f32 %v1827, %v1900
      %v1917 = vmul.f32 %v1829, %v1901
      %v1918 = vmul.f32 %v1831, %v1902
      %v1919 = vmul.f32 %v1833, %v1903
      %v1920 = vmul.f32 %v1835, %v1904
      %v1921 = vmul.f32 %v1837, %v1905
      %v1922 = vmul.f32 %v1839, %v1906
      %v1923 = vmul.f32 %v1841, %v1907
      %v1924 = vmul.f32 %v1843, %v1908
      %v1925 = vmul.f32 %v1845, %v1909
      %v1927 = vsel %vm1749, %v1910, 0
      %v1930 = vsel %vm1749, %v1911, 0
      %v1933 = vsel %vm1749, %v1912, 0
      %v1936 = vsel %vm1749, %v1913, 0
      %v1939 = vsel %vm1749, %v1914, 0
      %v1942 = vsel %vm1749, %v1915, 0
      %v1945 = vsel %vm1749, %v1916, 0
      %v1948 = vsel %vm1749, %v1917, 0
      %1950 = vmatprep.subr.mxu0 0.0
      %1951 = vmatpush1.msra.mxu0 %v1365
      %1952 = vmatprep.subr.mxu0 0.0
      %1953 = vmatpush1.msra.mxu0 %v1370
      %1954 = vmatprep.subr.mxu0 0.0
      %1955 = vmatpush1.msra.mxu0 %v1375
      %1956 = vmatprep.subr.mxu0 0.0
      %1957 = vmatpush1.msra.mxu0 %v1380
      %1958 = vmatprep.subr.mxu0 0.0
      %1959 = vmatpush1.msra.mxu0 %v1385
      %1960 = vmatprep.subr.mxu0 0.0
      %1961 = vmatpush1.msra.mxu0 %v1390
      %1962 = vmatprep.subr.mxu0 0.0
      %1963 = vmatpush1.msra.mxu0 %v1395
      %1964 = vmatprep.subr.mxu0 0.0
      %1965 = vmatpush1.msra.mxu0 %v1400
      %1966 = vmatprep.subr.mxu0 0.0
      %1967 = vmatpush1.msra.mxu0 0.0
      %1968 = vmatprep.subr.mxu0 0.0
      %1969 = vmatpush1.msra.mxu0 0.0
      %1970 = vmatprep.subr.mxu0 0.0
      %1971 = vmatpush1.msra.mxu0 0.0
      %1972 = vmatprep.subr.mxu0 0.0
      %1973 = vmatpush1.msra.mxu0 0.0
      %1974 = vmatprep.subr.mxu0 0.0
      %1975 = vmatpush1.msra.mxu0 0.0
      %1976 = vmatprep.subr.mxu0 0.0
      %1977 = vmatpush1.msra.mxu0 0.0
      %1978 = vmatprep.subr.mxu0 0.0
      %1979 = vmatpush1.msra.mxu0 0.0
      %1980 = vmatprep.subr.mxu0 0.0
      %1981 = vmatpush1.msra.mxu0 0.0
      %1982 = vmatprep.subr.mxu0 0.0
      %1983 = vmatpush1.msra.mxu0 0.0
      %1984 = vmatprep.subr.mxu0 0.0
      %1985 = vmatpush1.msra.mxu0 0.0
      %1986 = vmatprep.subr.mxu0 0.0
      %1987 = vmatpush1.msra.mxu0 0.0
      %1988 = vmatprep.subr.mxu0 0.0
      %1989 = vmatpush1.msra.mxu0 0.0
      %1990 = vmatprep.subr.mxu0 0.0
      %1991 = vmatpush1.msra.mxu0 0.0
      %1992 = vmatprep.subr.mxu0 0.0
      %1993 = vmatpush1.msra.mxu0 0.0
      %1994 = vmatprep.subr.mxu0 0.0
      %1995 = vmatpush1.msra.mxu0 0.0
      %1996 = vmatprep.subr.mxu0 0.0
      %1997 = vmatpush1.msra.mxu0 0.0
      %1998 = vmatprep.subr.mxu0 0.0
      %1999 = vmatpush1.msra.mxu0 0.0
      %2000 = vmatprep.subr.mxu0 0.0
      %2001 = vmatpush1.msra.mxu0 0.0
      %2002 = vmatprep.subr.mxu0 0.0
      %2003 = vmatpush1.msra.mxu0 0.0
      %2004 = vmatprep.subr.mxu0 0.0
      %2005 = vmatpush1.msra.mxu0 0.0
      %2006 = vmatprep.subr.mxu0 0.0
      %2007 = vmatpush1.msra.mxu0 0.0
      %2008 = vmatprep.subr.mxu0 0.0
      %2009 = vmatpush1.msra.mxu0 0.0
      %2010 = vmatprep.subr.mxu0 0.0
      %2011 = vmatpush1.msra.mxu0 0.0
      %2012 = vmatprep.subr.mxu0 0.0
      %2013 = vmatpush1.msra.mxu0 0.0
      %2014 = vmatprep.mubr.f32.mxu0 0.0
      %2015 = vmatmul.mubr.f32.gmra.mrb[0].mxu0 %v1927
      %v2016 = vpop.f32.mrb[0].mxu0
      %v2017 = vadd.f32 0.0, %v2016
      %v2018 = vpop.f32.mrb[0].mxu0
      %2019 = vmatprep.mubr.f32.mxu0 0.0
      %2020 = vmatmul.mubr.f32.gmra.mrb[0].mxu0 %v1930
      %v2021 = vpop.f32.mrb[0].mxu0
      %v2022 = vadd.f32 0.0, %v2021
      %v2023 = vpop.f32.mrb[0].mxu0
      %2024 = vmatprep.mubr.f32.mxu0 0.0
      %2025 = vmatmul.mubr.f32.gmra.mrb[0].mxu0 %v1933
      %v2026 = vpop.f32.mrb[0].mxu0
      %v2027 = vadd.f32 0.0, %v2026
      %v2028 = vpop.f32.mrb[0].mxu0
      %2029 = vmatprep.mubr.f32.mxu0 0.0
      %2030 = vmatmul.mubr.f32.gmra.mrb[0].mxu0 %v1936
      %v2031 = vpop.f32.mrb[0].mxu0
      %v2032 = vadd.f32 0.0, %v2031
      %v2033 = vpop.f32.mrb[0].mxu0
      %2034 = vmatprep.mubr.f32.mxu0 0.0
      %2035 = vmatmul.mubr.f32.gmra.mrb[0].mxu0 %v1939
      %v2036 = vpop.f32.mrb[0].mxu0
      %v2037 = vadd.f32 0.0, %v2036
      %v2038 = vpop.f32.mrb[0].mxu0
      %2039 = vmatprep.mubr.f32.mxu0 0.0
      %2040 = vmatmul.mubr.f32.gmra.mrb[0].mxu0 %v1942
      %v2041 = vpop.f32.mrb[0].mxu0
      %v2042 = vadd.f32 0.0, %v2041
      %v2043 = vpop.f32.mrb[0].mxu0
      %2044 = vmatprep.mubr.f32.mxu0 0.0
      %2045 = vmatmul.mubr.f32.gmra.mrb[0].mxu0 %v1945
      %v2046 = vpop.f32.mrb[0].mxu0
      %v2047 = vadd.f32 0.0, %v2046
      %v2048 = vpop.f32.mrb[0].mxu0
      %2049 = vmatprep.mubr.f32.mxu0 0.0
      %2050 = vmatmul.mubr.f32.gmra.mrb[0].mxu0 %v1948
      %v2051 = vpop.f32.mrb[0].mxu0
      %v2052 = vadd.f32 0.0, %v2051
      %v2053 = vpop.f32.mrb[0].mxu0
      %2054 = vdwg.mxu0
      %v2056 = vsel %vm1749, %v1918, 0
      %v2059 = vsel %vm1749, %v1919, 0
      %v2062 = vsel %vm1749, %v1920, 0
      %v2065 = vsel %vm1749, %v1921, 0
      %v2068 = vsel %vm1749, %v1922, 0
      %v2071 = vsel %vm1749, %v1923, 0
      %v2074 = vsel %vm1749, %v1924, 0
      %v2077 = vsel %vm1749, %v1925, 0
      %2079 = vmatprep.subr.mxu0 0.0
      %2080 = vmatpush1.msra.mxu0 %v1405
      %2081 = vmatprep.subr.mxu0 0.0
      %2082 = vmatpush1.msra.mxu0 %v1410
      %2083 = vmatprep.subr.mxu0 0.0
      %2084 = vmatpush1.msra.mxu0 %v1415
      %2085 = vmatprep.subr.mxu0 0.0
      %2086 = vmatpush1.msra.mxu0 %v1420
      %2087 = vmatprep.subr.mxu0 0.0
      %2088 = vmatpush1.msra.mxu0 %v1425
      %2089 = vmatprep.subr.mxu0 0.0
      %2090 = vmatpush1.msra.mxu0 %v1430
      %2091 = vmatprep.subr.mxu0 0.0
      %2092 = vmatpush1.msra.mxu0 %v1435
      %2093 = vmatprep.subr.mxu0 0.0
      %2094 = vmatpush1.msra.mxu0 %v1440
      %2095 = vmatprep.subr.mxu0 0.0
      %2096 = vmatpush1.msra.mxu0 0.0
      %2097 = vmatprep.subr.mxu0 0.0
      %2098 = vmatpush1.msra.mxu0 0.0
      %2099 = vmatprep.subr.mxu0 0.0
      %2100 = vmatpush1.msra.mxu0 0.0
      %2101 = vmatprep.subr.mxu0 0.0
      %2102 = vmatpush1.msra.mxu0 0.0
      %2103 = vmatprep.subr.mxu0 0.0
      %2104 = vmatpush1.msra.mxu0 0.0
      %2105 = vmatprep.subr.mxu0 0.0
      %2106 = vmatpush1.msra.mxu0 0.0
      %2107 = vmatprep.subr.mxu0 0.0
      %2108 = vmatpush1.msra.mxu0 0.0
      %2109 = vmatprep.subr.mxu0 0.0
      %2110 = vmatpush1.msra.mxu0 0.0
      %2111 = vmatprep.subr.mxu0 0.0
      %2112 = vmatpush1.msra.mxu0 0.0
      %2113 = vmatprep.subr.mxu0 0.0
      %2114 = vmatpush1.msra.mxu0 0.0
      %2115 = vmatprep.subr.mxu0 0.0
      %2116 = vmatpush1.msra.mxu0 0.0
      %2117 = vmatprep.subr.mxu0 0.0
      %2118 = vmatpush1.msra.mxu0 0.0
      %2119 = vmatprep.subr.mxu0 0.0
      %2120 = vmatpush1.msra.mxu0 0.0
      %2121 = vmatprep.subr.mxu0 0.0
      %2122 = vmatpush1.msra.mxu0 0.0
      %2123 = vmatprep.subr.mxu0 0.0
      %2124 = vmatpush1.msra.mxu0 0.0
      %2125 = vmatprep.subr.mxu0 0.0
      %2126 = vmatpush1.msra.mxu0 0.0
      %2127 = vmatprep.subr.mxu0 0.0
      %2128 = vmatpush1.msra.mxu0 0.0
      %2129 = vmatprep.subr.mxu0 0.0
      %2130 = vmatpush1.msra.mxu0 0.0
      %2131 = vmatprep.subr.mxu0 0.0
      %2132 = vmatpush1.msra.mxu0 0.0
      %2133 = vmatprep.subr.mxu0 0.0
      %2134 = vmatpush1.msra.mxu0 0.0
      %2135 = vmatprep.subr.mxu0 0.0
      %2136 = vmatpush1.msra.mxu0 0.0
      %2137 = vmatprep.subr.mxu0 0.0
      %2138 = vmatpush1.msra.mxu0 0.0
      %2139 = vmatprep.subr.mxu0 0.0
      %2140 = vmatpush1.msra.mxu0 0.0
      %2141 = vmatprep.subr.mxu0 0.0
      %2142 = vmatpush1.msra.mxu0 0.0
      %2143 = vmatprep.mubr.f32.mxu0 0.0
      %2144 = vmatmul.mubr.f32.gmra.mrb[0].mxu0 %v2056
      %v2145 = vpop.f32.mrb[0].mxu0
      %v2146 = vadd.f32 0.0, %v2145
      %v2147 = vpop.f32.mrb[0].mxu0
      %2148 = vmatprep.mubr.f32.mxu0 0.0
      %2149 = vmatmul.mubr.f32.gmra.mrb[0].mxu0 %v2059
      %v2150 = vpop.f32.mrb[0].mxu0
      %v2151 = vadd.f32 0.0, %v2150
      %v2152 = vpop.f32.mrb[0].mxu0
      %2153 = vmatprep.mubr.f32.mxu0 0.0
      %2154 = vmatmul.mubr.f32.gmra.mrb[0].mxu0 %v2062
      %v2155 = vpop.f32.mrb[0].mxu0
      %v2156 = vadd.f32 0.0, %v2155
      %v2157 = vpop.f32.mrb[0].mxu0
      %2158 = vmatprep.mubr.f32.mxu0 0.0
      %2159 = vmatmul.mubr.f32.gmra.mrb[0].mxu0 %v2065
      %v2160 = vpop.f32.mrb[0].mxu0
      %v2161 = vadd.f32 0.0, %v2160
      %v2162 = vpop.f32.mrb[0].mxu0
      %2163 = vmatprep.mubr.f32.mxu0 0.0
      %2164 = vmatmul.mubr.f32.gmra.mrb[0].mxu0 %v2068
      %v2165 = vpop.f32.mrb[0].mxu0
      %v2166 = vadd.f32 0.0, %v2165
      %v2167 = vpop.f32.mrb[0].mxu0
      %2168 = vmatprep.mubr.f32.mxu0 0.0
      %2169 = vmatmul.mubr.f32.gmra.mrb[0].mxu0 %v2071
      %v2170 = vpop.f32.mrb[0].mxu0
      %v2171 = vadd.f32 0.0, %v2170
      %v2172 = vpop.f32.mrb[0].mxu0
      %2173 = vmatprep.mubr.f32.mxu0 0.0
      %2174 = vmatmul.mubr.f32.gmra.mrb[0].mxu0 %v2074
      %v2175 = vpop.f32.mrb[0].mxu0
      %v2176 = vadd.f32 0.0, %v2175
      %v2177 = vpop.f32.mrb[0].mxu0
      %2178 = vmatprep.mubr.f32.mxu0 0.0
      %2179 = vmatmul.mubr.f32.gmra.mrb[0].mxu0 %v2077
      %v2180 = vpop.f32.mrb[0].mxu0
      %v2181 = vadd.f32 0.0, %v2180
      %v2182 = vpop.f32.mrb[0].mxu0
      %2183 = vdwg.mxu0
      %v2184 = vld [vmem:[%s769] sm:$0xff]
      %v2185 = vld [vmem:[%s769 + $0x8] sm:$0xff]
      %v2186 = vld [vmem:[%s769 + $0x10] sm:$0xff]
      %v2187 = vld [vmem:[%s769 + $0x18] sm:$0xff]
      %v2188 = vld [vmem:[%s772] sm:$0x1]
      %v2190 = vlaneseq
      %v2191 = vshrl.u32 %v2190, 7
      %v2192 = vsub.s32 0, %v2191
      %v2193 = vrot.slane %v2188, %v2192
      %v2196 = vsel %vm889, %v2017, 0
      %v2199 = vsel %vm889, %v2022, 0
      %v2202 = vsel %vm889, %v2027, 0
      %v2205 = vsel %vm889, %v2032, 0
      %v2208 = vsel %vm889, %v2037, 0
      %v2211 = vsel %vm889, %v2042, 0
      %v2214 = vsel %vm889, %v2047, 0
      %v2217 = vsel %vm889, %v2052, 0
      %v2220 = vsel %vm889, %v2146, 0
      %v2223 = vsel %vm889, %v2151, 0
      %v2226 = vsel %vm889, %v2156, 0
      %v2229 = vsel %vm889, %v2161, 0
      %v2232 = vsel %vm889, %v2166, 0
      %v2235 = vsel %vm889, %v2171, 0
      %v2238 = vsel %vm889, %v2176, 0
      %v2241 = vsel %vm889, %v2181, 0
      %2243 = vmatprep.subr.mxu0 0.0
      %2244 = vmatpush1.msra.mxu0 %v2184
      %2245 = vmatprep.subr.mxu0 0.0
      %2246 = vmatpush1.msra.mxu0 %v2185
      %2247 = vmatprep.subr.mxu0 0.0
      %2248 = vmatpush1.msra.mxu0 %v2186
      %2249 = vmatprep.subr.mxu0 0.0
      %2250 = vmatpush1.msra.mxu0 %v2187
      %2251 = vmatprep.subr.mxu0 0.0
      %2252 = vmatpush1.msra.mxu0 0.0
      %2253 = vmatprep.subr.mxu0 0.0
      %2254 = vmatpush1.msra.mxu0 0.0
      %2255 = vmatprep.subr.mxu0 0.0
      %2256 = vmatpush1.msra.mxu0 0.0
      %2257 = vmatprep.subr.mxu0 0.0
      %2258 = vmatpush1.msra.mxu0 0.0
      %2259 = vmatprep.subr.mxu0 0.0
      %2260 = vmatpush1.msra.mxu0 0.0
      %2261 = vmatprep.subr.mxu0 0.0
      %2262 = vmatpush1.msra.mxu0 0.0
      %2263 = vmatprep.subr.mxu0 0.0
      %2264 = vmatpush1.msra.mxu0 0.0
      %2265 = vmatprep.subr.mxu0 0.0
      %2266 = vmatpush1.msra.mxu0 0.0
      %2267 = vmatprep.subr.mxu0 0.0
      %2268 = vmatpush1.msra.mxu0 0.0
      %2269 = vmatprep.subr.mxu0 0.0
      %2270 = vmatpush1.msra.mxu0 0.0
      %2271 = vmatprep.subr.mxu0 0.0
      %2272 = vmatpush1.msra.mxu0 0.0
      %2273 = vmatprep.subr.mxu0 0.0
      %2274 = vmatpush1.msra.mxu0 0.0
      %2275 = vmatprep.subr.mxu0 0.0
      %2276 = vmatpush1.msra.mxu0 0.0
      %2277 = vmatprep.subr.mxu0 0.0
      %2278 = vmatpush1.msra.mxu0 0.0
      %2279 = vmatprep.subr.mxu0 0.0
      %2280 = vmatpush1.msra.mxu0 0.0
      %2281 = vmatprep.subr.mxu0 0.0
      %2282 = vmatpush1.msra.mxu0 0.0
      %2283 = vmatprep.subr.mxu0 0.0
      %2284 = vmatpush1.msra.mxu0 0.0
      %2285 = vmatprep.subr.mxu0 0.0
      %2286 = vmatpush1.msra.mxu0 0.0
      %2287 = vmatprep.subr.mxu0 0.0
      %2288 = vmatpush1.msra.mxu0 0.0
      %2289 = vmatprep.subr.mxu0 0.0
      %2290 = vmatpush1.msra.mxu0 0.0
      %2291 = vmatprep.subr.mxu0 0.0
      %2292 = vmatpush1.msra.mxu0 0.0
      %2293 = vmatprep.subr.mxu0 0.0
      %2294 = vmatpush1.msra.mxu0 0.0
      %2295 = vmatprep.subr.mxu0 0.0
      %2296 = vmatpush1.msra.mxu0 0.0
      %2297 = vmatprep.subr.mxu0 0.0
      %2298 = vmatpush1.msra.mxu0 0.0
      %2299 = vmatprep.subr.mxu0 0.0
      %2300 = vmatpush1.msra.mxu0 0.0
      %2301 = vmatprep.subr.mxu0 0.0
      %2302 = vmatpush1.msra.mxu0 0.0
      %2303 = vmatprep.subr.mxu0 0.0
      %2304 = vmatpush1.msra.mxu0 0.0
      %2305 = vmatprep.subr.mxu0 0.0
      %2306 = vmatpush1.msra.mxu0 0.0
      %2307 = vmatprep.mubr.f32.mxu0 0.0
      %2308 = vmatmul.mubr.f32.gmra.mrb[0].mxu0 %v2196
      %v2309 = vpop.f32.mrb[0].mxu0
      %v2310 = vadd.f32 %v2193, %v2309
      %v2311 = vpop.f32.mrb[0].mxu0
      %2312 = vmatprep.mubr.f32.mxu0 0.0
      %2313 = vmatmul.mubr.f32.gmra.mrb[0].mxu0 %v2199
      %v2314 = vpop.f32.mrb[0].mxu0
      %v2315 = vadd.f32 %v2193, %v2314
      %v2316 = vpop.f32.mrb[0].mxu0
      %2317 = vmatprep.mubr.f32.mxu0 0.0
      %2318 = vmatmul.mubr.f32.gmra.mrb[0].mxu0 %v2202
      %v2319 = vpop.f32.mrb[0].mxu0
      %v2320 = vadd.f32 %v2193, %v2319
      %v2321 = vpop.f32.mrb[0].mxu0
      %2322 = vmatprep.mubr.f32.mxu0 0.0
      %2323 = vmatmul.mubr.f32.gmra.mrb[0].mxu0 %v2205
      %v2324 = vpop.f32.mrb[0].mxu0
      %v2325 = vadd.f32 %v2193, %v2324
      %v2326 = vpop.f32.mrb[0].mxu0
      %2327 = vmatprep.mubr.f32.mxu0 0.0
      %2328 = vmatmul.mubr.f32.gmra.mrb[0].mxu0 %v2208
      %v2329 = vpop.f32.mrb[0].mxu0
      %v2330 = vadd.f32 %v2193, %v2329
      %v2331 = vpop.f32.mrb[0].mxu0
      %2332 = vmatprep.mubr.f32.mxu0 0.0
      %2333 = vmatmul.mubr.f32.gmra.mrb[0].mxu0 %v2211
      %v2334 = vpop.f32.mrb[0].mxu0
      %v2335 = vadd.f32 %v2193, %v2334
      %v2336 = vpop.f32.mrb[0].mxu0
      %2337 = vmatprep.mubr.f32.mxu0 0.0
      %2338 = vmatmul.mubr.f32.gmra.mrb[0].mxu0 %v2214
      %v2339 = vpop.f32.mrb[0].mxu0
      %v2340 = vadd.f32 %v2193, %v2339
      %v2341 = vpop.f32.mrb[0].mxu0
      %2342 = vmatprep.mubr.f32.mxu0 0.0
      %2343 = vmatmul.mubr.f32.gmra.mrb[0].mxu0 %v2217
      %v2344 = vpop.f32.mrb[0].mxu0
      %v2345 = vadd.f32 %v2193, %v2344
      %v2346 = vpop.f32.mrb[0].mxu0
      %2347 = vmatprep.mubr.f32.mxu0 0.0
      %2348 = vmatmul.mubr.f32.gmra.mrb[0].mxu0 %v2220
      %v2349 = vpop.f32.mrb[0].mxu0
      %v2350 = vadd.f32 %v2193, %v2349
      %v2351 = vpop.f32.mrb[0].mxu0
      %2352 = vmatprep.mubr.f32.mxu0 0.0
      %2353 = vmatmul.mubr.f32.gmra.mrb[0].mxu0 %v2223
      %v2354 = vpop.f32.mrb[0].mxu0
      %v2355 = vadd.f32 %v2193, %v2354
      %v2356 = vpop.f32.mrb[0].mxu0
      %2357 = vmatprep.mubr.f32.mxu0 0.0
      %2358 = vmatmul.mubr.f32.gmra.mrb[0].mxu0 %v2226
      %v2359 = vpop.f32.mrb[0].mxu0
      %v2360 = vadd.f32 %v2193, %v2359
      %v2361 = vpop.f32.mrb[0].mxu0
      %2362 = vmatprep.mubr.f32.mxu0 0.0
      %2363 = vmatmul.mubr.f32.gmra.mrb[0].mxu0 %v2229
      %v2364 = vpop.f32.mrb[0].mxu0
      %v2365 = vadd.f32 %v2193, %v2364
      %v2366 = vpop.f32.mrb[0].mxu0
      %2367 = vmatprep.mubr.f32.mxu0 0.0
      %2368 = vmatmul.mubr.f32.gmra.mrb[0].mxu0 %v2232
      %v2369 = vpop.f32.mrb[0].mxu0
      %v2370 = vadd.f32 %v2193, %v2369
      %v2371 = vpop.f32.mrb[0].mxu0
      %2372 = vmatprep.mubr.f32.mxu0 0.0
      %2373 = vmatmul.mubr.f32.gmra.mrb[0].mxu0 %v2235
      %v2374 = vpop.f32.mrb[0].mxu0
      %v2375 = vadd.f32 %v2193, %v2374
      %v2376 = vpop.f32.mrb[0].mxu0
      %2377 = vmatprep.mubr.f32.mxu0 0.0
      %2378 = vmatmul.mubr.f32.gmra.mrb[0].mxu0 %v2238
      %v2379 = vpop.f32.mrb[0].mxu0
      %v2380 = vadd.f32 %v2193, %v2379
      %v2381 = vpop.f32.mrb[0].mxu0
      %2382 = vmatprep.mubr.f32.mxu0 0.0
      %2383 = vmatmul.mubr.f32.gmra.mrb[0].mxu0 %v2241
      %v2384 = vpop.f32.mrb[0].mxu0
      %v2385 = vadd.f32 %v2193, %v2384
      %v2386 = vpop.f32.mrb[0].mxu0
      %2387 = vdwg.mxu0
      %v2388 = vadd.f32 %v838, %v2310
      %v2389 = vadd.f32 %v839, %v2315
      %v2390 = vadd.f32 %v840, %v2320
      %v2391 = vadd.f32 %v841, %v2325
      %v2392 = vadd.f32 %v842, %v2330
      %v2393 = vadd.f32 %v843, %v2335
      %v2394 = vadd.f32 %v844, %v2340
      %v2395 = vadd.f32 %v845, %v2345
      %v2396 = vadd.f32 %v846, %v2350
      %v2397 = vadd.f32 %v847, %v2355
      %v2398 = vadd.f32 %v848, %v2360
      %v2399 = vadd.f32 %v849, %v2365
      %v2400 = vadd.f32 %v850, %v2370
      %v2401 = vadd.f32 %v851, %v2375
      %v2402 = vadd.f32 %v852, %v2380
      %v2403 = vadd.f32 %v853, %v2385
      %v2404 = vsel %vm889, %v2388, 0.0
      %2405 = vadd.xlane.f32.xlu0 %v2404
      %v2406 = vpop.xlane.xlu0 %2405
      %v2407 = vsel %vm889, %v2389, 0.0
      %2408 = vadd.xlane.f32.xlu0 %v2407
      %v2409 = vpop.xlane.xlu0 %2408
      %v2410 = vsel %vm889, %v2390, 0.0
      %2411 = vadd.xlane.f32.xlu0 %v2410
      %v2412 = vpop.xlane.xlu0 %2411
      %v2413 = vsel %vm889, %v2391, 0.0
      %2414 = vadd.xlane.f32.xlu0 %v2413
      %v2415 = vpop.xlane.xlu0 %2414
      %v2416 = vsel %vm889, %v2392, 0.0
      %2417 = vadd.xlane.f32.xlu0 %v2416
      %v2418 = vpop.xlane.xlu0 %2417
      %v2419 = vsel %vm889, %v2393, 0.0
      %2420 = vadd.xlane.f32.xlu0 %v2419
      %v2421 = vpop.xlane.xlu0 %2420
      %v2422 = vsel %vm889, %v2394, 0.0
      %2423 = vadd.xlane.f32.xlu0 %v2422
      %v2424 = vpop.xlane.xlu0 %2423
      %v2425 = vsel %vm889, %v2395, 0.0
      %2426 = vadd.xlane.f32.xlu0 %v2425
      %v2427 = vpop.xlane.xlu0 %2426
      %v2428 = vsel %vm889, %v2396, 0.0
      %2429 = vadd.xlane.f32.xlu0 %v2428
      %v2430 = vpop.xlane.xlu0 %2429
      %v2431 = vsel %vm889, %v2397, 0.0
      %2432 = vadd.xlane.f32.xlu0 %v2431
      %v2433 = vpop.xlane.xlu0 %2432
      %v2434 = vsel %vm889, %v2398, 0.0
      %2435 = vadd.xlane.f32.xlu0 %v2434
      %v2436 = vpop.xlane.xlu0 %2435
      %v2437 = vsel %vm889, %v2399, 0.0
      %2438 = vadd.xlane.f32.xlu0 %v2437
      %v2439 = vpop.xlane.xlu0 %2438
      %v2440 = vsel %vm889, %v2400, 0.0
      %2441 = vadd.xlane.f32.xlu0 %v2440
      %v2442 = vpop.xlane.xlu0 %2441
      %v2443 = vsel %vm889, %v2401, 0.0
      %2444 = vadd.xlane.f32.xlu0 %v2443
      %v2445 = vpop.xlane.xlu0 %2444
      %v2446 = vsel %vm889, %v2402, 0.0
      %2447 = vadd.xlane.f32.xlu0 %v2446
      %v2448 = vpop.xlane.xlu0 %2447
      %v2449 = vsel %vm889, %v2403, 0.0
      %2450 = vadd.xlane.f32.xlu0 %v2449
      %v2451 = vpop.xlane.xlu0 %2450
      %v2452 = vrcp.pop 32.0
      %v2453 = vmul.f32 %v2406, %v2452
      %v2454 = vmul.f32 %v2409, %v2452
      %v2455 = vmul.f32 %v2412, %v2452
      %v2456 = vmul.f32 %v2415, %v2452
      %v2457 = vmul.f32 %v2418, %v2452
      %v2458 = vmul.f32 %v2421, %v2452
      %v2459 = vmul.f32 %v2424, %v2452
      %v2460 = vmul.f32 %v2427, %v2452
      %v2461 = vmul.f32 %v2430, %v2452
      %v2462 = vmul.f32 %v2433, %v2452
      %v2463 = vmul.f32 %v2436, %v2452
      %v2464 = vmul.f32 %v2439, %v2452
      %v2465 = vmul.f32 %v2442, %v2452
      %v2466 = vmul.f32 %v2445, %v2452
      %v2467 = vmul.f32 %v2448, %v2452
      %v2468 = vmul.f32 %v2451, %v2452
      %v2469 = vsub.f32 %v2388, %v2453
      %v2470 = vsub.f32 %v2389, %v2454
      %v2471 = vsub.f32 %v2390, %v2455
      %v2472 = vsub.f32 %v2391, %v2456
      %v2473 = vsub.f32 %v2392, %v2457
      %v2474 = vsub.f32 %v2393, %v2458
      %v2475 = vsub.f32 %v2394, %v2459
      %v2476 = vsub.f32 %v2395, %v2460
      %v2477 = vsub.f32 %v2396, %v2461
      %v2478 = vsub.f32 %v2397, %v2462
      %v2479 = vsub.f32 %v2398, %v2463
      %v2480 = vsub.f32 %v2399, %v2464
      %v2481 = vsub.f32 %v2400, %v2465
      %v2482 = vsub.f32 %v2401, %v2466
      %v2483 = vsub.f32 %v2402, %v2467
      %v2484 = vsub.f32 %v2403, %v2468
      %v2485 = vmul.f32 %v2469, %v2469
      %v2486 = vmul.f32 %v2470, %v2470
      %v2487 = vmul.f32 %v2471, %v2471
      %v2488 = vmul.f32 %v2472, %v2472
      %v2489 = vmul.f32 %v2473, %v2473
      %v2490 = vmul.f32 %v2474, %v2474
      %v2491 = vmul.f32 %v2475, %v2475
      %v2492 = vmul.f32 %v2476, %v2476
      %v2493 = vmul.f32 %v2477, %v2477
      %v2494 = vmul.f32 %v2478, %v2478
      %v2495 = vmul.f32 %v2479, %v2479
      %v2496 = vmul.f32 %v2480, %v2480
      %v2497 = vmul.f32 %v2481, %v2481
      %v2498 = vmul.f32 %v2482, %v2482
      %v2499 = vmul.f32 %v2483, %v2483
      %v2500 = vmul.f32 %v2484, %v2484
      %v2501 = vsel %vm889, %v2485, 0.0
      %2502 = vadd.xlane.f32.xlu0 %v2501
      %v2503 = vpop.xlane.xlu0 %2502
      %v2504 = vsel %vm889, %v2486, 0.0
      %2505 = vadd.xlane.f32.xlu0 %v2504
      %v2506 = vpop.xlane.xlu0 %2505
      %v2507 = vsel %vm889, %v2487, 0.0
      %2508 = vadd.xlane.f32.xlu0 %v2507
      %v2509 = vpop.xlane.xlu0 %2508
      %v2510 = vsel %vm889, %v2488, 0.0
      %2511 = vadd.xlane.f32.xlu0 %v2510
      %v2512 = vpop.xlane.xlu0 %2511
      %v2513 = vsel %vm889, %v2489, 0.0
      %2514 = vadd.xlane.f32.xlu0 %v2513
      %v2515 = vpop.xlane.xlu0 %2514
      %v2516 = vsel %vm889, %v2490, 0.0
      %2517 = vadd.xlane.f32.xlu0 %v2516
      %v2518 = vpop.xlane.xlu0 %2517
      %v2519 = vsel %vm889, %v2491, 0.0
      %2520 = vadd.xlane.f32.xlu0 %v2519
      %v2521 = vpop.xlane.xlu0 %2520
      %v2522 = vsel %vm889, %v2492, 0.0
      %2523 = vadd.xlane.f32.xlu0 %v2522
      %v2524 = vpop.xlane.xlu0 %2523
      %v2525 = vsel %vm889, %v2493, 0.0
      %2526 = vadd.xlane.f32.xlu0 %v2525
      %v2527 = vpop.xlane.xlu0 %2526
      %v2528 = vsel %vm889, %v2494, 0.0
      %2529 = vadd.xlane.f32.xlu0 %v2528
      %v2530 = vpop.xlane.xlu0 %2529
      %v2531 = vsel %vm889, %v2495, 0.0
      %2532 = vadd.xlane.f32.xlu0 %v2531
      %v2533 = vpop.xlane.xlu0 %2532
      %v2534 = vsel %vm889, %v2496, 0.0
      %2535 = vadd.xlane.f32.xlu0 %v2534
      %v2536 = vpop.xlane.xlu0 %2535
      %v2537 = vsel %vm889, %v2497, 0.0
      %2538 = vadd.xlane.f32.xlu0 %v2537
      %v2539 = vpop.xlane.xlu0 %2538
      %v2540 = vsel %vm889, %v2498, 0.0
      %2541 = vadd.xlane.f32.xlu0 %v2540
      %v2542 = vpop.xlane.xlu0 %2541
      %v2543 = vsel %vm889, %v2499, 0.0
      %2544 = vadd.xlane.f32.xlu0 %v2543
      %v2545 = vpop.xlane.xlu0 %2544
      %v2546 = vsel %vm889, %v2500, 0.0
      %2547 = vadd.xlane.f32.xlu0 %v2546
      %v2548 = vpop.xlane.xlu0 %2547
      %v2549 = vmul.f32 %v2503, %v2452
      %v2550 = vmul.f32 %v2506, %v2452
      %v2551 = vmul.f32 %v2509, %v2452
      %v2552 = vmul.f32 %v2512, %v2452
      %v2553 = vmul.f32 %v2515, %v2452
      %v2554 = vmul.f32 %v2518, %v2452
      %v2555 = vmul.f32 %v2521, %v2452
      %v2556 = vmul.f32 %v2524, %v2452
      %v2557 = vmul.f32 %v2527, %v2452
      %v2558 = vmul.f32 %v2530, %v2452
      %v2559 = vmul.f32 %v2533, %v2452
      %v2560 = vmul.f32 %v2536, %v2452
      %v2561 = vmul.f32 %v2539, %v2452
      %v2562 = vmul.f32 %v2542, %v2452
      %v2563 = vmul.f32 %v2545, %v2452
      %v2564 = vmul.f32 %v2548, %v2452
      %v2565 = vadd.f32 %v2549, 1e-05
      %v2566 = vadd.f32 %v2550, 1e-05
      %v2567 = vadd.f32 %v2551, 1e-05
      %v2568 = vadd.f32 %v2552, 1e-05
      %v2569 = vadd.f32 %v2553, 1e-05
      %v2570 = vadd.f32 %v2554, 1e-05
      %v2571 = vadd.f32 %v2555, 1e-05
      %v2572 = vadd.f32 %v2556, 1e-05
      %v2573 = vadd.f32 %v2557, 1e-05
      %v2574 = vadd.f32 %v2558, 1e-05
      %v2575 = vadd.f32 %v2559, 1e-05
      %v2576 = vadd.f32 %v2560, 1e-05
      %v2577 = vadd.f32 %v2561, 1e-05
      %v2578 = vadd.f32 %v2562, 1e-05
      %v2579 = vadd.f32 %v2563, 1e-05
      %v2580 = vadd.f32 %v2564, 1e-05
      %v2581 = vrsqrt.pop %v2565
      %v2582 = vrsqrt.pop %v2566
      %v2583 = vrsqrt.pop %v2567
      %v2584 = vrsqrt.pop %v2568
      %v2585 = vrsqrt.pop %v2569
      %v2586 = vrsqrt.pop %v2570
      %v2587 = vrsqrt.pop %v2571
      %v2588 = vrsqrt.pop %v2572
      %v2589 = vrsqrt.pop %v2573
      %v2590 = vrsqrt.pop %v2574
      %v2591 = vrsqrt.pop %v2575
      %v2592 = vrsqrt.pop %v2576
      %v2593 = vrsqrt.pop %v2577
      %v2594 = vrsqrt.pop %v2578
      %v2595 = vrsqrt.pop %v2579
      %v2596 = vrsqrt.pop %v2580
      %v2597 = vmul.f32 %v2469, %v2581
      %v2598 = vmul.f32 %v2470, %v2582
      %v2599 = vmul.f32 %v2471, %v2583
      %v2600 = vmul.f32 %v2472, %v2584
      %v2601 = vmul.f32 %v2473, %v2585
      %v2602 = vmul.f32 %v2474, %v2586
      %v2603 = vmul.f32 %v2475, %v2587
      %v2604 = vmul.f32 %v2476, %v2588
      %v2605 = vmul.f32 %v2477, %v2589
      %v2606 = vmul.f32 %v2478, %v2590
      %v2607 = vmul.f32 %v2479, %v2591
      %v2608 = vmul.f32 %v2480, %v2592
      %v2609 = vmul.f32 %v2481, %v2593
      %v2610 = vmul.f32 %v2482, %v2594
      %v2611 = vmul.f32 %v2483, %v2595
      %v2612 = vmul.f32 %v2484, %v2596
      %v2613 = vld [vmem:[%s775] sm:$0x1]
      %v2615 = vlaneseq
      %v2616 = vshrl.u32 %v2615, 7
      %v2617 = vsub.s32 0, %v2616
      %v2618 = vrot.slane %v2613, %v2617
      %v2620 = vmul.f32 %v2597, %v2618
      %v2621 = vmul.f32 %v2598, %v2618
      %v2622 = vmul.f32 %v2599, %v2618
      %v2623 = vmul.f32 %v2600, %v2618
      %v2624 = vmul.f32 %v2601, %v2618
      %v2625 = vmul.f32 %v2602, %v2618
      %v2626 = vmul.f32 %v2603, %v2618
      %v2627 = vmul.f32 %v2604, %v2618
      %v2628 = vmul.f32 %v2605, %v2618
      %v2629 = vmul.f32 %v2606, %v2618
      %v2630 = vmul.f32 %v2607, %v2618
      %v2631 = vmul.f32 %v2608, %v2618
      %v2632 = vmul.f32 %v2609, %v2618
      %v2633 = vmul.f32 %v2610, %v2618
      %v2634 = vmul.f32 %v2611, %v2618
      %v2635 = vmul.f32 %v2612, %v2618
      %v2636 = vld [vmem:[%s778] sm:$0x1]
      %v2638 = vlaneseq
      %v2639 = vshrl.u32 %v2638, 7
      %v2640 = vsub.s32 0, %v2639
      %v2641 = vrot.slane %v2636, %v2640
      %v2643 = vadd.f32 %v2620, %v2641
      %v2644 = vadd.f32 %v2621, %v2641
      %v2645 = vadd.f32 %v2622, %v2641
      %v2646 = vadd.f32 %v2623, %v2641
      %v2647 = vadd.f32 %v2624, %v2641
      %v2648 = vadd.f32 %v2625, %v2641
      %v2649 = vadd.f32 %v2626, %v2641
      %v2650 = vadd.f32 %v2627, %v2641
      %v2651 = vadd.f32 %v2628, %v2641
      %v2652 = vadd.f32 %v2629, %v2641
      %v2653 = vadd.f32 %v2630, %v2641
      %v2654 = vadd.f32 %v2631, %v2641
      %v2655 = vadd.f32 %v2632, %v2641
      %v2656 = vadd.f32 %v2633, %v2641
      %v2657 = vadd.f32 %v2634, %v2641
      %v2658 = vadd.f32 %v2635, %v2641
      %v2659 = vld [vmem:[%s783] sm:$0xff]
      %v2660 = vld [vmem:[%s783 + $0x8] sm:$0xff]
      %v2661 = vld [vmem:[%s783 + $0x10] sm:$0xff]
      %v2662 = vld [vmem:[%s783 + $0x18] sm:$0xff]
      %v2663 = vld [vmem:[%s786] sm:$0x1]
      %v2665 = vlaneseq
      %v2666 = vshrl.u32 %v2665, 7
      %v2667 = vsub.s32 0, %v2666
      %v2668 = vrot.slane %v2663, %v2667
      %v2671 = vsel %vm889, %v2643, 0
      %v2674 = vsel %vm889, %v2644, 0
      %v2677 = vsel %vm889, %v2645, 0
      %v2680 = vsel %vm889, %v2646, 0
      %v2683 = vsel %vm889, %v2647, 0
      %v2686 = vsel %vm889, %v2648, 0
      %v2689 = vsel %vm889, %v2649, 0
      %v2692 = vsel %vm889, %v2650, 0
      %v2695 = vsel %vm889, %v2651, 0
      %v2698 = vsel %vm889, %v2652, 0
      %v2701 = vsel %vm889, %v2653, 0
      %v2704 = vsel %vm889, %v2654, 0
      %v2707 = vsel %vm889, %v2655, 0
      %v2710 = vsel %vm889, %v2656, 0
      %v2713 = vsel %vm889, %v2657, 0
      %v2716 = vsel %vm889, %v2658, 0
      %2718 = vmatprep.subr.mxu0 0.0
      %2719 = vmatpush1.msra.mxu0 %v2659
      %2720 = vmatprep.subr.mxu0 0.0
      %2721 = vmatpush1.msra.mxu0 %v2660
      %2722 = vmatprep.subr.mxu0 0.0
      %2723 = vmatpush1.msra.mxu0 %v2661
      %2724 = vmatprep.subr.mxu0 0.0
      %2725 = vmatpush1.msra.mxu0 %v2662
      %2726 = vmatprep.subr.mxu0 0.0
      %2727 = vmatpush1.msra.mxu0 0.0
      %2728 = vmatprep.subr.mxu0 0.0
      %2729 = vmatpush1.msra.mxu0 0.0
      %2730 = vmatprep.subr.mxu0 0.0
      %2731 = vmatpush1.msra.mxu0 0.0
      %2732 = vmatprep.subr.mxu0 0.0
      %2733 = vmatpush1.msra.mxu0 0.0
      %2734 = vmatprep.subr.mxu0 0.0
      %2735 = vmatpush1.msra.mxu0 0.0
      %2736 = vmatprep.subr.mxu0 0.0
      %2737 = vmatpush1.msra.mxu0 0.0
      %2738 = vmatprep.subr.mxu0 0.0
      %2739 = vmatpush1.msra.mxu0 0.0
      %2740 = vmatprep.subr.mxu0 0.0
      %2741 = vmatpush1.msra.mxu0 0.0
      %2742 = vmatprep.subr.mxu0 0.0
      %2743 = vmatpush1.msra.mxu0 0.0
      %2744 = vmatprep.subr.mxu0 0.0
      %2745 = vmatpush1.msra.mxu0 0.0
      %2746 = vmatprep.subr.mxu0 0.0
      %2747 = vmatpush1.msra.mxu0 0.0
      %2748 = vmatprep.subr.mxu0 0.0
      %2749 = vmatpush1.msra.mxu0 0.0
      %2750 = vmatprep.subr.mxu0 0.0
      %2751 = vmatpush1.msra.mxu0 0.0
      %2752 = vmatprep.subr.mxu0 0.0
      %2753 = vmatpush1.msra.mxu0 0.0
      %2754 = vmatprep.subr.mxu0 0.0
      %2755 = vmatpush1.msra.mxu0 0.0
      %2756 = vmatprep.subr.mxu0 0.0
      %2757 = vmatpush1.msra.mxu0 0.0
      %2758 = vmatprep.subr.mxu0 0.0
      %2759 = vmatpush1.msra.mxu0 0.0
      %2760 = vmatprep.subr.mxu0 0.0
      %2761 = vmatpush1.msra.mxu0 0.0
      %2762 = vmatprep.subr.mxu0 0.0
      %2763 = vmatpush1.msra.mxu0 0.0
      %2764 = vmatprep.subr.mxu0 0.0
      %2765 = vmatpush1.msra.mxu0 0.0
      %2766 = vmatprep.subr.mxu0 0.0
      %2767 = vmatpush1.msra.mxu0 0.0
      %2768 = vmatprep.subr.mxu0 0.0
      %2769 = vmatpush1.msra.mxu0 0.0
      %2770 = vmatprep.subr.mxu0 0.0
      %2771 = vmatpush1.msra.mxu0 0.0
      %2772 = vmatprep.subr.mxu0 0.0
      %2773 = vmatpush1.msra.mxu0 0.0
      %2774 = vmatprep.subr.mxu0 0.0
      %2775 = vmatpush1.msra.mxu0 0.0
      %2776 = vmatprep.subr.mxu0 0.0
      %2777 = vmatpush1.msra.mxu0 0.0
      %2778 = vmatprep.subr.mxu0 0.0
      %2779 = vmatpush1.msra.mxu0 0.0
      %2780 = vmatprep.subr.mxu0 0.0
      %2781 = vmatpush1.msra.mxu0 0.0
      %2782 = vmatprep.mubr.f32.mxu0 0.0
      %2783 = vmatmul.mubr.f32.gmra.mrb[0].mxu0 %v2671
      %v2784 = vpop.f32.mrb[0].mxu0
      %v2785 = vadd.f32 %v2668, %v2784
      %v2786 = vpop.f32.mrb[0].mxu0
      %2787 = vmatprep.mubr.f32.mxu0 0.0
      %2788 = vmatmul.mubr.f32.gmra.mrb[0].mxu0 %v2674
      %v2789 = vpop.f32.mrb[0].mxu0
      %v2790 = vadd.f32 %v2668, %v2789
      %v2791 = vpop.f32.mrb[0].mxu0
      %2792 = vmatprep.mubr.f32.mxu0 0.0
      %2793 = vmatmul.mubr.f32.gmra.mrb[0].mxu0 %v2677
      %v2794 = vpop.f32.mrb[0].mxu0
      %v2795 = vadd.f32 %v2668, %v2794
      %v2796 = vpop.f32.mrb[0].mxu0
      %2797 = vmatprep.mubr.f32.mxu0 0.0
      %2798 = vmatmul.mubr.f32.gmra.mrb[0].mxu0 %v2680
      %v2799 = vpop.f32.mrb[0].mxu0
      %v2800 = vadd.f32 %v2668, %v2799
      %v2801 = vpop.f32.mrb[0].mxu0
      %2802 = vmatprep.mubr.f32.mxu0 0.0
      %2803 = vmatmul.mubr.f32.gmra.mrb[0].mxu0 %v2683
      %v2804 = vpop.f32.mrb[0].mxu0
      %v2805 = vadd.f32 %v2668, %v2804
      %v2806 = vpop.f32.mrb[0].mxu0
      %2807 = vmatprep.mubr.f32.mxu0 0.0
      %2808 = vmatmul.mubr.f32.gmra.mrb[0].mxu0 %v2686
      %v2809 = vpop.f32.mrb[0].mxu0
      %v2810 = vadd.f32 %v2668, %v2809
      %v2811 = vpop.f32.mrb[0].mxu0
      %2812 = vmatprep.mubr.f32.mxu0 0.0
      %2813 = vmatmul.mubr.f32.gmra.mrb[0].mxu0 %v2689
      %v2814 = vpop.f32.mrb[0].mxu0
      %v2815 = vadd.f32 %v2668, %v2814
      %v2816 = vpop.f32.mrb[0].mxu0
      %2817 = vmatprep.mubr.f32.mxu0 0.0
      %2818 = vmatmul.mubr.f32.gmra.mrb[0].mxu0 %v2692
      %v2819 = vpop.f32.mrb[0].mxu0
      %v2820 = vadd.f32 %v2668, %v2819
      %v2821 = vpop.f32.mrb[0].mxu0
      %2822 = vmatprep.mubr.f32.mxu0 0.0
      %2823 = vmatmul.mubr.f32.gmra.mrb[0].mxu0 %v2695
      %v2824 = vpop.f32.mrb[0].mxu0
      %v2825 = vadd.f32 %v2668, %v2824
      %v2826 = vpop.f32.mrb[0].mxu0
      %2827 = vmatprep.mubr.f32.mxu0 0.0
      %2828 = vmatmul.mubr.f32.gmra.mrb[0].mxu0 %v2698
      %v2829 = vpop.f32.mrb[0].mxu0
      %v2830 = vadd.f32 %v2668, %v2829
      %v2831 = vpop.f32.mrb[0].mxu0
      %2832 = vmatprep.mubr.f32.mxu0 0.0
      %2833 = vmatmul.mubr.f32.gmra.mrb[0].mxu0 %v2701
      %v2834 = vpop.f32.mrb[0].mxu0
      %v2835 = vadd.f32 %v2668, %v2834
      %v2836 = vpop.f32.mrb[0].mxu0
      %2837 = vmatprep.mubr.f32.mxu0 0.0
      %2838 = vmatmul.mubr.f32.gmra.mrb[0].mxu0 %v2704
      %v2839 = vpop.f32.mrb[0].mxu0
      %v2840 = vadd.f32 %v2668, %v2839
      %v2841 = vpop.f32.mrb[0].mxu0
      %2842 = vmatprep.mubr.f32.mxu0 0.0
      %2843 = vmatmul.mubr.f32.gmra.mrb[0].mxu0 %v2707
      %v2844 = vpop.f32.mrb[0].mxu0
      %v2845 = vadd.f32 %v2668, %v2844
      %v2846 = vpop.f32.mrb[0].mxu0
      %2847 = vmatprep.mubr.f32.mxu0 0.0
      %2848 = vmatmul.mubr.f32.gmra.mrb[0].mxu0 %v2710
      %v2849 = vpop.f32.mrb[0].mxu0
      %v2850 = vadd.f32 %v2668, %v2849
      %v2851 = vpop.f32.mrb[0].mxu0
      %2852 = vmatprep.mubr.f32.mxu0 0.0
      %2853 = vmatmul.mubr.f32.gmra.mrb[0].mxu0 %v2713
      %v2854 = vpop.f32.mrb[0].mxu0
      %v2855 = vadd.f32 %v2668, %v2854
      %v2856 = vpop.f32.mrb[0].mxu0
      %2857 = vmatprep.mubr.f32.mxu0 0.0
      %2858 = vmatmul.mubr.f32.gmra.mrb[0].mxu0 %v2716
      %v2859 = vpop.f32.mrb[0].mxu0
      %v2860 = vadd.f32 %v2668, %v2859
      %v2861 = vpop.f32.mrb[0].mxu0
      %2862 = vdwg.mxu0
      %v2863 = vmax.f32 %v2785, 0.0
      %v2864 = vmax.f32 %v2790, 0.0
      %v2865 = vmax.f32 %v2795, 0.0
      %v2866 = vmax.f32 %v2800, 0.0
      %v2867 = vmax.f32 %v2805, 0.0
      %v2868 = vmax.f32 %v2810, 0.0
      %v2869 = vmax.f32 %v2815, 0.0
      %v2870 = vmax.f32 %v2820, 0.0
      %v2871 = vmax.f32 %v2825, 0.0
      %v2872 = vmax.f32 %v2830, 0.0
      %v2873 = vmax.f32 %v2835, 0.0
      %v2874 = vmax.f32 %v2840, 0.0
      %v2875 = vmax.f32 %v2845, 0.0
      %v2876 = vmax.f32 %v2850, 0.0
      %v2877 = vmax.f32 %v2855, 0.0
      %v2878 = vmax.f32 %v2860, 0.0
      %v2879 = vld [vmem:[%s791] sm:$0xff]
      %v2880 = vld [vmem:[%s791 + $0x8] sm:$0xff]
      %v2881 = vld [vmem:[%s791 + $0x10] sm:$0xff]
      %v2882 = vld [vmem:[%s791 + $0x18] sm:$0xff]
      %v2883 = vld [vmem:[%s791 + $0x20] sm:$0xff]
      %v2884 = vld [vmem:[%s791 + $0x28] sm:$0xff]
      %v2885 = vld [vmem:[%s791 + $0x30] sm:$0xff]
      %v2886 = vld [vmem:[%s791 + $0x38] sm:$0xff]
      %v2887 = vld [vmem:[%s794] sm:$0x1]
      %v2889 = vlaneseq
      %v2890 = vshrl.u32 %v2889, 7
      %v2891 = vsub.s32 0, %v2890
      %v2892 = vrot.slane %v2887, %v2891
      %v2895 = vsel %vm1749, %v2863, 0
      %v2898 = vsel %vm1749, %v2864, 0
      %v2901 = vsel %vm1749, %v2865, 0
      %v2904 = vsel %vm1749, %v2866, 0
      %v2907 = vsel %vm1749, %v2867, 0
      %v2910 = vsel %vm1749, %v2868, 0
      %v2913 = vsel %vm1749, %v2869, 0
      %v2916 = vsel %vm1749, %v2870, 0
      %v2919 = vsel %vm1749, %v2871, 0
      %v2922 = vsel %vm1749, %v2872, 0
      %v2925 = vsel %vm1749, %v2873, 0
      %v2928 = vsel %vm1749, %v2874, 0
      %v2931 = vsel %vm1749, %v2875, 0
      %v2934 = vsel %vm1749, %v2876, 0
      %v2937 = vsel %vm1749, %v2877, 0
      %v2940 = vsel %vm1749, %v2878, 0
      %2942 = vmatprep.subr.mxu0 0.0
      %2943 = vmatpush1.msra.mxu0 %v2879
      %2944 = vmatprep.subr.mxu0 0.0
      %2945 = vmatpush1.msra.mxu0 %v2880
      %2946 = vmatprep.subr.mxu0 0.0
      %2947 = vmatpush1.msra.mxu0 %v2881
      %2948 = vmatprep.subr.mxu0 0.0
      %2949 = vmatpush1.msra.mxu0 %v2882
      %2950 = vmatprep.subr.mxu0 0.0
      %2951 = vmatpush1.msra.mxu0 %v2883
      %2952 = vmatprep.subr.mxu0 0.0
      %2953 = vmatpush1.msra.mxu0 %v2884
      %2954 = vmatprep.subr.mxu0 0.0
      %2955 = vmatpush1.msra.mxu0 %v2885
      %2956 = vmatprep.subr.mxu0 0.0
      %2957 = vmatpush1.msra.mxu0 %v2886
      %2958 = vmatprep.subr.mxu0 0.0
      %2959 = vmatpush1.msra.mxu0 0.0
      %2960 = vmatprep.subr.mxu0 0.0
      %2961 = vmatpush1.msra.mxu0 0.0
      %2962 = vmatprep.subr.mxu0 0.0
      %2963 = vmatpush1.msra.mxu0 0.0
      %2964 = vmatprep.subr.mxu0 0.0
      %2965 = vmatpush1.msra.mxu0 0.0
      %2966 = vmatprep.subr.mxu0 0.0
      %2967 = vmatpush1.msra.mxu0 0.0
      %2968 = vmatprep.subr.mxu0 0.0
      %2969 = vmatpush1.msra.mxu0 0.0
      %2970 = vmatprep.subr.mxu0 0.0
      %2971 = vmatpush1.msra.mxu0 0.0
      %2972 = vmatprep.subr.mxu0 0.0
      %2973 = vmatpush1.msra.mxu0 0.0
      %2974 = vmatprep.subr.mxu0 0.0
      %2975 = vmatpush1.msra.mxu0 0.0
      %2976 = vmatprep.subr.mxu0 0.0
      %2977 = vmatpush1.msra.mxu0 0.0
      %2978 = vmatprep.subr.mxu0 0.0
      %2979 = vmatpush1.msra.mxu0 0.0
      %2980 = vmatprep.subr.mxu0 0.0
      %2981 = vmatpush1.msra.mxu0 0.0
      %2982 = vmatprep.subr.mxu0 0.0
      %2983 = vmatpush1.msra.mxu0 0.0
      %2984 = vmatprep.subr.mxu0 0.0
      %2985 = vmatpush1.msra.mxu0 0.0
      %2986 = vmatprep.subr.mxu0 0.0
      %2987 = vmatpush1.msra.mxu0 0.0
      %2988 = vmatprep.subr.mxu0 0.0
      %2989 = vmatpush1.msra.mxu0 0.0
      %2990 = vmatprep.subr.mxu0 0.0
      %2991 = vmatpush1.msra.mxu0 0.0
      %2992 = vmatprep.subr.mxu0 0.0
      %2993 = vmatpush1.msra.mxu0 0.0
      %2994 = vmatprep.subr.mxu0 0.0
      %2995 = vmatpush1.msra.mxu0 0.0
      %2996 = vmatprep.subr.mxu0 0.0
      %2997 = vmatpush1.msra.mxu0 0.0
      %2998 = vmatprep.subr.mxu0 0.0
      %2999 = vmatpush1.msra.mxu0 0.0
      %3000 = vmatprep.subr.mxu0 0.0
      %3001 = vmatpush1.msra.mxu0 0.0
      %3002 = vmatprep.subr.mxu0 0.0
      %3003 = vmatpush1.msra.mxu0 0.0
      %3004 = vmatprep.subr.mxu0 0.0
      %3005 = vmatpush1.msra.mxu0 0.0
      %3006 = vmatprep.mubr.f32.mxu0 0.0
      %3007 = vmatmul.mubr.f32.gmra.mrb[0].mxu0 %v2895
      %v3008 = vpop.f32.mrb[0].mxu0
      %v3009 = vadd.f32 %v2892, %v3008
      %v3010 = vpop.f32.mrb[0].mxu0
      %3011 = vmatprep.mubr.f32.mxu0 0.0
      %3012 = vmatmul.mubr.f32.gmra.mrb[0].mxu0 %v2898
      %v3013 = vpop.f32.mrb[0].mxu0
      %v3014 = vadd.f32 %v2892, %v3013
      %v3015 = vpop.f32.mrb[0].mxu0
      %3016 = vmatprep.mubr.f32.mxu0 0.0
      %3017 = vmatmul.mubr.f32.gmra.mrb[0].mxu0 %v2901
      %v3018 = vpop.f32.mrb[0].mxu0
      %v3019 = vadd.f32 %v2892, %v3018
      %v3020 = vpop.f32.mrb[0].mxu0
      %3021 = vmatprep.mubr.f32.mxu0 0.0
      %3022 = vmatmul.mubr.f32.gmra.mrb[0].mxu0 %v2904
      %v3023 = vpop.f32.mrb[0].mxu0
      %v3024 = vadd.f32 %v2892, %v3023
      %v3025 = vpop.f32.mrb[0].mxu0
      %3026 = vmatprep.mubr.f32.mxu0 0.0
      %3027 = vmatmul.mubr.f32.gmra.mrb[0].mxu0 %v2907
      %v3028 = vpop.f32.mrb[0].mxu0
      %v3029 = vadd.f32 %v2892, %v3028
      %v3030 = vpop.f32.mrb[0].mxu0
      %3031 = vmatprep.mubr.f32.mxu0 0.0
      %3032 = vmatmul.mubr.f32.gmra.mrb[0].mxu0 %v2910
      %v3033 = vpop.f32.mrb[0].mxu0
      %v3034 = vadd.f32 %v2892, %v3033
      %v3035 = vpop.f32.mrb[0].mxu0
      %3036 = vmatprep.mubr.f32.mxu0 0.0
      %3037 = vmatmul.mubr.f32.gmra.mrb[0].mxu0 %v2913
      %v3038 = vpop.f32.mrb[0].mxu0
      %v3039 = vadd.f32 %v2892, %v3038
      %v3040 = vpop.f32.mrb[0].mxu0
      %3041 = vmatprep.mubr.f32.mxu0 0.0
      %3042 = vmatmul.mubr.f32.gmra.mrb[0].mxu0 %v2916
      %v3043 = vpop.f32.mrb[0].mxu0
      %v3044 = vadd.f32 %v2892, %v3043
      %v3045 = vpop.f32.mrb[0].mxu0
      %3046 = vmatprep.mubr.f32.mxu0 0.0
      %3047 = vmatmul.mubr.f32.gmra.mrb[0].mxu0 %v2919
      %v3048 = vpop.f32.mrb[0].mxu0
      %v3049 = vadd.f32 %v2892, %v3048
      %v3050 = vpop.f32.mrb[0].mxu0
      %3051 = vmatprep.mubr.f32.mxu0 0.0
      %3052 = vmatmul.mubr.f32.gmra.mrb[0].mxu0 %v2922
      %v3053 = vpop.f32.mrb[0].mxu0
      %v3054 = vadd.f32 %v2892, %v3053
      %v3055 = vpop.f32.mrb[0].mxu0
      %3056 = vmatprep.mubr.f32.mxu0 0.0
      %3057 = vmatmul.mubr.f32.gmra.mrb[0].mxu0 %v2925
      %v3058 = vpop.f32.mrb[0].mxu0
      %v3059 = vadd.f32 %v2892, %v3058
      %v3060 = vpop.f32.mrb[0].mxu0
      %3061 = vmatprep.mubr.f32.mxu0 0.0
      %3062 = vmatmul.mubr.f32.gmra.mrb[0].mxu0 %v2928
      %v3063 = vpop.f32.mrb[0].mxu0
      %v3064 = vadd.f32 %v2892, %v3063
      %v3065 = vpop.f32.mrb[0].mxu0
      %3066 = vmatprep.mubr.f32.mxu0 0.0
      %3067 = vmatmul.mubr.f32.gmra.mrb[0].mxu0 %v2931
      %v3068 = vpop.f32.mrb[0].mxu0
      %v3069 = vadd.f32 %v2892, %v3068
      %v3070 = vpop.f32.mrb[0].mxu0
      %3071 = vmatprep.mubr.f32.mxu0 0.0
      %3072 = vmatmul.mubr.f32.gmra.mrb[0].mxu0 %v2934
      %v3073 = vpop.f32.mrb[0].mxu0
      %v3074 = vadd.f32 %v2892, %v3073
      %v3075 = vpop.f32.mrb[0].mxu0
      %3076 = vmatprep.mubr.f32.mxu0 0.0
      %3077 = vmatmul.mubr.f32.gmra.mrb[0].mxu0 %v2937
      %v3078 = vpop.f32.mrb[0].mxu0
      %v3079 = vadd.f32 %v2892, %v3078
      %v3080 = vpop.f32.mrb[0].mxu0
      %3081 = vmatprep.mubr.f32.mxu0 0.0
      %3082 = vmatmul.mubr.f32.gmra.mrb[0].mxu0 %v2940
      %v3083 = vpop.f32.mrb[0].mxu0
      %v3084 = vadd.f32 %v2892, %v3083
      %v3085 = vpop.f32.mrb[0].mxu0
      %3086 = vdwg.mxu0
      %v3087 = vadd.f32 %v2643, %v3009
      %v3088 = vadd.f32 %v2644, %v3014
      %v3089 = vadd.f32 %v2645, %v3019
      %v3090 = vadd.f32 %v2646, %v3024
      %v3091 = vadd.f32 %v2647, %v3029
      %v3092 = vadd.f32 %v2648, %v3034
      %v3093 = vadd.f32 %v2649, %v3039
      %v3094 = vadd.f32 %v2650, %v3044
      %v3095 = vadd.f32 %v2651, %v3049
      %v3096 = vadd.f32 %v2652, %v3054
      %v3097 = vadd.f32 %v2653, %v3059
      %v3098 = vadd.f32 %v2654, %v3064
      %v3099 = vadd.f32 %v2655, %v3069
      %v3100 = vadd.f32 %v2656, %v3074
      %v3101 = vadd.f32 %v2657, %v3079
      %v3102 = vadd.f32 %v2658, %v3084
      %v3103 = vsel %vm889, %v3087, 0.0
      %3104 = vadd.xlane.f32.xlu0 %v3103
      %v3105 = vpop.xlane.xlu0 %3104
      %v3106 = vsel %vm889, %v3088, 0.0
      %3107 = vadd.xlane.f32.xlu0 %v3106
      %v3108 = vpop.xlane.xlu0 %3107
      %v3109 = vsel %vm889, %v3089, 0.0
      %3110 = vadd.xlane.f32.xlu0 %v3109
      %v3111 = vpop.xlane.xlu0 %3110
      %v3112 = vsel %vm889, %v3090, 0.0
      %3113 = vadd.xlane.f32.xlu0 %v3112
      %v3114 = vpop.xlane.xlu0 %3113
      %v3115 = vsel %vm889, %v3091, 0.0
      %3116 = vadd.xlane.f32.xlu0 %v3115
      %v3117 = vpop.xlane.xlu0 %3116
      %v3118 = vsel %vm889, %v3092, 0.0
      %3119 = vadd.xlane.f32.xlu0 %v3118
      %v3120 = vpop.xlane.xlu0 %3119
      %v3121 = vsel %vm889, %v3093, 0.0
      %3122 = vadd.xlane.f32.xlu0 %v3121
      %v3123 = vpop.xlane.xlu0 %3122
      %v3124 = vsel %vm889, %v3094, 0.0
      %3125 = vadd.xlane.f32.xlu0 %v3124
      %v3126 = vpop.xlane.xlu0 %3125
      %v3127 = vsel %vm889, %v3095, 0.0
      %3128 = vadd.xlane.f32.xlu0 %v3127
      %v3129 = vpop.xlane.xlu0 %3128
      %v3130 = vsel %vm889, %v3096, 0.0
      %3131 = vadd.xlane.f32.xlu0 %v3130
      %v3132 = vpop.xlane.xlu0 %3131
      %v3133 = vsel %vm889, %v3097, 0.0
      %3134 = vadd.xlane.f32.xlu0 %v3133
      %v3135 = vpop.xlane.xlu0 %3134
      %v3136 = vsel %vm889, %v3098, 0.0
      %3137 = vadd.xlane.f32.xlu0 %v3136
      %v3138 = vpop.xlane.xlu0 %3137
      %v3139 = vsel %vm889, %v3099, 0.0
      %3140 = vadd.xlane.f32.xlu0 %v3139
      %v3141 = vpop.xlane.xlu0 %3140
      %v3142 = vsel %vm889, %v3100, 0.0
      %3143 = vadd.xlane.f32.xlu0 %v3142
      %v3144 = vpop.xlane.xlu0 %3143
      %v3145 = vsel %vm889, %v3101, 0.0
      %3146 = vadd.xlane.f32.xlu0 %v3145
      %v3147 = vpop.xlane.xlu0 %3146
      %v3148 = vsel %vm889, %v3102, 0.0
      %3149 = vadd.xlane.f32.xlu0 %v3148
      %v3150 = vpop.xlane.xlu0 %3149
      %v3151 = vmul.f32 %v3105, %v2452
      %v3152 = vmul.f32 %v3108, %v2452
      %v3153 = vmul.f32 %v3111, %v2452
      %v3154 = vmul.f32 %v3114, %v2452
      %v3155 = vmul.f32 %v3117, %v2452
      %v3156 = vmul.f32 %v3120, %v2452
      %v3157 = vmul.f32 %v3123, %v2452
      %v3158 = vmul.f32 %v3126, %v2452
      %v3159 = vmul.f32 %v3129, %v2452
      %v3160 = vmul.f32 %v3132, %v2452
      %v3161 = vmul.f32 %v3135, %v2452
      %v3162 = vmul.f32 %v3138, %v2452
      %v3163 = vmul.f32 %v3141, %v2452
      %v3164 = vmul.f32 %v3144, %v2452
      %v3165 = vmul.f32 %v3147, %v2452
      %v3166 = vmul.f32 %v3150, %v2452
      %v3167 = vsub.f32 %v3087, %v3151
      %v3168 = vsub.f32 %v3088, %v3152
      %v3169 = vsub.f32 %v3089, %v3153
      %v3170 = vsub.f32 %v3090, %v3154
      %v3171 = vsub.f32 %v3091, %v3155
      %v3172 = vsub.f32 %v3092, %v3156
      %v3173 = vsub.f32 %v3093, %v3157
      %v3174 = vsub.f32 %v3094, %v3158
      %v3175 = vsub.f32 %v3095, %v3159
      %v3176 = vsub.f32 %v3096, %v3160
      %v3177 = vsub.f32 %v3097, %v3161
      %v3178 = vsub.f32 %v3098, %v3162
      %v3179 = vsub.f32 %v3099, %v3163
      %v3180 = vsub.f32 %v3100, %v3164
      %v3181 = vsub.f32 %v3101, %v3165
      %v3182 = vsub.f32 %v3102, %v3166
      %v3183 = vmul.f32 %v3167, %v3167
      %v3184 = vmul.f32 %v3168, %v3168
      %v3185 = vmul.f32 %v3169, %v3169
      %v3186 = vmul.f32 %v3170, %v3170
      %v3187 = vmul.f32 %v3171, %v3171
      %v3188 = vmul.f32 %v3172, %v3172
      %v3189 = vmul.f32 %v3173, %v3173
      %v3190 = vmul.f32 %v3174, %v3174
      %v3191 = vmul.f32 %v3175, %v3175
      %v3192 = vmul.f32 %v3176, %v3176
      %v3193 = vmul.f32 %v3177, %v3177
      %v3194 = vmul.f32 %v3178, %v3178
      %v3195 = vmul.f32 %v3179, %v3179
      %v3196 = vmul.f32 %v3180, %v3180
      %v3197 = vmul.f32 %v3181, %v3181
      %v3198 = vmul.f32 %v3182, %v3182
      %v3199 = vsel %vm889, %v3183, 0.0
      %3200 = vadd.xlane.f32.xlu0 %v3199
      %v3201 = vpop.xlane.xlu0 %3200
      %v3202 = vsel %vm889, %v3184, 0.0
      %3203 = vadd.xlane.f32.xlu0 %v3202
      %v3204 = vpop.xlane.xlu0 %3203
      %v3205 = vsel %vm889, %v3185, 0.0
      %3206 = vadd.xlane.f32.xlu0 %v3205
      %v3207 = vpop.xlane.xlu0 %3206
      %v3208 = vsel %vm889, %v3186, 0.0
      %3209 = vadd.xlane.f32.xlu0 %v3208
      %v3210 = vpop.xlane.xlu0 %3209
      %v3211 = vsel %vm889, %v3187, 0.0
      %3212 = vadd.xlane.f32.xlu0 %v3211
      %v3213 = vpop.xlane.xlu0 %3212
      %v3214 = vsel %vm889, %v3188, 0.0
      %3215 = vadd.xlane.f32.xlu0 %v3214
      %v3216 = vpop.xlane.xlu0 %3215
      %v3217 = vsel %vm889, %v3189, 0.0
      %3218 = vadd.xlane.f32.xlu0 %v3217
      %v3219 = vpop.xlane.xlu0 %3218
      %v3220 = vsel %vm889, %v3190, 0.0
      %3221 = vadd.xlane.f32.xlu0 %v3220
      %v3222 = vpop.xlane.xlu0 %3221
      %v3223 = vsel %vm889, %v3191, 0.0
      %3224 = vadd.xlane.f32.xlu0 %v3223
      %v3225 = vpop.xlane.xlu0 %3224
      %v3226 = vsel %vm889, %v3192, 0.0
      %3227 = vadd.xlane.f32.xlu0 %v3226
      %v3228 = vpop.xlane.xlu0 %3227
      %v3229 = vsel %vm889, %v3193, 0.0
      %3230 = vadd.xlane.f32.xlu0 %v3229
      %v3231 = vpop.xlane.xlu0 %3230
      %v3232 = vsel %vm889, %v3194, 0.0
      %3233 = vadd.xlane.f32.xlu0 %v3232
      %v3234 = vpop.xlane.xlu0 %3233
      %v3235 = vsel %vm889, %v3195, 0.0
      %3236 = vadd.xlane.f32.xlu0 %v3235
      %v3237 = vpop.xlane.xlu0 %3236
      %v3238 = vsel %vm889, %v3196, 0.0
      %3239 = vadd.xlane.f32.xlu0 %v3238
      %v3240 = vpop.xlane.xlu0 %3239
      %v3241 = vsel %vm889, %v3197, 0.0
      %3242 = vadd.xlane.f32.xlu0 %v3241
      %v3243 = vpop.xlane.xlu0 %3242
      %v3244 = vsel %vm889, %v3198, 0.0
      %3245 = vadd.xlane.f32.xlu0 %v3244
      %v3246 = vpop.xlane.xlu0 %3245
      %v3247 = vmul.f32 %v3201, %v2452
      %v3248 = vmul.f32 %v3204, %v2452
      %v3249 = vmul.f32 %v3207, %v2452
      %v3250 = vmul.f32 %v3210, %v2452
      %v3251 = vmul.f32 %v3213, %v2452
      %v3252 = vmul.f32 %v3216, %v2452
      %v3253 = vmul.f32 %v3219, %v2452
      %v3254 = vmul.f32 %v3222, %v2452
      %v3255 = vmul.f32 %v3225, %v2452
      %v3256 = vmul.f32 %v3228, %v2452
      %v3257 = vmul.f32 %v3231, %v2452
      %v3258 = vmul.f32 %v3234, %v2452
      %v3259 = vmul.f32 %v3237, %v2452
      %v3260 = vmul.f32 %v3240, %v2452
      %v3261 = vmul.f32 %v3243, %v2452
      %v3262 = vmul.f32 %v3246, %v2452
      %v3263 = vadd.f32 %v3247, 1e-05
      %v3264 = vadd.f32 %v3248, 1e-05
      %v3265 = vadd.f32 %v3249, 1e-05
      %v3266 = vadd.f32 %v3250, 1e-05
      %v3267 = vadd.f32 %v3251, 1e-05
      %v3268 = vadd.f32 %v3252, 1e-05
      %v3269 = vadd.f32 %v3253, 1e-05
      %v3270 = vadd.f32 %v3254, 1e-05
      %v3271 = vadd.f32 %v3255, 1e-05
      %v3272 = vadd.f32 %v3256, 1e-05
      %v3273 = vadd.f32 %v3257, 1e-05
      %v3274 = vadd.f32 %v3258, 1e-05
      %v3275 = vadd.f32 %v3259, 1e-05
      %v3276 = vadd.f32 %v3260, 1e-05
      %v3277 = vadd.f32 %v3261, 1e-05
      %v3278 = vadd.f32 %v3262, 1e-05
      %v3279 = vrsqrt.pop %v3263
      %v3280 = vrsqrt.pop %v3264
      %v3281 = vrsqrt.pop %v3265
      %v3282 = vrsqrt.pop %v3266
      %v3283 = vrsqrt.pop %v3267
      %v3284 = vrsqrt.pop %v3268
      %v3285 = vrsqrt.pop %v3269
      %v3286 = vrsqrt.pop %v3270
      %v3287 = vrsqrt.pop %v3271
      %v3288 = vrsqrt.pop %v3272
      %v3289 = vrsqrt.pop %v3273
      %v3290 = vrsqrt.pop %v3274
      %v3291 = vrsqrt.pop %v3275
      %v3292 = vrsqrt.pop %v3276
      %v3293 = vrsqrt.pop %v3277
      %v3294 = vrsqrt.pop %v3278
      %v3295 = vmul.f32 %v3167, %v3279
      %v3296 = vmul.f32 %v3168, %v3280
      %v3297 = vmul.f32 %v3169, %v3281
      %v3298 = vmul.f32 %v3170, %v3282
      %v3299 = vmul.f32 %v3171, %v3283
      %v3300 = vmul.f32 %v3172, %v3284
      %v3301 = vmul.f32 %v3173, %v3285
      %v3302 = vmul.f32 %v3174, %v3286
      %v3303 = vmul.f32 %v3175, %v3287
      %v3304 = vmul.f32 %v3176, %v3288
      %v3305 = vmul.f32 %v3177, %v3289
      %v3306 = vmul.f32 %v3178, %v3290
      %v3307 = vmul.f32 %v3179, %v3291
      %v3308 = vmul.f32 %v3180, %v3292
      %v3309 = vmul.f32 %v3181, %v3293
      %v3310 = vmul.f32 %v3182, %v3294
      %v3311 = vld [vmem:[%s797] sm:$0x1]
      %v3313 = vlaneseq
      %v3314 = vshrl.u32 %v3313, 7
      %v3315 = vsub.s32 0, %v3314
      %v3316 = vrot.slane %v3311, %v3315
      %v3318 = vmul.f32 %v3295, %v3316
      %v3319 = vmul.f32 %v3296, %v3316
      %v3320 = vmul.f32 %v3297, %v3316
      %v3321 = vmul.f32 %v3298, %v3316
      %v3322 = vmul.f32 %v3299, %v3316
      %v3323 = vmul.f32 %v3300, %v3316
      %v3324 = vmul.f32 %v3301, %v3316
      %v3325 = vmul.f32 %v3302, %v3316
      %v3326 = vmul.f32 %v3303, %v3316
      %v3327 = vmul.f32 %v3304, %v3316
      %v3328 = vmul.f32 %v3305, %v3316
      %v3329 = vmul.f32 %v3306, %v3316
      %v3330 = vmul.f32 %v3307, %v3316
      %v3331 = vmul.f32 %v3308, %v3316
      %v3332 = vmul.f32 %v3309, %v3316
      %v3333 = vmul.f32 %v3310, %v3316
      %v3334 = vld [vmem:[%s800] sm:$0x1]
      %v3336 = vlaneseq
      %v3337 = vshrl.u32 %v3336, 7
      %v3338 = vsub.s32 0, %v3337
      %v3339 = vrot.slane %v3334, %v3338
      %v3341 = vadd.f32 %v3318, %v3339
      %v3342 = vadd.f32 %v3319, %v3339
      %v3343 = vadd.f32 %v3320, %v3339
      %v3344 = vadd.f32 %v3321, %v3339
      %v3345 = vadd.f32 %v3322, %v3339
      %v3346 = vadd.f32 %v3323, %v3339
      %v3347 = vadd.f32 %v3324, %v3339
      %v3348 = vadd.f32 %v3325, %v3339
      %v3349 = vadd.f32 %v3326, %v3339
      %v3350 = vadd.f32 %v3327, %v3339
      %v3351 = vadd.f32 %v3328, %v3339
      %v3352 = vadd.f32 %v3329, %v3339
      %v3353 = vadd.f32 %v3330, %v3339
      %v3354 = vadd.f32 %v3331, %v3339
      %v3355 = vadd.f32 %v3332, %v3339
      %v3356 = vadd.f32 %v3333, %v3339
      %3357 = vst.msk [vmem:[#allocation2] sm:$0xff] %vm889, %v3341
      %3358 = vst.msk [vmem:[#allocation2 + $0x8] sm:$0xff] %vm889, %v3342
      %3359 = vst.msk [vmem:[#allocation2 + $0x10] sm:$0xff] %vm889, %v3343
      %3360 = vst.msk [vmem:[#allocation2 + $0x18] sm:$0xff] %vm889, %v3344
      %3361 = vst.msk [vmem:[#allocation2 + $0x20] sm:$0xff] %vm889, %v3345
      %3362 = vst.msk [vmem:[#allocation2 + $0x28] sm:$0xff] %vm889, %v3346
      %3363 = vst.msk [vmem:[#allocation2 + $0x30] sm:$0xff] %vm889, %v3347
      %3364 = vst.msk [vmem:[#allocation2 + $0x38] sm:$0xff] %vm889, %v3348
      %3365 = vst.msk [vmem:[#allocation2 + $0x40] sm:$0xff] %vm889, %v3349
      %3366 = vst.msk [vmem:[#allocation2 + $0x48] sm:$0xff] %vm889, %v3350
      %3367 = vst.msk [vmem:[#allocation2 + $0x50] sm:$0xff] %vm889, %v3351
      %3368 = vst.msk [vmem:[#allocation2 + $0x58] sm:$0xff] %vm889, %v3352
      %3369 = vst.msk [vmem:[#allocation2 + $0x60] sm:$0xff] %vm889, %v3353
      %3370 = vst.msk [vmem:[#allocation2 + $0x68] sm:$0xff] %vm889, %v3354
      %3371 = vst.msk [vmem:[#allocation2 + $0x70] sm:$0xff] %vm889, %v3355
      %3372 = vst.msk [vmem:[#allocation2 + $0x78] sm:$0xff] %vm889, %v3356
      %p3373 = scmp.eq.s32.totalorder %s29, 1
      // Predicated region
      $region97: #{tpu_custom_call.1} parent=91 // pred_check
        %p3374 = pneg %p3373
      $region98: #{tpu_custom_call.1} parent=91 // pred_check_branch
        %3376 = sbr.rel (%p3374) target = $region100
      $region99: #{tpu_custom_call.1} parent=91 // pred_region
        %v3377 = vld [vmem:[#allocation2] sm:$0xff]
        %v3378 = vld [vmem:[#allocation2 + $0x8] sm:$0xff]
        %v3379 = vld [vmem:[#allocation2 + $0x10] sm:$0xff]
        %v3380 = vld [vmem:[#allocation2 + $0x18] sm:$0xff]
        %v3381 = vld [vmem:[#allocation2 + $0x20] sm:$0xff]
        %v3382 = vld [vmem:[#allocation2 + $0x28] sm:$0xff]
        %v3383 = vld [vmem:[#allocation2 + $0x30] sm:$0xff]
        %v3384 = vld [vmem:[#allocation2 + $0x38] sm:$0xff]
        %v3385 = vld [vmem:[#allocation2 + $0x40] sm:$0xff]
        %v3386 = vld [vmem:[#allocation2 + $0x48] sm:$0xff]
        %v3387 = vld [vmem:[#allocation2 + $0x50] sm:$0xff]
        %v3388 = vld [vmem:[#allocation2 + $0x58] sm:$0xff]
        %v3389 = vld [vmem:[#allocation2 + $0x60] sm:$0xff]
        %v3390 = vld [vmem:[#allocation2 + $0x68] sm:$0xff]
        %v3391 = vld [vmem:[#allocation2 + $0x70] sm:$0xff]
        %v3392 = vld [vmem:[#allocation2 + $0x78] sm:$0xff]
        %3393 = vst.msk [vmem:[%s18] sm:$0xff] %vm889, %v3377
        %3394 = vst.msk [vmem:[%s18 + $0x8] sm:$0xff] %vm889, %v3378
        %3395 = vst.msk [vmem:[%s18 + $0x10] sm:$0xff] %vm889, %v3379
        %3396 = vst.msk [vmem:[%s18 + $0x18] sm:$0xff] %vm889, %v3380
        %3397 = vst.msk [vmem:[%s18 + $0x20] sm:$0xff] %vm889, %v3381
        %3398 = vst.msk [vmem:[%s18 + $0x28] sm:$0xff] %vm889, %v3382
        %3399 = vst.msk [vmem:[%s18 + $0x30] sm:$0xff] %vm889, %v3383
        %3400 = vst.msk [vmem:[%s18 + $0x38] sm:$0xff] %vm889, %v3384
        %3401 = vst.msk [vmem:[%s18 + $0x40] sm:$0xff] %vm889, %v3385
        %3402 = vst.msk [vmem:[%s18 + $0x48] sm:$0xff] %vm889, %v3386
        %3403 = vst.msk [vmem:[%s18 + $0x50] sm:$0xff] %vm889, %v3387
        %3404 = vst.msk [vmem:[%s18 + $0x58] sm:$0xff] %vm889, %v3388
        %3405 = vst.msk [vmem:[%s18 + $0x60] sm:$0xff] %vm889, %v3389
        %3406 = vst.msk [vmem:[%s18 + $0x68] sm:$0xff] %vm889, %v3390
        %3407 = vst.msk [vmem:[%s18 + $0x70] sm:$0xff] %vm889, %v3391
        %3408 = vst.msk [vmem:[%s18 + $0x78] sm:$0xff] %vm889, %v3392
      $region100: #{tpu_custom_call.1} parent=91 // pred_fallthru
        _
      // Predicated region
      $region101: #{tpu_custom_call.1} parent=91 // pred_check
        %p3409 = pneg %p500
      $region102: #{tpu_custom_call.1} parent=91 // pred_check_branch
        %3411 = sbr.rel (%p3409) target = $region104
      $region103: #{tpu_custom_call.1} parent=91 // pred_region
        _
      $region104: #{tpu_custom_call.1} parent=91 // pred_fallthru
        _
      // Predicated region
      $region105: #{tpu_custom_call.1} parent=91 // pred_check
        %p3412 = pneg %p500
      $region106: #{tpu_custom_call.1} parent=91 // pred_check_branch
        %3414 = sbr.rel (%p3412) target = $region108
      $region107: #{tpu_custom_call.1} parent=91 // pred_region
        _
      $region108: #{tpu_custom_call.1} parent=91 // pred_fallthru
        _
    $region92: #{tpu_custom_call.1} parent=5 // pred_fallthru
      _
    %p3415 = scmp.le.s32.totalorder 2, %s24
    // Predicated region
    $region109: #{tpu_custom_call.1} parent=5 // pred_check
      %p3416 = pneg %p3415
    $region110: #{tpu_custom_call.1} parent=5 // pred_check_branch
      %3418 = sbr.rel (%p3416) target = $region112
    $region111: #{tpu_custom_call.1} parent=5 // pred_region
      %s3419 = ssub.s32 %s24, 2
    $region112: #{tpu_custom_call.1} parent=5 // pred_fallthru
      _
  $region6: #{tpu_custom_call.1} parent=0 // loop_footer
    %s28 = sadd.s32 1, %s24
  $region7: #{tpu_custom_call.1} parent=0 // loop_footer_branch
    %23 = sbr.rel target = $region3
  $region8: #{tpu_custom_call.1} parent=0 // loop_exit
    _

</llo_original>
